<compile_context>
chip_gen: v6e
topology: v6e:2x2x1
jax: 0.10.0
libtpu: 0.0.40
codegen_flags: <defaults>
</compile_context>

<pallas_src>
import numpy as np
import jax
import jax.numpy as jnp
from jax.experimental import pallas as pl
from jax.experimental.pallas import tpu as pltpu


# ----------------------------------------------------------------------------
# host-side constant builders (tiny, built once at trace time)
# ----------------------------------------------------------------------------
def _adaptive_avg_matrix(in_size, out_size):
    """A[i, k] = 1/|win_i| for k in win_i (PyTorch AdaptiveAvgPool2d windows)."""
    A = np.zeros((out_size, in_size), dtype=np.float32)
    for i in range(out_size):
        s = (i * in_size) // out_size
        e = -((-(i + 1) * in_size) // out_size)      # ceil((i+1)*in/out)
        A[i, s:e] = 1.0 / (e - s)
    return A


def _maxpool_select_mats(H, W):
    """4 selection matrices (one per 2x2 phase) mapping the flattened conv
    output (length H*(W+2), row stride W+2, 2 junk cols/row) to the flattened
    pooled grid (Ho*Wo).  Used so the fused MaxPool needs only matmuls."""
    Wp = W + 2
    Ho, Wo = H // 2, W // 2
    L = H * Wp
    sel = np.zeros((4, L, Ho * Wo), dtype=np.float32)
    for q, (dh, dw) in enumerate(((0, 0), (0, 1), (1, 0), (1, 1))):
        for i in range(Ho):
            for j in range(Wo):
                sel[q, (2 * i + dh) * Wp + (2 * j + dw), i * Wo + j] = 1.0
    return sel


def _avgpool_flat_matrix(Ho, Wo, out_hw=7):
    Ah = _adaptive_avg_matrix(Ho, out_hw)            # (7, Ho)
    Aw = _adaptive_avg_matrix(Wo, out_hw)            # (7, Wo)
    return np.einsum('ia,jb->abij', Ah, Aw).reshape(Ho * Wo, out_hw * out_hw)


# ----------------------------------------------------------------------------
# Kernel 1: fused conv3x3 + bias + ReLU + maxpool(2) + adaptive avgpool(7,7)
# ----------------------------------------------------------------------------
def _make_conv_pool_kernel(C, Cout, H, W):
    Wp = W + 2
    L = H * Wp            # flattened conv-output length (2 junk cols per row)

    def kernel(x_ref, w_ref, b_ref, sel_ref, avg_ref, o_ref):
        # x_ref  : (C, Fpad)      bf16  padded + row-flattened input (stride Wp)
        # w_ref  : (9, Cout, C)   bf16  per-tap weights
        # b_ref  : (Cout, 1)      f32
        # sel_ref: (4, L, Ho*Wo)  f32   maxpool phase-selection matrices
        # avg_ref: (Ho*Wo, 49)    f32   adaptive-avg-pool matrix
        # o_ref  : (Cout, 49)     bf16  pooled features (channel-major)
        acc = None
        for t in range(9):                            # 9 accumulating taps, K=C
            kh, kw = divmod(t, 3)
            xt = x_ref[:, pl.ds(kh * Wp + kw, L)]     # contiguous (C, L) slice
            ct = jnp.dot(w_ref[t], xt, preferred_element_type=jnp.float32)
            acc = ct if acc is None else acc + ct     # (Cout, L) f32
        acc = jnp.maximum(acc + b_ref[...], 0.0)      # bias + ReLU

        mp = None
        for q in range(4):                            # fused MaxPool2d(2)
            v = jnp.dot(acc, sel_ref[q], preferred_element_type=jnp.float32)
            mp = v if mp is None else jnp.maximum(mp, v)   # (Cout, Ho*Wo)

        feat = jnp.dot(mp, avg_ref[...], preferred_element_type=jnp.float32)
        o_ref[...] = feat.astype(o_ref.dtype)         # (Cout, 49)

    return kernel


def conv_relu_pool_avgpool(x, conv_w, conv_b):
    B, C, H, W = x.shape
    Cout = conv_w.shape[0]
    assert H % 2 == 0 and W % 2 == 0, "fused MaxPool2d(2) path assumes even H, W"
    Hp, Wp = H + 2, W + 2
    Ho, Wo = H // 2, W // 2
    L = H * Wp
    Fpad = ((Hp * Wp + 2 + 127) // 128) * 128   # lane-pad; +2 covers the last tap

    # Single halo strip: pad once, flatten row-major, lane-pad (~1.5x input
    # traffic instead of the previous 9x im2col + 5-D transpose).
    xpad = jnp.pad(x.astype(jnp.bfloat16), ((0, 0), (0, 0), (1, 1), (1, 1)))
    xflat = xpad.reshape(B, C, Hp * Wp)
    xflat = jnp.pad(xflat, ((0, 0), (0, 0), (0, Fpad - Hp * Wp)))

    w_taps = jnp.transpose(conv_w.astype(jnp.bfloat16),
                           (2, 3, 0, 1)).reshape(9, Cout, C)       # t = kh*3+kw
    bias = conv_b.astype(jnp.float32).reshape(Cout, 1)
    sel = jnp.asarray(_maxpool_select_mats(H, W))                  # (4, L, Ho*Wo)
    avg = jnp.asarray(_avgpool_flat_matrix(Ho, Wo, 7))             # (Ho*Wo, 49)

    flops = 2 * B * (Cout * C * 9 * L + 4 * Cout * L * Ho * Wo + Cout * Ho * Wo * 49)
    bytes_accessed = (xflat.size * 2 + w_taps.size * 2 + sel.size * 4
                      + avg.size * 4 + B * Cout * 49 * 2)

    return pl.pallas_call(
        _make_conv_pool_kernel(C, Cout, H, W),
        out_shape=jax.ShapeDtypeStruct((B, Cout, 49), jnp.bfloat16),
        grid=(B,),
        in_specs=[
            pl.BlockSpec((None, C, Fpad), lambda b: (b, 0, 0)),
            pl.BlockSpec((9, Cout, C), lambda b: (0, 0, 0)),
            pl.BlockSpec((Cout, 1), lambda b: (0, 0)),
            pl.BlockSpec((4, L, Ho * Wo), lambda b: (0, 0, 0)),
            pl.BlockSpec((Ho * Wo, 49), lambda b: (0, 0)),
        ],
        out_specs=pl.BlockSpec((None, Cout, 49), lambda b: (b, 0, 0)),
        compiler_params=pltpu.CompilerParams(
            dimension_semantics=("parallel",)),
        cost_estimate=pl.CostEstimate(flops=int(flops), transcendentals=0,
                                      bytes_accessed=int(bytes_accessed)),
    )(xflat, w_taps, bias, sel, avg)          # (B, Cout, 49) bf16, (c, i*7+j)


# ----------------------------------------------------------------------------
# Kernel 2: fused classifier Linear(3136,64) + ReLU + Dropout(id) + Linear(64,nc)
# ----------------------------------------------------------------------------
def _classifier_kernel(x_ref, w1_ref, b1_ref, w2_ref, b2_ref, o_ref):
    h = jnp.dot(x_ref[...], w1_ref[...], preferred_element_type=jnp.float32)
    h = jnp.maximum(h + b1_ref[...], 0.0)
    # Dropout(): identity in eval-mode deterministic forward.
    o = jnp.dot(h, w2_ref[...].astype(jnp.float32),
                preferred_element_type=jnp.float32)
    o_ref[...] = (o + b2_ref[...]).astype(o_ref.dtype)


def _row_tile(n):
    for t in (128, 64, 32, 16, 8):
        if n % t == 0:
            return t
    return n


def classifier(feats, fc1_w, fc1_b, fc2_w, fc2_b):
    B, F = feats.shape
    H1 = fc1_w.shape[0]
    NC = fc2_w.shape[0]
    tm = _row_tile(B)                                   # tiled over M, parallel
    w1t = fc1_w.astype(jnp.bfloat16).T                  # (F, H1)
    w2t = fc2_w.astype(jnp.bfloat16).T                  # (H1, NC)
    b1 = fc1_b.astype(jnp.float32).reshape(1, H1)
    b2 = fc2_b.astype(jnp.float32).reshape(1, NC)
    return pl.pallas_call(
        _classifier_kernel,
        out_shape=jax.ShapeDtypeStruct((B, NC), jnp.float32),
        grid=(B // tm,),
        in_specs=[
            pl.BlockSpec((tm, F), lambda i: (i, 0)),
            pl.BlockSpec((F, H1), lambda i: (0, 0)),
            pl.BlockSpec((1, H1), lambda i: (0, 0)),
            pl.BlockSpec((H1, NC), lambda i: (0, 0)),
            pl.BlockSpec((1, NC), lambda i: (0, 0)),
        ],
        out_specs=pl.BlockSpec((tm, NC), lambda i: (i, 0)),
        compiler_params=pltpu.CompilerParams(
            dimension_semantics=("parallel",)),
    )(feats.astype(jnp.bfloat16), w1t, b1, w2t, b2)


# ----------------------------------------------------------------------------
# Full forward
# ----------------------------------------------------------------------------
def vgg_forward(x, params):
    conv_w, conv_b, fc1_w, fc1_b, fc2_w, fc2_b = params
    B = x.shape[0]
    Cout = conv_w.shape[0]
    assert Cout * 49 == fc1_w.shape[1], "classifier expects 64*7*7 features"
    feats = conv_relu_pool_avgpool(x, conv_w, conv_b)   # (B, Cout, 49) bf16
    feats = feats.reshape(B, Cout * 49)                 # == x.view(-1, 64*7*7)
    return classifier(feats, fc1_w, fc1_b, fc2_w, fc2_b)


# ----------------------------------------------------------------------------
# Pure-JAX f32 reference (inputs/weights rounded through bf16 to mirror the
# kernel's bf16 MXU feeds; accumulation f32 in both paths).
# ----------------------------------------------------------------------------
def vgg_reference(x, params):
    conv_w, conv_b, fc1_w, fc1_b, fc2_w, fc2_b = params
    r = lambda a: a.astype(jnp.bfloat16).astype(jnp.float32)
    B, C, H, W = x.shape
    y = jax.lax.conv_general_dilated(
        r(x), r(conv_w), (1, 1), ((1, 1), (1, 1)),
        dimension_numbers=('NCHW', 'OIHW', 'NCHW'))
    y = jnp.maximum(y + conv_b[None, :, None, None], 0.0)
    Cout = y.shape[1]
    Ho, Wo = H // 2, W // 2
    y = jnp.max(y[:, :, :Ho * 2, :Wo * 2].reshape(B, Cout, Ho, 2, Wo, 2),
                axis=(3, 5))
    Ah = jnp.asarray(_adaptive_avg_matrix(Ho, 7))
    Aw = jnp.asarray(_adaptive_avg_matrix(Wo, 7))
    y = jnp.einsum('ncab,ia,jb->ncij', y, Ah, Aw)
    y = y.reshape(B, -1)
    y = jnp.maximum(y @ r(fc1_w).T + fc1_b, 0.0)
    y = y @ r(fc2_w).T + fc2_b
    return y


# ----------------------------------------------------------------------------
if __name__ == "__main__":
    B, C_in, H, W = 2, 4, 16, 16
    num_classes = 2

    key = jax.random.PRNGKey(0)
    k = jax.random.split(key, 7)
    x = jax.random.normal(k[0], (B, C_in, H, W), dtype=jnp.float32)

    conv_w = jax.random.normal(k[1], (64, C_in, 3, 3), jnp.float32) * 0.05
    conv_b = jax.random.normal(k[2], (64,), jnp.float32) * 0.05
    fc1_w = jax.random.normal(k[3], (64, 64 * 7 * 7), jnp.float32) * 0.02
    fc1_b = jax.random.normal(k[4], (64,), jnp.float32) * 0.02
    fc2_w = jax.random.normal(k[5], (num_classes, 64), jnp.float32) * 0.05
    fc2_b = jax.random.normal(k[6], (num_classes,), jnp.float32) * 0.05
    params = (conv_w, conv_b, fc1_w, fc1_b, fc2_w, fc2_b)

    out = jax.block_until_ready(jax.jit(vgg_forward)(x, params))
    ref = jax.block_until_ready(vgg_reference(x, params))

    assert out.shape == (B, num_classes), out.shape
    np.testing.assert_allclose(np.asarray(out, dtype=np.float32),
                               np.asarray(ref, dtype=np.float32),
                               rtol=1e-2, atol=1e-2)
    print("KERNEL_OK")
</pallas_src>

<mosaic_0001>
module attributes {stable_mosaic.version = 11 : i64} {
  func.func @kernel(%arg0: i32, %arg1: memref<1x4x384xbf16, #tpu.memory_space<vmem>>, %arg2: memref<9x64x4xbf16, #tpu.memory_space<vmem>>, %arg3: memref<64x1xf32, #tpu.memory_space<vmem>>, %arg4: memref<4x288x64xf32, #tpu.memory_space<vmem>>, %arg5: memref<64x49xf32, #tpu.memory_space<vmem>>, %arg6: memref<1x64x49xbf16, #tpu.memory_space<vmem>>) attributes {dimension_semantics = [#tpu.dimension_semantics<parallel>], iteration_bounds = array<i64: 2>, scalar_prefetch = 0 : i64, scratch_operands = 0 : i64, tpu.core_type = #tpu.core_type<tc>, window_params = [{transform_indices = @transform_0, window_bounds = array<i64: 1, 4, 384>}, {pipeline_mode = #tpu.pipeline_mode<synchronous>, transform_indices = @transform_1, window_bounds = array<i64: 9, 64, 4>}, {pipeline_mode = #tpu.pipeline_mode<synchronous>, transform_indices = @transform_2, window_bounds = array<i64: 64, 1>}, {pipeline_mode = #tpu.pipeline_mode<synchronous>, transform_indices = @transform_3, window_bounds = array<i64: 4, 288, 64>}, {pipeline_mode = #tpu.pipeline_mode<synchronous>, transform_indices = @transform_4, window_bounds = array<i64: 64, 49>}, {transform_indices = @transform_5, window_bounds = array<i64: 1, 64, 49>}]} {
    %c0 = arith.constant 0 : index
    %c0_0 = arith.constant 0 : index
    %c0_1 = arith.constant 0 : index
    %0 = vector.load %arg1[%c0, %c0_0, %c0_1] : memref<1x4x384xbf16, #tpu.memory_space<vmem>>, vector<1x4x288xbf16>
    %1 = vector.shape_cast %0 : vector<1x4x288xbf16> to vector<4x288xbf16>
    %c0_2 = arith.constant 0 : index
    %c0_3 = arith.constant 0 : index
    %c0_4 = arith.constant 0 : index
    %2 = vector.load %arg2[%c0_2, %c0_3, %c0_4] : memref<9x64x4xbf16, #tpu.memory_space<vmem>>, vector<1x64x4xbf16>
    %3 = vector.shape_cast %2 : vector<1x64x4xbf16> to vector<64x4xbf16>
    %cst = arith.constant dense<0.000000e+00> : vector<64x288xf32>
    %4 = tpu.matmul %3, %1, %cst {dimension_numbers = #tpu.dot_dimension_numbers<[1], [0], [0], [1], [0, 0, 1, 1], [], []>} : vector<64x4xbf16>, vector<4x288xbf16>, vector<64x288xf32> -> vector<64x288xf32>
    %c0_5 = arith.constant 0 : index
    %c0_6 = arith.constant 0 : index
    %c1 = arith.constant 1 : index
    %5 = vector.load %arg1[%c0_5, %c0_6, %c1] : memref<1x4x384xbf16, #tpu.memory_space<vmem>>, vector<1x4x288xbf16>
    %6 = vector.shape_cast %5 : vector<1x4x288xbf16> to vector<4x288xbf16>
    %c1_7 = arith.constant 1 : index
    %c0_8 = arith.constant 0 : index
    %c0_9 = arith.constant 0 : index
    %7 = vector.load %arg2[%c1_7, %c0_8, %c0_9] : memref<9x64x4xbf16, #tpu.memory_space<vmem>>, vector<1x64x4xbf16>
    %8 = vector.shape_cast %7 : vector<1x64x4xbf16> to vector<64x4xbf16>
    %cst_10 = arith.constant dense<0.000000e+00> : vector<64x288xf32>
    %9 = tpu.matmul %8, %6, %cst_10 {dimension_numbers = #tpu.dot_dimension_numbers<[1], [0], [0], [1], [0, 0, 1, 1], [], []>} : vector<64x4xbf16>, vector<4x288xbf16>, vector<64x288xf32> -> vector<64x288xf32>
    %10 = arith.addf %4, %9 : vector<64x288xf32>
    %c0_11 = arith.constant 0 : index
    %c0_12 = arith.constant 0 : index
    %c2 = arith.constant 2 : index
    %11 = vector.load %arg1[%c0_11, %c0_12, %c2] : memref<1x4x384xbf16, #tpu.memory_space<vmem>>, vector<1x4x288xbf16>
    %12 = vector.shape_cast %11 : vector<1x4x288xbf16> to vector<4x288xbf16>
    %c2_13 = arith.constant 2 : index
    %c0_14 = arith.constant 0 : index
    %c0_15 = arith.constant 0 : index
    %13 = vector.load %arg2[%c2_13, %c0_14, %c0_15] : memref<9x64x4xbf16, #tpu.memory_space<vmem>>, vector<1x64x4xbf16>
    %14 = vector.shape_cast %13 : vector<1x64x4xbf16> to vector<64x4xbf16>
    %cst_16 = arith.constant dense<0.000000e+00> : vector<64x288xf32>
    %15 = tpu.matmul %14, %12, %cst_16 {dimension_numbers = #tpu.dot_dimension_numbers<[1], [0], [0], [1], [0, 0, 1, 1], [], []>} : vector<64x4xbf16>, vector<4x288xbf16>, vector<64x288xf32> -> vector<64x288xf32>
    %16 = arith.addf %10, %15 : vector<64x288xf32>
    %c0_17 = arith.constant 0 : index
    %c0_18 = arith.constant 0 : index
    %c18 = arith.constant 18 : index
    %17 = vector.load %arg1[%c0_17, %c0_18, %c18] : memref<1x4x384xbf16, #tpu.memory_space<vmem>>, vector<1x4x288xbf16>
    %18 = vector.shape_cast %17 : vector<1x4x288xbf16> to vector<4x288xbf16>
    %c3 = arith.constant 3 : index
    %c0_19 = arith.constant 0 : index
    %c0_20 = arith.constant 0 : index
    %19 = vector.load %arg2[%c3, %c0_19, %c0_20] : memref<9x64x4xbf16, #tpu.memory_space<vmem>>, vector<1x64x4xbf16>
    %20 = vector.shape_cast %19 : vector<1x64x4xbf16> to vector<64x4xbf16>
    %cst_21 = arith.constant dense<0.000000e+00> : vector<64x288xf32>
    %21 = tpu.matmul %20, %18, %cst_21 {dimension_numbers = #tpu.dot_dimension_numbers<[1], [0], [0], [1], [0, 0, 1, 1], [], []>} : vector<64x4xbf16>, vector<4x288xbf16>, vector<64x288xf32> -> vector<64x288xf32>
    %22 = arith.addf %16, %21 : vector<64x288xf32>
    %c0_22 = arith.constant 0 : index
    %c0_23 = arith.constant 0 : index
    %c19 = arith.constant 19 : index
    %23 = vector.load %arg1[%c0_22, %c0_23, %c19] : memref<1x4x384xbf16, #tpu.memory_space<vmem>>, vector<1x4x288xbf16>
    %24 = vector.shape_cast %23 : vector<1x4x288xbf16> to vector<4x288xbf16>
    %c4 = arith.constant 4 : index
    %c0_24 = arith.constant 0 : index
    %c0_25 = arith.constant 0 : index
    %25 = vector.load %arg2[%c4, %c0_24, %c0_25] : memref<9x64x4xbf16, #tpu.memory_space<vmem>>, vector<1x64x4xbf16>
    %26 = vector.shape_cast %25 : vector<1x64x4xbf16> to vector<64x4xbf16>
    %cst_26 = arith.constant dense<0.000000e+00> : vector<64x288xf32>
    %27 = tpu.matmul %26, %24, %cst_26 {dimension_numbers = #tpu.dot_dimension_numbers<[1], [0], [0], [1], [0, 0, 1, 1], [], []>} : vector<64x4xbf16>, vector<4x288xbf16>, vector<64x288xf32> -> vector<64x288xf32>
    %28 = arith.addf %22, %27 : vector<64x288xf32>
    %c0_27 = arith.constant 0 : index
    %c0_28 = arith.constant 0 : index
    %c20 = arith.constant 20 : index
    %29 = vector.load %arg1[%c0_27, %c0_28, %c20] : memref<1x4x384xbf16, #tpu.memory_space<vmem>>, vector<1x4x288xbf16>
    %30 = vector.shape_cast %29 : vector<1x4x288xbf16> to vector<4x288xbf16>
    %c5 = arith.constant 5 : index
    %c0_29 = arith.constant 0 : index
    %c0_30 = arith.constant 0 : index
    %31 = vector.load %arg2[%c5, %c0_29, %c0_30] : memref<9x64x4xbf16, #tpu.memory_space<vmem>>, vector<1x64x4xbf16>
    %32 = vector.shape_cast %31 : vector<1x64x4xbf16> to vector<64x4xbf16>
    %cst_31 = arith.constant dense<0.000000e+00> : vector<64x288xf32>
    %33 = tpu.matmul %32, %30, %cst_31 {dimension_numbers = #tpu.dot_dimension_numbers<[1], [0], [0], [1], [0, 0, 1, 1], [], []>} : vector<64x4xbf16>, vector<4x288xbf16>, vector<64x288xf32> -> vector<64x288xf32>
    %34 = arith.addf %28, %33 : vector<64x288xf32>
    %c0_32 = arith.constant 0 : index
    %c0_33 = arith.constant 0 : index
    %c36 = arith.constant 36 : index
    %35 = vector.load %arg1[%c0_32, %c0_33, %c36] : memref<1x4x384xbf16, #tpu.memory_space<vmem>>, vector<1x4x288xbf16>
    %36 = vector.shape_cast %35 : vector<1x4x288xbf16> to vector<4x288xbf16>
    %c6 = arith.constant 6 : index
    %c0_34 = arith.constant 0 : index
    %c0_35 = arith.constant 0 : index
    %37 = vector.load %arg2[%c6, %c0_34, %c0_35] : memref<9x64x4xbf16, #tpu.memory_space<vmem>>, vector<1x64x4xbf16>
    %38 = vector.shape_cast %37 : vector<1x64x4xbf16> to vector<64x4xbf16>
    %cst_36 = arith.constant dense<0.000000e+00> : vector<64x288xf32>
    %39 = tpu.matmul %38, %36, %cst_36 {dimension_numbers = #tpu.dot_dimension_numbers<[1], [0], [0], [1], [0, 0, 1, 1], [], []>} : vector<64x4xbf16>, vector<4x288xbf16>, vector<64x288xf32> -> vector<64x288xf32>
    %40 = arith.addf %34, %39 : vector<64x288xf32>
    %c0_37 = arith.constant 0 : index
    %c0_38 = arith.constant 0 : index
    %c37 = arith.constant 37 : index
    %41 = vector.load %arg1[%c0_37, %c0_38, %c37] : memref<1x4x384xbf16, #tpu.memory_space<vmem>>, vector<1x4x288xbf16>
    %42 = vector.shape_cast %41 : vector<1x4x288xbf16> to vector<4x288xbf16>
    %c7 = arith.constant 7 : index
    %c0_39 = arith.constant 0 : index
    %c0_40 = arith.constant 0 : index
    %43 = vector.load %arg2[%c7, %c0_39, %c0_40] : memref<9x64x4xbf16, #tpu.memory_space<vmem>>, vector<1x64x4xbf16>
    %44 = vector.shape_cast %43 : vector<1x64x4xbf16> to vector<64x4xbf16>
    %cst_41 = arith.constant dense<0.000000e+00> : vector<64x288xf32>
    %45 = tpu.matmul %44, %42, %cst_41 {dimension_numbers = #tpu.dot_dimension_numbers<[1], [0], [0], [1], [0, 0, 1, 1], [], []>} : vector<64x4xbf16>, vector<4x288xbf16>, vector<64x288xf32> -> vector<64x288xf32>
    %46 = arith.addf %40, %45 : vector<64x288xf32>
    %c0_42 = arith.constant 0 : index
    %c0_43 = arith.constant 0 : index
    %c38 = arith.constant 38 : index
    %47 = vector.load %arg1[%c0_42, %c0_43, %c38] : memref<1x4x384xbf16, #tpu.memory_space<vmem>>, vector<1x4x288xbf16>
    %48 = vector.shape_cast %47 : vector<1x4x288xbf16> to vector<4x288xbf16>
    %c8 = arith.constant 8 : index
    %c0_44 = arith.constant 0 : index
    %c0_45 = arith.constant 0 : index
    %49 = vector.load %arg2[%c8, %c0_44, %c0_45] : memref<9x64x4xbf16, #tpu.memory_space<vmem>>, vector<1x64x4xbf16>
    %50 = vector.shape_cast %49 : vector<1x64x4xbf16> to vector<64x4xbf16>
    %cst_46 = arith.constant dense<0.000000e+00> : vector<64x288xf32>
    %51 = tpu.matmul %50, %48, %cst_46 {dimension_numbers = #tpu.dot_dimension_numbers<[1], [0], [0], [1], [0, 0, 1, 1], [], []>} : vector<64x4xbf16>, vector<4x288xbf16>, vector<64x288xf32> -> vector<64x288xf32>
    %52 = arith.addf %46, %51 : vector<64x288xf32>
    %c0_47 = arith.constant 0 : index
    %c0_48 = arith.constant 0 : index
    %53 = vector.load %arg3[%c0_47, %c0_48] : memref<64x1xf32, #tpu.memory_space<vmem>>, vector<64x1xf32>
    %54 = vector.broadcast %53 : vector<64x1xf32> to vector<64x288xf32>
    %55 = arith.addf %52, %54 : vector<64x288xf32>
    %cst_49 = arith.constant 0.000000e+00 : f32
    %56 = vector.broadcast %cst_49 : f32 to vector<64x288xf32>
    %57 = arith.maximumf %55, %56 : vector<64x288xf32>
    %c0_50 = arith.constant 0 : index
    %c0_51 = arith.constant 0 : index
    %c0_52 = arith.constant 0 : index
    %58 = vector.load %arg4[%c0_50, %c0_51, %c0_52] : memref<4x288x64xf32, #tpu.memory_space<vmem>>, vector<1x288x64xf32>
    %59 = vector.shape_cast %58 : vector<1x288x64xf32> to vector<288x64xf32>
    %cst_53 = arith.constant dense<0.000000e+00> : vector<64x64xf32>
    %60 = tpu.matmul %57, %59, %cst_53 {dimension_numbers = #tpu.dot_dimension_numbers<[1], [0], [0], [1], [0, 0, 1, 1], [], []>} : vector<64x288xf32>, vector<288x64xf32>, vector<64x64xf32> -> vector<64x64xf32>
    %c1_54 = arith.constant 1 : index
    %c0_55 = arith.constant 0 : index
    %c0_56 = arith.constant 0 : index
    %61 = vector.load %arg4[%c1_54, %c0_55, %c0_56] : memref<4x288x64xf32, #tpu.memory_space<vmem>>, vector<1x288x64xf32>
    %62 = vector.shape_cast %61 : vector<1x288x64xf32> to vector<288x64xf32>
    %cst_57 = arith.constant dense<0.000000e+00> : vector<64x64xf32>
    %63 = tpu.matmul %57, %62, %cst_57 {dimension_numbers = #tpu.dot_dimension_numbers<[1], [0], [0], [1], [0, 0, 1, 1], [], []>} : vector<64x288xf32>, vector<288x64xf32>, vector<64x64xf32> -> vector<64x64xf32>
    %64 = arith.maximumf %60, %63 : vector<64x64xf32>
    %c2_58 = arith.constant 2 : index
    %c0_59 = arith.constant 0 : index
    %c0_60 = arith.constant 0 : index
    %65 = vector.load %arg4[%c2_58, %c0_59, %c0_60] : memref<4x288x64xf32, #tpu.memory_space<vmem>>, vector<1x288x64xf32>
    %66 = vector.shape_cast %65 : vector<1x288x64xf32> to vector<288x64xf32>
    %cst_61 = arith.constant dense<0.000000e+00> : vector<64x64xf32>
    %67 = tpu.matmul %57, %66, %cst_61 {dimension_numbers = #tpu.dot_dimension_numbers<[1], [0], [0], [1], [0, 0, 1, 1], [], []>} : vector<64x288xf32>, vector<288x64xf32>, vector<64x64xf32> -> vector<64x64xf32>
    %68 = arith.maximumf %64, %67 : vector<64x64xf32>
    %c3_62 = arith.constant 3 : index
    %c0_63 = arith.constant 0 : index
    %c0_64 = arith.constant 0 : index
    %69 = vector.load %arg4[%c3_62, %c0_63, %c0_64] : memref<4x288x64xf32, #tpu.memory_space<vmem>>, vector<1x288x64xf32>
    %70 = vector.shape_cast %69 : vector<1x288x64xf32> to vector<288x64xf32>
    %cst_65 = arith.constant dense<0.000000e+00> : vector<64x64xf32>
    %71 = tpu.matmul %57, %70, %cst_65 {dimension_numbers = #tpu.dot_dimension_numbers<[1], [0], [0], [1], [0, 0, 1, 1], [], []>} : vector<64x288xf32>, vector<288x64xf32>, vector<64x64xf32> -> vector<64x64xf32>
    %72 = arith.maximumf %68, %71 : vector<64x64xf32>
    %c0_66 = arith.constant 0 : index
    %c0_67 = arith.constant 0 : index
    %73 = vector.load %arg5[%c0_66, %c0_67] : memref<64x49xf32, #tpu.memory_space<vmem>>, vector<64x49xf32>
    %cst_68 = arith.constant dense<0.000000e+00> : vector<64x49xf32>
    %74 = tpu.matmul %72, %73, %cst_68 {dimension_numbers = #tpu.dot_dimension_numbers<[1], [0], [0], [1], [0, 0, 1, 1], [], []>} : vector<64x64xf32>, vector<64x49xf32>, vector<64x49xf32> -> vector<64x49xf32>
    %75 = arith.truncf %74 : vector<64x49xf32> to vector<64x49xbf16>
    %c0_69 = arith.constant 0 : index
    %c0_70 = arith.constant 0 : index
    %c0_71 = arith.constant 0 : index
    %76 = vector.load %arg6[%c0_69, %c0_70, %c0_71] : memref<1x64x49xbf16, #tpu.memory_space<vmem>>, vector<1x64x49xbf16>
    %77 = vector.shape_cast %76 : vector<1x64x49xbf16> to vector<64x49xbf16>
    %78 = vector.shape_cast %75 : vector<64x49xbf16> to vector<1x64x49xbf16>
    tpu.vector_store %arg6[%c0_69, %c0_70, %c0_71], %78 {strides = array<i32>} : memref<1x64x49xbf16, #tpu.memory_space<vmem>>, vector<1x64x49xbf16>,
    return
  }
  func.func @transform_0(%arg0: i32) -> (i32, i32, i32) {
    %c0_i32 = arith.constant 0 : i32
    %c0_i32_0 = arith.constant 0 : i32
    %c0_i32_1 = arith.constant 0 : i32
    return %arg0, %c0_i32, %c0_i32_0 : i32, i32, i32
  }
  func.func @transform_1(%arg0: i32) -> (i32, i32, i32) {
    %c0_i32 = arith.constant 0 : i32
    %c0_i32_0 = arith.constant 0 : i32
    %c0_i32_1 = arith.constant 0 : i32
    %c0_i32_2 = arith.constant 0 : i32
    return %c0_i32, %c0_i32_0, %c0_i32_1 : i32, i32, i32
  }
  func.func @transform_2(%arg0: i32) -> (i32, i32) {
    %c0_i32 = arith.constant 0 : i32
    %c0_i32_0 = arith.constant 0 : i32
    %c0_i32_1 = arith.constant 0 : i32
    return %c0_i32, %c0_i32_0 : i32, i32
  }
  func.func @transform_3(%arg0: i32) -> (i32, i32, i32) {
    %c0_i32 = arith.constant 0 : i32
    %c0_i32_0 = arith.constant 0 : i32
    %c0_i32_1 = arith.constant 0 : i32
    %c0_i32_2 = arith.constant 0 : i32
    return %c0_i32, %c0_i32_0, %c0_i32_1 : i32, i32, i32
  }
  func.func @transform_4(%arg0: i32) -> (i32, i32) {
    %c0_i32 = arith.constant 0 : i32
    %c0_i32_0 = arith.constant 0 : i32
    %c0_i32_1 = arith.constant 0 : i32
    return %c0_i32, %c0_i32_0 : i32, i32
  }
  func.func @transform_5(%arg0: i32) -> (i32, i32, i32) {
    %c0_i32 = arith.constant 0 : i32
    %c0_i32_0 = arith.constant 0 : i32
    %c0_i32_1 = arith.constant 0 : i32
    return %arg0, %c0_i32, %c0_i32_0 : i32, i32, i32
  }
}

module attributes {stable_mosaic.version = 11 : i64} {
  func.func @_classifier_kernel(%arg0: i32, %arg1: memref<2x3136xbf16, #tpu.memory_space<vmem>>, %arg2: memref<3136x64xbf16, #tpu.memory_space<vmem>>, %arg3: memref<1x64xf32, #tpu.memory_space<vmem>>, %arg4: memref<64x2xbf16, #tpu.memory_space<vmem>>, %arg5: memref<1x2xf32, #tpu.memory_space<vmem>>, %arg6: memref<2x2xf32, #tpu.memory_space<vmem>>) attributes {dimension_semantics = [#tpu.dimension_semantics<parallel>], iteration_bounds = array<i64: 1>, scalar_prefetch = 0 : i64, scratch_operands = 0 : i64, tpu.core_type = #tpu.core_type<tc>, window_params = [{transform_indices = @transform_0, window_bounds = array<i64: 2, 3136>}, {pipeline_mode = #tpu.pipeline_mode<synchronous>, transform_indices = @transform_1, window_bounds = array<i64: 3136, 64>}, {pipeline_mode = #tpu.pipeline_mode<synchronous>, transform_indices = @transform_2, window_bounds = array<i64: 1, 64>}, {pipeline_mode = #tpu.pipeline_mode<synchronous>, transform_indices = @transform_3, window_bounds = array<i64: 64, 2>}, {pipeline_mode = #tpu.pipeline_mode<synchronous>, transform_indices = @transform_4, window_bounds = array<i64: 1, 2>}, {transform_indices = @transform_5, window_bounds = array<i64: 2, 2>}]} {
    %c0 = arith.constant 0 : index
    %c0_0 = arith.constant 0 : index
    %0 = vector.load %arg1[%c0, %c0_0] : memref<2x3136xbf16, #tpu.memory_space<vmem>>, vector<2x3136xbf16>
    %c0_1 = arith.constant 0 : index
    %c0_2 = arith.constant 0 : index
    %1 = vector.load %arg2[%c0_1, %c0_2] : memref<3136x64xbf16, #tpu.memory_space<vmem>>, vector<3136x64xbf16>
    %cst = arith.constant dense<0.000000e+00> : vector<2x64xf32>
    %2 = tpu.matmul %0, %1, %cst {dimension_numbers = #tpu.dot_dimension_numbers<[1], [0], [0], [1], [0, 0, 1, 1], [], []>} : vector<2x3136xbf16>, vector<3136x64xbf16>, vector<2x64xf32> -> vector<2x64xf32>
    %c0_3 = arith.constant 0 : index
    %c0_4 = arith.constant 0 : index
    %3 = vector.load %arg3[%c0_3, %c0_4] : memref<1x64xf32, #tpu.memory_space<vmem>>, vector<1x64xf32>
    %4 = vector.broadcast %3 : vector<1x64xf32> to vector<2x64xf32>
    %5 = arith.addf %2, %4 : vector<2x64xf32>
    %cst_5 = arith.constant 0.000000e+00 : f32
    %6 = vector.broadcast %cst_5 : f32 to vector<2x64xf32>
    %7 = arith.maximumf %5, %6 : vector<2x64xf32>
    %c0_6 = arith.constant 0 : index
    %c0_7 = arith.constant 0 : index
    %8 = vector.load %arg4[%c0_6, %c0_7] : memref<64x2xbf16, #tpu.memory_space<vmem>>, vector<64x2xbf16>
    %9 = arith.extf %8 : vector<64x2xbf16> to vector<64x2xf32>
    %cst_8 = arith.constant dense<0.000000e+00> : vector<2x2xf32>
    %10 = tpu.matmul %7, %9, %cst_8 {dimension_numbers = #tpu.dot_dimension_numbers<[1], [0], [0], [1], [0, 0, 1, 1], [], []>} : vector<2x64xf32>, vector<64x2xf32>, vector<2x2xf32> -> vector<2x2xf32>
    %c0_9 = arith.constant 0 : index
    %c0_10 = arith.constant 0 : index
    %11 = vector.load %arg5[%c0_9, %c0_10] : memref<1x2xf32, #tpu.memory_space<vmem>>, vector<1x2xf32>
    %12 = vector.broadcast %11 : vector<1x2xf32> to vector<2x2xf32>
    %13 = arith.addf %10, %12 : vector<2x2xf32>
    %c0_11 = arith.constant 0 : index
    %c0_12 = arith.constant 0 : index
    %14 = vector.load %arg6[%c0_11, %c0_12] : memref<2x2xf32, #tpu.memory_space<vmem>>, vector<2x2xf32>
    tpu.vector_store %arg6[%c0_11, %c0_12], %13 {strides = array<i32>} : memref<2x2xf32, #tpu.memory_space<vmem>>, vector<2x2xf32>,
    return
  }
  func.func @transform_0(%arg0: i32) -> (i32, i32) {
    %c0_i32 = arith.constant 0 : i32
    %c0_i32_0 = arith.constant 0 : i32
    return %arg0, %c0_i32 : i32, i32
  }
  func.func @transform_1(%arg0: i32) -> (i32, i32) {
    %c0_i32 = arith.constant 0 : i32
    %c0_i32_0 = arith.constant 0 : i32
    %c0_i32_1 = arith.constant 0 : i32
    return %c0_i32, %c0_i32_0 : i32, i32
  }
  func.func @transform_2(%arg0: i32) -> (i32, i32) {
    %c0_i32 = arith.constant 0 : i32
    %c0_i32_0 = arith.constant 0 : i32
    %c0_i32_1 = arith.constant 0 : i32
    return %c0_i32, %c0_i32_0 : i32, i32
  }
  func.func @transform_3(%arg0: i32) -> (i32, i32) {
    %c0_i32 = arith.constant 0 : i32
    %c0_i32_0 = arith.constant 0 : i32
    %c0_i32_1 = arith.constant 0 : i32
    return %c0_i32, %c0_i32_0 : i32, i32
  }
  func.func @transform_4(%arg0: i32) -> (i32, i32) {
    %c0_i32 = arith.constant 0 : i32
    %c0_i32_0 = arith.constant 0 : i32
    %c0_i32_1 = arith.constant 0 : i32
    return %c0_i32, %c0_i32_0 : i32, i32
  }
  func.func @transform_5(%arg0: i32) -> (i32, i32) {
    %c0_i32 = arith.constant 0 : i32
    %c0_i32_0 = arith.constant 0 : i32
    return %arg0, %c0_i32 : i32, i32
  }
}

</mosaic_0001>

<llo_original>
// kernel: vgg_forward.3
$region0: #{vgg_forward.3}
  #allocation0 [shape = 'u32[]', space=smem, size = 0x4, offset = 0x4, fixed_abs, tag = 'smem constant byte address 0x4 - core index']
  #allocation1 [shape = 'u32[144,128]{1,0:T(1,128)}', space=vmem, size = 0x12000, scoped, tag = 'internal scratch']
  %s0 = inlined_call_operand.vmem [shape: bf16[2,3136], index: 0, kind: input, shape index: {}]
  %s1 = inlined_call_operand.vmem [shape: bf16[3136,64], index: 1, kind: input, shape index: {}]
  %s2 = inlined_call_operand.vmem [shape: f32[1,64], index: 2, kind: input, shape index: {}]
  %s3 = inlined_call_operand.vmem [shape: bf16[64,2], index: 3, kind: input, shape index: {}]
  %s4 = inlined_call_operand.vmem [shape: f32[1,2], index: 4, kind: input, shape index: {}]
  %s5 = inlined_call_operand.hbm [shape: f32[2,2], index: 5, kind: output, shape index: {}]
  %s6 = sld [smem:[#allocation0]]
  $region30: #{vgg_forward.3} parent=0
    _
  %s8 = ssub.s32 1, %s6
  %s9 = scalar_select 0, %s8, %s6
  $region1: #{vgg_forward.3} parent=0
    #allocation2 [shape = 'u8[1024]{0}', space=vmem, size = 0x400, scoped, tag = 'output window, operand 0, single buffered']
    #allocation3 [shape = 's32[1]{0}', space=sflag, size = 0x4, scoped, tag = 'scoped memory for vgg_forward.3']
    %10 = vsyncpa [#allocation3], 0
    // Predicated region
    $region2: #{vgg_forward.3} parent=1 // pred_check
      _
    $region3: #{vgg_forward.3} parent=1 // pred_check_branch
      %12 = sbr.rel (0) target = $region5
    $region4: #{vgg_forward.3} parent=1 // pred_region
      _
    $region5: #{vgg_forward.3} parent=1 // pred_fallthru
      _
    // Predicated region
    $region6: #{vgg_forward.3} parent=1 // pred_check
      _
    $region7: #{vgg_forward.3} parent=1 // pred_check_branch
      %14 = sbr.rel (0) target = $region9
    $region8: #{vgg_forward.3} parent=1 // pred_region
      _
    $region9: #{vgg_forward.3} parent=1 // pred_fallthru
      _
    // Predicated region
    $region10: #{vgg_forward.3} parent=1 // pred_check
      _
    $region11: #{vgg_forward.3} parent=1 // pred_check_branch
      %16 = sbr.rel (0) target = $region13
    $region12: #{vgg_forward.3} parent=1 // pred_region
      _
    $region13: #{vgg_forward.3} parent=1 // pred_fallthru
      _
    // Predicated region
    $region14: #{vgg_forward.3} parent=1 // pred_check
      _
    $region15: #{vgg_forward.3} parent=1 // pred_check_branch
      %18 = sbr.rel (0) target = $region17
    $region16: #{vgg_forward.3} parent=1 // pred_region
      _
    $region17: #{vgg_forward.3} parent=1 // pred_fallthru
      _
    // Predicated region
    $region18: #{vgg_forward.3} parent=1 // pred_check
      _
    $region19: #{vgg_forward.3} parent=1 // pred_check_branch
      %20 = sbr.rel (0) target = $region21
    $region20: #{vgg_forward.3} parent=1 // pred_region
      _
    $region21: #{vgg_forward.3} parent=1 // pred_fallthru
      _
    %v22 = vld [vmem:[%s0] sm:$0xff]
    %v23 = vld [vmem:[%s0 + $0x8] sm:$0xff]
    %v24 = vld [vmem:[%s0 + $0x10] sm:$0xff]
    %v25 = vld [vmem:[%s0 + $0x18] sm:$0x1]
    %v26 = vld [vmem:[%s1] sm:$0xf]
    %v27 = vld [vmem:[%s1 + $0x4] sm:$0xf]
    %v28 = vld [vmem:[%s1 + $0x8] sm:$0xf]
    %v29 = vld [vmem:[%s1 + $0xc] sm:$0xf]
    %v30 = vld [vmem:[%s1 + $0x10] sm:$0xf]
    %v31 = vld [vmem:[%s1 + $0x14] sm:$0xf]
    %v32 = vld [vmem:[%s1 + $0x18] sm:$0xf]
    %v33 = vld [vmem:[%s1 + $0x1c] sm:$0xf]
    %v34 = vld [vmem:[%s1 + $0x20] sm:$0xf]
    %v35 = vld [vmem:[%s1 + $0x24] sm:$0xf]
    %v36 = vld [vmem:[%s1 + $0x28] sm:$0xf]
    %v37 = vld [vmem:[%s1 + $0x2c] sm:$0xf]
    %v38 = vld [vmem:[%s1 + $0x30] sm:$0xf]
    %v39 = vld [vmem:[%s1 + $0x34] sm:$0xf]
    %v40 = vld [vmem:[%s1 + $0x38] sm:$0xf]
    %v41 = vld [vmem:[%s1 + $0x3c] sm:$0xf]
    %v42 = vld [vmem:[%s1 + $0x40] sm:$0xf]
    %v43 = vld [vmem:[%s1 + $0x44] sm:$0xf]
    %v44 = vld [vmem:[%s1 + $0x48] sm:$0xf]
    %v45 = vld [vmem:[%s1 + $0x4c] sm:$0xf]
    %v46 = vld [vmem:[%s1 + $0x50] sm:$0xf]
    %v47 = vld [vmem:[%s1 + $0x54] sm:$0xf]
    %v48 = vld [vmem:[%s1 + $0x58] sm:$0xf]
    %v49 = vld [vmem:[%s1 + $0x5c] sm:$0xf]
    %v50 = vld [vmem:[%s1 + $0x60] sm:$0xf]
    %v51 = vld [vmem:[%s1 + $0x64] sm:$0xf]
    %v52 = vld [vmem:[%s1 + $0x68] sm:$0xf]
    %v53 = vld [vmem:[%s1 + $0x6c] sm:$0xf]
    %v54 = vld [vmem:[%s1 + $0x70] sm:$0xf]
    %v55 = vld [vmem:[%s1 + $0x74] sm:$0xf]
    %v56 = vld [vmem:[%s1 + $0x78] sm:$0xf]
    %v57 = vld [vmem:[%s1 + $0x7c] sm:$0xf]
    %v58 = vld [vmem:[%s1 + $0x80] sm:$0xf]
    %v59 = vld [vmem:[%s1 + $0x84] sm:$0xf]
    %v60 = vld [vmem:[%s1 + $0x88] sm:$0xf]
    %v61 = vld [vmem:[%s1 + $0x8c] sm:$0xf]
    %v62 = vld [vmem:[%s1 + $0x90] sm:$0xf]
    %v63 = vld [vmem:[%s1 + $0x94] sm:$0xf]
    %v64 = vld [vmem:[%s1 + $0x98] sm:$0xf]
    %v65 = vld [vmem:[%s1 + $0x9c] sm:$0xf]
    %v66 = vld [vmem:[%s1 + $0xa0] sm:$0xf]
    %v67 = vld [vmem:[%s1 + $0xa4] sm:$0xf]
    %v68 = vld [vmem:[%s1 + $0xa8] sm:$0xf]
    %v69 = vld [vmem:[%s1 + $0xac] sm:$0xf]
    %v70 = vld [vmem:[%s1 + $0xb0] sm:$0xf]
    %v71 = vld [vmem:[%s1 + $0xb4] sm:$0xf]
    %v72 = vld [vmem:[%s1 + $0xb8] sm:$0xf]
    %v73 = vld [vmem:[%s1 + $0xbc] sm:$0xf]
    %v74 = vld [vmem:[%s1 + $0xc0] sm:$0xf]
    %v75 = vld [vmem:[%s1 + $0xc4] sm:$0xf]
    %v76 = vld [vmem:[%s1 + $0xc8] sm:$0xf]
    %v77 = vld [vmem:[%s1 + $0xcc] sm:$0xf]
    %v78 = vld [vmem:[%s1 + $0xd0] sm:$0xf]
    %v79 = vld [vmem:[%s1 + $0xd4] sm:$0xf]
    %v80 = vld [vmem:[%s1 + $0xd8] sm:$0xf]
    %v81 = vld [vmem:[%s1 + $0xdc] sm:$0xf]
    %v82 = vld [vmem:[%s1 + $0xe0] sm:$0xf]
    %v83 = vld [vmem:[%s1 + $0xe4] sm:$0xf]
    %v84 = vld [vmem:[%s1 + $0xe8] sm:$0xf]
    %v85 = vld [vmem:[%s1 + $0xec] sm:$0xf]
    %v86 = vld [vmem:[%s1 + $0xf0] sm:$0xf]
    %v87 = vld [vmem:[%s1 + $0xf4] sm:$0xf]
    %v88 = vld [vmem:[%s1 + $0xf8] sm:$0xf]
    %v89 = vld [vmem:[%s1 + $0xfc] sm:$0xf]
    %v90 = vld [vmem:[%s1 + $0x100] sm:$0xf]
    %v91 = vld [vmem:[%s1 + $0x104] sm:$0xf]
    %v92 = vld [vmem:[%s1 + $0x108] sm:$0xf]
    %v93 = vld [vmem:[%s1 + $0x10c] sm:$0xf]
    %v94 = vld [vmem:[%s1 + $0x110] sm:$0xf]
    %v95 = vld [vmem:[%s1 + $0x114] sm:$0xf]
    %v96 = vld [vmem:[%s1 + $0x118] sm:$0xf]
    %v97 = vld [vmem:[%s1 + $0x11c] sm:$0xf]
    %v98 = vld [vmem:[%s1 + $0x120] sm:$0xf]
    %v99 = vld [vmem:[%s1 + $0x124] sm:$0xf]
    %v100 = vld [vmem:[%s1 + $0x128] sm:$0xf]
    %v101 = vld [vmem:[%s1 + $0x12c] sm:$0xf]
    %v102 = vld [vmem:[%s1 + $0x130] sm:$0xf]
    %v103 = vld [vmem:[%s1 + $0x134] sm:$0xf]
    %v104 = vld [vmem:[%s1 + $0x138] sm:$0xf]
    %v105 = vld [vmem:[%s1 + $0x13c] sm:$0xf]
    %v106 = vld [vmem:[%s1 + $0x140] sm:$0xf]
    %v107 = vld [vmem:[%s1 + $0x144] sm:$0xf]
    %v108 = vld [vmem:[%s1 + $0x148] sm:$0xf]
    %v109 = vld [vmem:[%s1 + $0x14c] sm:$0xf]
    %v110 = vld [vmem:[%s1 + $0x150] sm:$0xf]
    %v111 = vld [vmem:[%s1 + $0x154] sm:$0xf]
    %v112 = vld [vmem:[%s1 + $0x158] sm:$0xf]
    %v113 = vld [vmem:[%s1 + $0x15c] sm:$0xf]
    %v114 = vld [vmem:[%s1 + $0x160] sm:$0xf]
    %v115 = vld [vmem:[%s1 + $0x164] sm:$0xf]
    %v116 = vld [vmem:[%s1 + $0x168] sm:$0xf]
    %v117 = vld [vmem:[%s1 + $0x16c] sm:$0xf]
    %v118 = vld [vmem:[%s1 + $0x170] sm:$0xf]
    %v119 = vld [vmem:[%s1 + $0x174] sm:$0xf]
    %v120 = vld [vmem:[%s1 + $0x178] sm:$0xf]
    %v121 = vld [vmem:[%s1 + $0x17c] sm:$0xf]
    %v122 = vld [vmem:[%s1 + $0x180] sm:$0xf]
    %v123 = vld [vmem:[%s1 + $0x184] sm:$0xf]
    %v124 = vld [vmem:[%s1 + $0x188] sm:$0xf]
    %v125 = vld [vmem:[%s1 + $0x18c] sm:$0xf]
    %v126 = vld [vmem:[%s1 + $0x190] sm:$0xf]
    %v127 = vld [vmem:[%s1 + $0x194] sm:$0xf]
    %v128 = vld [vmem:[%s1 + $0x198] sm:$0xf]
    %v129 = vld [vmem:[%s1 + $0x19c] sm:$0xf]
    %v130 = vld [vmem:[%s1 + $0x1a0] sm:$0xf]
    %v131 = vld [vmem:[%s1 + $0x1a4] sm:$0xf]
    %v132 = vld [vmem:[%s1 + $0x1a8] sm:$0xf]
    %v133 = vld [vmem:[%s1 + $0x1ac] sm:$0xf]
    %v134 = vld [vmem:[%s1 + $0x1b0] sm:$0xf]
    %v135 = vld [vmem:[%s1 + $0x1b4] sm:$0xf]
    %v136 = vld [vmem:[%s1 + $0x1b8] sm:$0xf]
    %v137 = vld [vmem:[%s1 + $0x1bc] sm:$0xf]
    %v138 = vld [vmem:[%s1 + $0x1c0] sm:$0xf]
    %v139 = vld [vmem:[%s1 + $0x1c4] sm:$0xf]
    %v140 = vld [vmem:[%s1 + $0x1c8] sm:$0xf]
    %v141 = vld [vmem:[%s1 + $0x1cc] sm:$0xf]
    %v142 = vld [vmem:[%s1 + $0x1d0] sm:$0xf]
    %v143 = vld [vmem:[%s1 + $0x1d4] sm:$0xf]
    %v144 = vld [vmem:[%s1 + $0x1d8] sm:$0xf]
    %v145 = vld [vmem:[%s1 + $0x1dc] sm:$0xf]
    %v146 = vld [vmem:[%s1 + $0x1e0] sm:$0xf]
    %v147 = vld [vmem:[%s1 + $0x1e4] sm:$0xf]
    %v148 = vld [vmem:[%s1 + $0x1e8] sm:$0xf]
    %v149 = vld [vmem:[%s1 + $0x1ec] sm:$0xf]
    %v150 = vld [vmem:[%s1 + $0x1f0] sm:$0xf]
    %v151 = vld [vmem:[%s1 + $0x1f4] sm:$0xf]
    %v152 = vld [vmem:[%s1 + $0x1f8] sm:$0xf]
    %v153 = vld [vmem:[%s1 + $0x1fc] sm:$0xf]
    %v154 = vld [vmem:[%s1 + $0x200] sm:$0xf]
    %v155 = vld [vmem:[%s1 + $0x204] sm:$0xf]
    %v156 = vld [vmem:[%s1 + $0x208] sm:$0xf]
    %v157 = vld [vmem:[%s1 + $0x20c] sm:$0xf]
    %v158 = vld [vmem:[%s1 + $0x210] sm:$0xf]
    %v159 = vld [vmem:[%s1 + $0x214] sm:$0xf]
    %v160 = vld [vmem:[%s1 + $0x218] sm:$0xf]
    %v161 = vld [vmem:[%s1 + $0x21c] sm:$0xf]
    %v162 = vld [vmem:[%s1 + $0x220] sm:$0xf]
    %v163 = vld [vmem:[%s1 + $0x224] sm:$0xf]
    %v164 = vld [vmem:[%s1 + $0x228] sm:$0xf]
    %v165 = vld [vmem:[%s1 + $0x22c] sm:$0xf]
    %v166 = vld [vmem:[%s1 + $0x230] sm:$0xf]
    %v167 = vld [vmem:[%s1 + $0x234] sm:$0xf]
    %v168 = vld [vmem:[%s1 + $0x238] sm:$0xf]
    %v169 = vld [vmem:[%s1 + $0x23c] sm:$0xf]
    %v170 = vld [vmem:[%s1 + $0x240] sm:$0xf]
    %v171 = vld [vmem:[%s1 + $0x244] sm:$0xf]
    %v172 = vld [vmem:[%s1 + $0x248] sm:$0xf]
    %v173 = vld [vmem:[%s1 + $0x24c] sm:$0xf]
    %v174 = vld [vmem:[%s1 + $0x250] sm:$0xf]
    %v175 = vld [vmem:[%s1 + $0x254] sm:$0xf]
    %v176 = vld [vmem:[%s1 + $0x258] sm:$0xf]
    %v177 = vld [vmem:[%s1 + $0x25c] sm:$0xf]
    %v178 = vld [vmem:[%s1 + $0x260] sm:$0xf]
    %v179 = vld [vmem:[%s1 + $0x264] sm:$0xf]
    %v180 = vld [vmem:[%s1 + $0x268] sm:$0xf]
    %v181 = vld [vmem:[%s1 + $0x26c] sm:$0xf]
    %v182 = vld [vmem:[%s1 + $0x270] sm:$0xf]
    %v183 = vld [vmem:[%s1 + $0x274] sm:$0xf]
    %v184 = vld [vmem:[%s1 + $0x278] sm:$0xf]
    %v185 = vld [vmem:[%s1 + $0x27c] sm:$0xf]
    %v186 = vld [vmem:[%s1 + $0x280] sm:$0xf]
    %v187 = vld [vmem:[%s1 + $0x284] sm:$0xf]
    %v188 = vld [vmem:[%s1 + $0x288] sm:$0xf]
    %v189 = vld [vmem:[%s1 + $0x28c] sm:$0xf]
    %v190 = vld [vmem:[%s1 + $0x290] sm:$0xf]
    %v191 = vld [vmem:[%s1 + $0x294] sm:$0xf]
    %v192 = vld [vmem:[%s1 + $0x298] sm:$0xf]
    %v193 = vld [vmem:[%s1 + $0x29c] sm:$0xf]
    %v194 = vld [vmem:[%s1 + $0x2a0] sm:$0xf]
    %v195 = vld [vmem:[%s1 + $0x2a4] sm:$0xf]
    %v196 = vld [vmem:[%s1 + $0x2a8] sm:$0xf]
    %v197 = vld [vmem:[%s1 + $0x2ac] sm:$0xf]
    %v198 = vld [vmem:[%s1 + $0x2b0] sm:$0xf]
    %v199 = vld [vmem:[%s1 + $0x2b4] sm:$0xf]
    %v200 = vld [vmem:[%s1 + $0x2b8] sm:$0xf]
    %v201 = vld [vmem:[%s1 + $0x2bc] sm:$0xf]
    %v202 = vld [vmem:[%s1 + $0x2c0] sm:$0xf]
    %v203 = vld [vmem:[%s1 + $0x2c4] sm:$0xf]
    %v204 = vld [vmem:[%s1 + $0x2c8] sm:$0xf]
    %v205 = vld [vmem:[%s1 + $0x2cc] sm:$0xf]
    %v206 = vld [vmem:[%s1 + $0x2d0] sm:$0xf]
    %v207 = vld [vmem:[%s1 + $0x2d4] sm:$0xf]
    %v208 = vld [vmem:[%s1 + $0x2d8] sm:$0xf]
    %v209 = vld [vmem:[%s1 + $0x2dc] sm:$0xf]
    %v210 = vld [vmem:[%s1 + $0x2e0] sm:$0xf]
    %v211 = vld [vmem:[%s1 + $0x2e4] sm:$0xf]
    %v212 = vld [vmem:[%s1 + $0x2e8] sm:$0xf]
    %v213 = vld [vmem:[%s1 + $0x2ec] sm:$0xf]
    %v214 = vld [vmem:[%s1 + $0x2f0] sm:$0xf]
    %v215 = vld [vmem:[%s1 + $0x2f4] sm:$0xf]
    %v216 = vld [vmem:[%s1 + $0x2f8] sm:$0xf]
    %v217 = vld [vmem:[%s1 + $0x2fc] sm:$0xf]
    %v218 = vld [vmem:[%s1 + $0x300] sm:$0xf]
    %v219 = vld [vmem:[%s1 + $0x304] sm:$0xf]
    %v220 = vld [vmem:[%s1 + $0x308] sm:$0xf]
    %v221 = vld [vmem:[%s1 + $0x30c] sm:$0xf]
    %v222 = vld [vmem:[%s1 + $0x310] sm:$0xf]
    %v223 = vld [vmem:[%s1 + $0x314] sm:$0xf]
    %v224 = vld [vmem:[%s1 + $0x318] sm:$0xf]
    %v225 = vld [vmem:[%s1 + $0x31c] sm:$0xf]
    %v226 = vld [vmem:[%s1 + $0x320] sm:$0xf]
    %v227 = vld [vmem:[%s1 + $0x324] sm:$0xf]
    %v228 = vld [vmem:[%s1 + $0x328] sm:$0xf]
    %v229 = vld [vmem:[%s1 + $0x32c] sm:$0xf]
    %v230 = vld [vmem:[%s1 + $0x330] sm:$0xf]
    %v231 = vld [vmem:[%s1 + $0x334] sm:$0xf]
    %v232 = vld [vmem:[%s1 + $0x338] sm:$0xf]
    %v233 = vld [vmem:[%s1 + $0x33c] sm:$0xf]
    %v234 = vld [vmem:[%s1 + $0x340] sm:$0xf]
    %v235 = vld [vmem:[%s1 + $0x344] sm:$0xf]
    %v236 = vld [vmem:[%s1 + $0x348] sm:$0xf]
    %v237 = vld [vmem:[%s1 + $0x34c] sm:$0xf]
    %v238 = vld [vmem:[%s1 + $0x350] sm:$0xf]
    %v239 = vld [vmem:[%s1 + $0x354] sm:$0xf]
    %v240 = vld [vmem:[%s1 + $0x358] sm:$0xf]
    %v241 = vld [vmem:[%s1 + $0x35c] sm:$0xf]
    %v242 = vld [vmem:[%s1 + $0x360] sm:$0xf]
    %v243 = vld [vmem:[%s1 + $0x364] sm:$0xf]
    %v244 = vld [vmem:[%s1 + $0x368] sm:$0xf]
    %v245 = vld [vmem:[%s1 + $0x36c] sm:$0xf]
    %v246 = vld [vmem:[%s1 + $0x370] sm:$0xf]
    %v247 = vld [vmem:[%s1 + $0x374] sm:$0xf]
    %v248 = vld [vmem:[%s1 + $0x378] sm:$0xf]
    %v249 = vld [vmem:[%s1 + $0x37c] sm:$0xf]
    %v250 = vld [vmem:[%s1 + $0x380] sm:$0xf]
    %v251 = vld [vmem:[%s1 + $0x384] sm:$0xf]
    %v252 = vld [vmem:[%s1 + $0x388] sm:$0xf]
    %v253 = vld [vmem:[%s1 + $0x38c] sm:$0xf]
    %v254 = vld [vmem:[%s1 + $0x390] sm:$0xf]
    %v255 = vld [vmem:[%s1 + $0x394] sm:$0xf]
    %v256 = vld [vmem:[%s1 + $0x398] sm:$0xf]
    %v257 = vld [vmem:[%s1 + $0x39c] sm:$0xf]
    %v258 = vld [vmem:[%s1 + $0x3a0] sm:$0xf]
    %v259 = vld [vmem:[%s1 + $0x3a4] sm:$0xf]
    %v260 = vld [vmem:[%s1 + $0x3a8] sm:$0xf]
    %v261 = vld [vmem:[%s1 + $0x3ac] sm:$0xf]
    %v262 = vld [vmem:[%s1 + $0x3b0] sm:$0xf]
    %v263 = vld [vmem:[%s1 + $0x3b4] sm:$0xf]
    %v264 = vld [vmem:[%s1 + $0x3b8] sm:$0xf]
    %v265 = vld [vmem:[%s1 + $0x3bc] sm:$0xf]
    %v266 = vld [vmem:[%s1 + $0x3c0] sm:$0xf]
    %v267 = vld [vmem:[%s1 + $0x3c4] sm:$0xf]
    %v268 = vld [vmem:[%s1 + $0x3c8] sm:$0xf]
    %v269 = vld [vmem:[%s1 + $0x3cc] sm:$0xf]
    %v270 = vld [vmem:[%s1 + $0x3d0] sm:$0xf]
    %v271 = vld [vmem:[%s1 + $0x3d4] sm:$0xf]
    %v272 = vld [vmem:[%s1 + $0x3d8] sm:$0xf]
    %v273 = vld [vmem:[%s1 + $0x3dc] sm:$0xf]
    %v274 = vld [vmem:[%s1 + $0x3e0] sm:$0xf]
    %v275 = vld [vmem:[%s1 + $0x3e4] sm:$0xf]
    %v276 = vld [vmem:[%s1 + $0x3e8] sm:$0xf]
    %v277 = vld [vmem:[%s1 + $0x3ec] sm:$0xf]
    %v278 = vld [vmem:[%s1 + $0x3f0] sm:$0xf]
    %v279 = vld [vmem:[%s1 + $0x3f4] sm:$0xf]
    %v280 = vld [vmem:[%s1 + $0x3f8] sm:$0xf]
    %v281 = vld [vmem:[%s1 + $0x3fc] sm:$0xf]
    %v282 = vld [vmem:[%s1 + $0x400] sm:$0xf]
    %v283 = vld [vmem:[%s1 + $0x404] sm:$0xf]
    %v284 = vld [vmem:[%s1 + $0x408] sm:$0xf]
    %v285 = vld [vmem:[%s1 + $0x40c] sm:$0xf]
    %v286 = vld [vmem:[%s1 + $0x410] sm:$0xf]
    %v287 = vld [vmem:[%s1 + $0x414] sm:$0xf]
    %v288 = vld [vmem:[%s1 + $0x418] sm:$0xf]
    %v289 = vld [vmem:[%s1 + $0x41c] sm:$0xf]
    %v290 = vld [vmem:[%s1 + $0x420] sm:$0xf]
    %v291 = vld [vmem:[%s1 + $0x424] sm:$0xf]
    %v292 = vld [vmem:[%s1 + $0x428] sm:$0xf]
    %v293 = vld [vmem:[%s1 + $0x42c] sm:$0xf]
    %v294 = vld [vmem:[%s1 + $0x430] sm:$0xf]
    %v295 = vld [vmem:[%s1 + $0x434] sm:$0xf]
    %v296 = vld [vmem:[%s1 + $0x438] sm:$0xf]
    %v297 = vld [vmem:[%s1 + $0x43c] sm:$0xf]
    %v298 = vld [vmem:[%s1 + $0x440] sm:$0xf]
    %v299 = vld [vmem:[%s1 + $0x444] sm:$0xf]
    %v300 = vld [vmem:[%s1 + $0x448] sm:$0xf]
    %v301 = vld [vmem:[%s1 + $0x44c] sm:$0xf]
    %v302 = vld [vmem:[%s1 + $0x450] sm:$0xf]
    %v303 = vld [vmem:[%s1 + $0x454] sm:$0xf]
    %v304 = vld [vmem:[%s1 + $0x458] sm:$0xf]
    %v305 = vld [vmem:[%s1 + $0x45c] sm:$0xf]
    %v306 = vld [vmem:[%s1 + $0x460] sm:$0xf]
    %v307 = vld [vmem:[%s1 + $0x464] sm:$0xf]
    %v308 = vld [vmem:[%s1 + $0x468] sm:$0xf]
    %v309 = vld [vmem:[%s1 + $0x46c] sm:$0xf]
    %v310 = vld [vmem:[%s1 + $0x470] sm:$0xf]
    %v311 = vld [vmem:[%s1 + $0x474] sm:$0xf]
    %v312 = vld [vmem:[%s1 + $0x478] sm:$0xf]
    %v313 = vld [vmem:[%s1 + $0x47c] sm:$0xf]
    %v314 = vld [vmem:[%s1 + $0x480] sm:$0xf]
    %v315 = vld [vmem:[%s1 + $0x484] sm:$0xf]
    %v316 = vld [vmem:[%s1 + $0x488] sm:$0xf]
    %v317 = vld [vmem:[%s1 + $0x48c] sm:$0xf]
    %v318 = vld [vmem:[%s1 + $0x490] sm:$0xf]
    %v319 = vld [vmem:[%s1 + $0x494] sm:$0xf]
    %v320 = vld [vmem:[%s1 + $0x498] sm:$0xf]
    %v321 = vld [vmem:[%s1 + $0x49c] sm:$0xf]
    %v322 = vld [vmem:[%s1 + $0x4a0] sm:$0xf]
    %v323 = vld [vmem:[%s1 + $0x4a4] sm:$0xf]
    %v324 = vld [vmem:[%s1 + $0x4a8] sm:$0xf]
    %v325 = vld [vmem:[%s1 + $0x4ac] sm:$0xf]
    %v326 = vld [vmem:[%s1 + $0x4b0] sm:$0xf]
    %v327 = vld [vmem:[%s1 + $0x4b4] sm:$0xf]
    %v328 = vld [vmem:[%s1 + $0x4b8] sm:$0xf]
    %v329 = vld [vmem:[%s1 + $0x4bc] sm:$0xf]
    %v330 = vld [vmem:[%s1 + $0x4c0] sm:$0xf]
    %v331 = vld [vmem:[%s1 + $0x4c4] sm:$0xf]
    %v332 = vld [vmem:[%s1 + $0x4c8] sm:$0xf]
    %v333 = vld [vmem:[%s1 + $0x4cc] sm:$0xf]
    %v334 = vld [vmem:[%s1 + $0x4d0] sm:$0xf]
    %v335 = vld [vmem:[%s1 + $0x4d4] sm:$0xf]
    %v336 = vld [vmem:[%s1 + $0x4d8] sm:$0xf]
    %v337 = vld [vmem:[%s1 + $0x4dc] sm:$0xf]
    %v338 = vld [vmem:[%s1 + $0x4e0] sm:$0xf]
    %v339 = vld [vmem:[%s1 + $0x4e4] sm:$0xf]
    %v340 = vld [vmem:[%s1 + $0x4e8] sm:$0xf]
    %v341 = vld [vmem:[%s1 + $0x4ec] sm:$0xf]
    %v342 = vld [vmem:[%s1 + $0x4f0] sm:$0xf]
    %v343 = vld [vmem:[%s1 + $0x4f4] sm:$0xf]
    %v344 = vld [vmem:[%s1 + $0x4f8] sm:$0xf]
    %v345 = vld [vmem:[%s1 + $0x4fc] sm:$0xf]
    %v346 = vld [vmem:[%s1 + $0x500] sm:$0xf]
    %v347 = vld [vmem:[%s1 + $0x504] sm:$0xf]
    %v348 = vld [vmem:[%s1 + $0x508] sm:$0xf]
    %v349 = vld [vmem:[%s1 + $0x50c] sm:$0xf]
    %v350 = vld [vmem:[%s1 + $0x510] sm:$0xf]
    %v351 = vld [vmem:[%s1 + $0x514] sm:$0xf]
    %v352 = vld [vmem:[%s1 + $0x518] sm:$0xf]
    %v353 = vld [vmem:[%s1 + $0x51c] sm:$0xf]
    %v354 = vld [vmem:[%s1 + $0x520] sm:$0xf]
    %v355 = vld [vmem:[%s1 + $0x524] sm:$0xf]
    %v356 = vld [vmem:[%s1 + $0x528] sm:$0xf]
    %v357 = vld [vmem:[%s1 + $0x52c] sm:$0xf]
    %v358 = vld [vmem:[%s1 + $0x530] sm:$0xf]
    %v359 = vld [vmem:[%s1 + $0x534] sm:$0xf]
    %v360 = vld [vmem:[%s1 + $0x538] sm:$0xf]
    %v361 = vld [vmem:[%s1 + $0x53c] sm:$0xf]
    %v362 = vld [vmem:[%s1 + $0x540] sm:$0xf]
    %v363 = vld [vmem:[%s1 + $0x544] sm:$0xf]
    %v364 = vld [vmem:[%s1 + $0x548] sm:$0xf]
    %v365 = vld [vmem:[%s1 + $0x54c] sm:$0xf]
    %v366 = vld [vmem:[%s1 + $0x550] sm:$0xf]
    %v367 = vld [vmem:[%s1 + $0x554] sm:$0xf]
    %v368 = vld [vmem:[%s1 + $0x558] sm:$0xf]
    %v369 = vld [vmem:[%s1 + $0x55c] sm:$0xf]
    %v370 = vld [vmem:[%s1 + $0x560] sm:$0xf]
    %v371 = vld [vmem:[%s1 + $0x564] sm:$0xf]
    %v372 = vld [vmem:[%s1 + $0x568] sm:$0xf]
    %v373 = vld [vmem:[%s1 + $0x56c] sm:$0xf]
    %v374 = vld [vmem:[%s1 + $0x570] sm:$0xf]
    %v375 = vld [vmem:[%s1 + $0x574] sm:$0xf]
    %v376 = vld [vmem:[%s1 + $0x578] sm:$0xf]
    %v377 = vld [vmem:[%s1 + $0x57c] sm:$0xf]
    %v378 = vld [vmem:[%s1 + $0x580] sm:$0xf]
    %v379 = vld [vmem:[%s1 + $0x584] sm:$0xf]
    %v380 = vld [vmem:[%s1 + $0x588] sm:$0xf]
    %v381 = vld [vmem:[%s1 + $0x58c] sm:$0xf]
    %v382 = vld [vmem:[%s1 + $0x590] sm:$0xf]
    %v383 = vld [vmem:[%s1 + $0x594] sm:$0xf]
    %v384 = vld [vmem:[%s1 + $0x598] sm:$0xf]
    %v385 = vld [vmem:[%s1 + $0x59c] sm:$0xf]
    %v386 = vld [vmem:[%s1 + $0x5a0] sm:$0xf]
    %v387 = vld [vmem:[%s1 + $0x5a4] sm:$0xf]
    %v388 = vld [vmem:[%s1 + $0x5a8] sm:$0xf]
    %v389 = vld [vmem:[%s1 + $0x5ac] sm:$0xf]
    %v390 = vld [vmem:[%s1 + $0x5b0] sm:$0xf]
    %v391 = vld [vmem:[%s1 + $0x5b4] sm:$0xf]
    %v392 = vld [vmem:[%s1 + $0x5b8] sm:$0xf]
    %v393 = vld [vmem:[%s1 + $0x5bc] sm:$0xf]
    %v394 = vld [vmem:[%s1 + $0x5c0] sm:$0xf]
    %v395 = vld [vmem:[%s1 + $0x5c4] sm:$0xf]
    %v396 = vld [vmem:[%s1 + $0x5c8] sm:$0xf]
    %v397 = vld [vmem:[%s1 + $0x5cc] sm:$0xf]
    %v398 = vld [vmem:[%s1 + $0x5d0] sm:$0xf]
    %v399 = vld [vmem:[%s1 + $0x5d4] sm:$0xf]
    %v400 = vld [vmem:[%s1 + $0x5d8] sm:$0xf]
    %v401 = vld [vmem:[%s1 + $0x5dc] sm:$0xf]
    %v402 = vld [vmem:[%s1 + $0x5e0] sm:$0xf]
    %v403 = vld [vmem:[%s1 + $0x5e4] sm:$0xf]
    %v404 = vld [vmem:[%s1 + $0x5e8] sm:$0xf]
    %v405 = vld [vmem:[%s1 + $0x5ec] sm:$0xf]
    %v406 = vld [vmem:[%s1 + $0x5f0] sm:$0xf]
    %v407 = vld [vmem:[%s1 + $0x5f4] sm:$0xf]
    %v408 = vld [vmem:[%s1 + $0x5f8] sm:$0xf]
    %v409 = vld [vmem:[%s1 + $0x5fc] sm:$0xf]
    %v410 = vld [vmem:[%s1 + $0x600] sm:$0xf]
    %v411 = vld [vmem:[%s1 + $0x604] sm:$0xf]
    %v412 = vld [vmem:[%s1 + $0x608] sm:$0xf]
    %v413 = vld [vmem:[%s1 + $0x60c] sm:$0xf]
    %v414 = vld [vmem:[%s1 + $0x610] sm:$0xf]
    %v415 = vld [vmem:[%s1 + $0x614] sm:$0xf]
    %v416 = vld [vmem:[%s1 + $0x618] sm:$0xf]
    %v417 = vld [vmem:[%s1 + $0x61c] sm:$0xf]
    %v418 = vld [vmem:[%s2] sm:$0x1]
    %v420 = vlaneseq
    %v421 = vshrl.u32 %v420, 7
    %v422 = vsub.s32 0, %v421
    %v423 = vrot.slane %v418, %v422
    %v429 = vcombine.high %v22, %v22
    %v431 = vunpack.c.l.s4 1966171168
    %v432 = vunpack.c.0.s8 %v431
    %v433 = vlaneseq
    %v434 = vshrl.u32 %v433, 7
    %v435 = vsub.s32 %v432, %v434
    %v436 = vrot.slane %v22, %v435
    %v438 = vunpack.c.l.s4 1966171168
    %v439 = vunpack.c.0.s8 %v438
    %v440 = vlaneseq
    %v441 = vshrl.u32 %v440, 7
    %v442 = vsub.s32 %v439, %v441
    %v443 = vrot.slane %v429, %v442
    %v444 = vcombine.high %v436, %v436
    %v445 = vcombine.high %v443, %v443
    %v447 = vunpack.c.l.s4 1966171168
    %v448 = vunpack.c.0.s8 %v447
    %v449 = vlaneseq
    %v450 = vshrl.u32 %v449, 7
    %v451 = vsub.s32 %v448, %v450
    %v452 = vrot.slane %v436, %v451
    %v454 = vunpack.c.l.s4 1966171168
    %v455 = vunpack.c.0.s8 %v454
    %v456 = vlaneseq
    %v457 = vshrl.u32 %v456, 7
    %v458 = vsub.s32 %v455, %v457
    %v459 = vrot.slane %v443, %v458
    %v461 = vunpack.c.l.s4 1966171168
    %v462 = vunpack.c.0.s8 %v461
    %v463 = vlaneseq
    %v464 = vshrl.u32 %v463, 7
    %v465 = vsub.s32 %v462, %v464
    %v466 = vrot.slane %v444, %v465
    %v468 = vunpack.c.l.s4 1966171168
    %v469 = vunpack.c.0.s8 %v468
    %v470 = vlaneseq
    %v471 = vshrl.u32 %v470, 7
    %v472 = vsub.s32 %v469, %v471
    %v473 = vrot.slane %v445, %v472
    %v474 = vcombine.high %v452, %v452
    %v475 = vcombine.high %v459, %v459
    %v476 = vcombine.high %v466, %v466
    %v477 = vcombine.high %v473, %v473
    %v478 = vcombine.high %v23, %v23
    %v480 = vunpack.c.l.s4 1966171168
    %v481 = vunpack.c.0.s8 %v480
    %v482 = vlaneseq
    %v483 = vshrl.u32 %v482, 7
    %v484 = vsub.s32 %v481, %v483
    %v485 = vrot.slane %v23, %v484
    %v487 = vunpack.c.l.s4 1966171168
    %v488 = vunpack.c.0.s8 %v487
    %v489 = vlaneseq
    %v490 = vshrl.u32 %v489, 7
    %v491 = vsub.s32 %v488, %v490
    %v492 = vrot.slane %v478, %v491
    %v493 = vcombine.high %v485, %v485
    %v494 = vcombine.high %v492, %v492
    %v496 = vunpack.c.l.s4 1966171168
    %v497 = vunpack.c.0.s8 %v496
    %v498 = vlaneseq
    %v499 = vshrl.u32 %v498, 7
    %v500 = vsub.s32 %v497, %v499
    %v501 = vrot.slane %v485, %v500
    %v503 = vunpack.c.l.s4 1966171168
    %v504 = vunpack.c.0.s8 %v503
    %v505 = vlaneseq
    %v506 = vshrl.u32 %v505, 7
    %v507 = vsub.s32 %v504, %v506
    %v508 = vrot.slane %v492, %v507
    %v510 = vunpack.c.l.s4 1966171168
    %v511 = vunpack.c.0.s8 %v510
    %v512 = vlaneseq
    %v513 = vshrl.u32 %v512, 7
    %v514 = vsub.s32 %v511, %v513
    %v515 = vrot.slane %v493, %v514
    %v517 = vunpack.c.l.s4 1966171168
    %v518 = vunpack.c.0.s8 %v517
    %v519 = vlaneseq
    %v520 = vshrl.u32 %v519, 7
    %v521 = vsub.s32 %v518, %v520
    %v522 = vrot.slane %v494, %v521
    %v523 = vcombine.high %v501, %v501
    %v524 = vcombine.high %v508, %v508
    %v525 = vcombine.high %v515, %v515
    %v526 = vcombine.high %v522, %v522
    %v527 = vcombine.high %v24, %v24
    %v529 = vunpack.c.l.s4 1966171168
    %v530 = vunpack.c.0.s8 %v529
    %v531 = vlaneseq
    %v532 = vshrl.u32 %v531, 7
    %v533 = vsub.s32 %v530, %v532
    %v534 = vrot.slane %v24, %v533
    %v536 = vunpack.c.l.s4 1966171168
    %v537 = vunpack.c.0.s8 %v536
    %v538 = vlaneseq
    %v539 = vshrl.u32 %v538, 7
    %v540 = vsub.s32 %v537, %v539
    %v541 = vrot.slane %v527, %v540
    %v542 = vcombine.high %v534, %v534
    %v543 = vcombine.high %v541, %v541
    %v545 = vunpack.c.l.s4 1966171168
    %v546 = vunpack.c.0.s8 %v545
    %v547 = vlaneseq
    %v548 = vshrl.u32 %v547, 7
    %v549 = vsub.s32 %v546, %v548
    %v550 = vrot.slane %v534, %v549
    %v552 = vunpack.c.l.s4 1966171168
    %v553 = vunpack.c.0.s8 %v552
    %v554 = vlaneseq
    %v555 = vshrl.u32 %v554, 7
    %v556 = vsub.s32 %v553, %v555
    %v557 = vrot.slane %v541, %v556
    %v559 = vunpack.c.l.s4 1966171168
    %v560 = vunpack.c.0.s8 %v559
    %v561 = vlaneseq
    %v562 = vshrl.u32 %v561, 7
    %v563 = vsub.s32 %v560, %v562
    %v564 = vrot.slane %v542, %v563
    %v566 = vunpack.c.l.s4 1966171168
    %v567 = vunpack.c.0.s8 %v566
    %v568 = vlaneseq
    %v569 = vshrl.u32 %v568, 7
    %v570 = vsub.s32 %v567, %v569
    %v571 = vrot.slane %v543, %v570
    %v572 = vcombine.high %v550, %v550
    %v573 = vcombine.high %v557, %v557
    %v574 = vcombine.high %v564, %v564
    %v575 = vcombine.high %v571, %v571
    %v577 = vunpack.c.l.s4 1966171168
    %v578 = vunpack.c.0.s8 %v577
    %v579 = vlaneseq
    %v580 = vshrl.u32 %v579, 7
    %v581 = vsub.s32 %v578, %v580
    %v582 = vrot.slane %v25, %v581
    %v584 = vunpack.c.l.s4 1966171168
    %v585 = vunpack.c.0.s8 %v584
    %v586 = vlaneseq
    %v587 = vshrl.u32 %v586, 7
    %v588 = vsub.s32 %v585, %v587
    %v589 = vrot.slane %v582, %v588
    %v1006 = vunpack.c.l.b16 %v26
    %v1007 = vunpack.c.l.b16 %v27
    %v1008 = vunpack.c.l.b16 %v28
    %v1009 = vunpack.c.l.b16 %v29
    %v1010 = vunpack.c.l.b16 %v30
    %v1011 = vunpack.c.l.b16 %v31
    %v1012 = vunpack.c.l.b16 %v32
    %v1013 = vunpack.c.l.b16 %v33
    %v1014 = vunpack.c.l.b16 %v34
    %v1015 = vunpack.c.l.b16 %v35
    %v1016 = vunpack.c.l.b16 %v36
    %v1017 = vunpack.c.l.b16 %v37
    %v1018 = vunpack.c.l.b16 %v38
    %v1019 = vunpack.c.l.b16 %v39
    %v1020 = vunpack.c.l.b16 %v40
    %v1021 = vunpack.c.l.b16 %v41
    %v1022 = vunpack.c.l.b16 %v42
    %v1023 = vunpack.c.l.b16 %v43
    %v1024 = vunpack.c.l.b16 %v44
    %v1025 = vunpack.c.l.b16 %v45
    %v1026 = vunpack.c.l.b16 %v46
    %v1027 = vunpack.c.l.b16 %v47
    %v1028 = vunpack.c.l.b16 %v48
    %v1029 = vunpack.c.l.b16 %v49
    %v1030 = vunpack.c.l.b16 %v50
    %v1031 = vunpack.c.l.b16 %v51
    %v1032 = vunpack.c.l.b16 %v52
    %v1033 = vunpack.c.l.b16 %v53
    %v1034 = vunpack.c.l.b16 %v54
    %v1035 = vunpack.c.l.b16 %v55
    %v1036 = vunpack.c.l.b16 %v56
    %v1037 = vunpack.c.l.b16 %v57
    %v1038 = vunpack.c.l.b16 %v58
    %v1039 = vunpack.c.l.b16 %v59
    %v1040 = vunpack.c.l.b16 %v60
    %v1041 = vunpack.c.l.b16 %v61
    %v1042 = vunpack.c.l.b16 %v62
    %v1043 = vunpack.c.l.b16 %v63
    %v1044 = vunpack.c.l.b16 %v64
    %v1045 = vunpack.c.l.b16 %v65
    %v1046 = vunpack.c.l.b16 %v66
    %v1047 = vunpack.c.l.b16 %v67
    %v1048 = vunpack.c.l.b16 %v68
    %v1049 = vunpack.c.l.b16 %v69
    %v1050 = vunpack.c.l.b16 %v70
    %v1051 = vunpack.c.l.b16 %v71
    %v1052 = vunpack.c.l.b16 %v72
    %v1053 = vunpack.c.l.b16 %v73
    %v1054 = vunpack.c.l.b16 %v74
    %v1055 = vunpack.c.l.b16 %v75
    %v1056 = vunpack.c.l.b16 %v76
    %v1057 = vunpack.c.l.b16 %v77
    %v1058 = vunpack.c.l.b16 %v78
    %v1059 = vunpack.c.l.b16 %v79
    %v1060 = vunpack.c.l.b16 %v80
    %v1061 = vunpack.c.l.b16 %v81
    %v1062 = vunpack.c.l.b16 %v82
    %v1063 = vunpack.c.l.b16 %v83
    %v1064 = vunpack.c.l.b16 %v84
    %v1065 = vunpack.c.l.b16 %v85
    %v1066 = vunpack.c.l.b16 %v86
    %v1067 = vunpack.c.l.b16 %v87
    %v1068 = vunpack.c.l.b16 %v88
    %v1069 = vunpack.c.l.b16 %v89
    %v1070 = vunpack.c.l.b16 %v90
    %v1071 = vunpack.c.l.b16 %v91
    %v1072 = vunpack.c.l.b16 %v92
    %v1073 = vunpack.c.l.b16 %v93
    %v1074 = vunpack.c.l.b16 %v94
    %v1075 = vunpack.c.l.b16 %v95
    %v1076 = vunpack.c.l.b16 %v96
    %v1077 = vunpack.c.l.b16 %v97
    %v1078 = vunpack.c.l.b16 %v98
    %v1079 = vunpack.c.l.b16 %v99
    %v1080 = vunpack.c.l.b16 %v100
    %v1081 = vunpack.c.l.b16 %v101
    %v1082 = vunpack.c.l.b16 %v102
    %v1083 = vunpack.c.l.b16 %v103
    %v1084 = vunpack.c.l.b16 %v104
    %v1085 = vunpack.c.l.b16 %v105
    %v1086 = vunpack.c.l.b16 %v106
    %v1087 = vunpack.c.l.b16 %v107
    %v1088 = vunpack.c.l.b16 %v108
    %v1089 = vunpack.c.l.b16 %v109
    %v1090 = vunpack.c.l.b16 %v110
    %v1091 = vunpack.c.l.b16 %v111
    %v1092 = vunpack.c.l.b16 %v112
    %v1093 = vunpack.c.l.b16 %v113
    %v1094 = vunpack.c.l.b16 %v114
    %v1095 = vunpack.c.l.b16 %v115
    %v1096 = vunpack.c.l.b16 %v116
    %v1097 = vunpack.c.l.b16 %v117
    %v1098 = vunpack.c.l.b16 %v118
    %v1099 = vunpack.c.l.b16 %v119
    %v1100 = vunpack.c.l.b16 %v120
    %v1101 = vunpack.c.l.b16 %v121
    %v1102 = vunpack.c.l.b16 %v122
    %v1103 = vunpack.c.l.b16 %v123
    %v1104 = vunpack.c.l.b16 %v124
    %v1105 = vunpack.c.l.b16 %v125
    %v1106 = vunpack.c.l.b16 %v126
    %v1107 = vunpack.c.l.b16 %v127
    %v1108 = vunpack.c.l.b16 %v128
    %v1109 = vunpack.c.l.b16 %v129
    %v1110 = vunpack.c.l.b16 %v130
    %v1111 = vunpack.c.l.b16 %v131
    %v1112 = vunpack.c.l.b16 %v132
    %v1113 = vunpack.c.l.b16 %v133
    %v1114 = vunpack.c.l.b16 %v134
    %v1115 = vunpack.c.l.b16 %v135
    %v1116 = vunpack.c.l.b16 %v136
    %v1117 = vunpack.c.l.b16 %v137
    %v1118 = vunpack.c.l.b16 %v138
    %v1119 = vunpack.c.l.b16 %v139
    %v1120 = vunpack.c.l.b16 %v140
    %v1121 = vunpack.c.l.b16 %v141
    %v1122 = vunpack.c.l.b16 %v142
    %v1123 = vunpack.c.l.b16 %v143
    %v1124 = vunpack.c.l.b16 %v144
    %v1125 = vunpack.c.l.b16 %v145
    %v1126 = vunpack.c.l.b16 %v146
    %v1127 = vunpack.c.l.b16 %v147
    %v1128 = vunpack.c.l.b16 %v148
    %v1129 = vunpack.c.l.b16 %v149
    %v1130 = vunpack.c.l.b16 %v150
    %v1131 = vunpack.c.l.b16 %v151
    %v1132 = vunpack.c.l.b16 %v152
    %v1133 = vunpack.c.l.b16 %v153
    %v1134 = vunpack.c.l.b16 %v154
    %v1135 = vunpack.c.l.b16 %v155
    %v1136 = vunpack.c.l.b16 %v156
    %v1137 = vunpack.c.l.b16 %v157
    %v1138 = vunpack.c.l.b16 %v158
    %v1139 = vunpack.c.l.b16 %v159
    %v1140 = vunpack.c.l.b16 %v160
    %v1141 = vunpack.c.l.b16 %v161
    %v1142 = vunpack.c.l.b16 %v162
    %v1143 = vunpack.c.l.b16 %v163
    %v1144 = vunpack.c.l.b16 %v164
    %v1145 = vunpack.c.l.b16 %v165
    %v1146 = vunpack.c.l.b16 %v166
    %v1147 = vunpack.c.l.b16 %v167
    %v1148 = vunpack.c.l.b16 %v168
    %v1149 = vunpack.c.l.b16 %v169
    %v1150 = vunpack.c.l.b16 %v170
    %v1151 = vunpack.c.l.b16 %v171
    %v1152 = vunpack.c.l.b16 %v172
    %v1153 = vunpack.c.l.b16 %v173
    %v1154 = vunpack.c.l.b16 %v174
    %v1155 = vunpack.c.l.b16 %v175
    %v1156 = vunpack.c.l.b16 %v176
    %v1157 = vunpack.c.l.b16 %v177
    %v1158 = vunpack.c.l.b16 %v178
    %v1159 = vunpack.c.l.b16 %v179
    %v1160 = vunpack.c.l.b16 %v180
    %v1161 = vunpack.c.l.b16 %v181
    %v1162 = vunpack.c.l.b16 %v182
    %v1163 = vunpack.c.l.b16 %v183
    %v1164 = vunpack.c.l.b16 %v184
    %v1165 = vunpack.c.l.b16 %v185
    %v1166 = vunpack.c.l.b16 %v186
    %v1167 = vunpack.c.l.b16 %v187
    %v1168 = vunpack.c.l.b16 %v188
    %v1169 = vunpack.c.l.b16 %v189
    %v1170 = vunpack.c.l.b16 %v190
    %v1171 = vunpack.c.l.b16 %v191
    %v1172 = vunpack.c.l.b16 %v192
    %v1173 = vunpack.c.l.b16 %v193
    %v1174 = vunpack.c.l.b16 %v194
    %v1175 = vunpack.c.l.b16 %v195
    %v1176 = vunpack.c.l.b16 %v196
    %v1177 = vunpack.c.l.b16 %v197
    %v1178 = vunpack.c.l.b16 %v198
    %v1179 = vunpack.c.l.b16 %v199
    %v1180 = vunpack.c.l.b16 %v200
    %v1181 = vunpack.c.l.b16 %v201
    %v1182 = vunpack.c.l.b16 %v202
    %v1183 = vunpack.c.l.b16 %v203
    %v1184 = vunpack.c.l.b16 %v204
    %v1185 = vunpack.c.l.b16 %v205
    %v1186 = vunpack.c.l.b16 %v206
    %v1187 = vunpack.c.l.b16 %v207
    %v1188 = vunpack.c.l.b16 %v208
    %v1189 = vunpack.c.l.b16 %v209
    %v1190 = vunpack.c.l.b16 %v210
    %v1191 = vunpack.c.l.b16 %v211
    %v1192 = vunpack.c.l.b16 %v212
    %v1193 = vunpack.c.l.b16 %v213
    %v1194 = vunpack.c.l.b16 %v214
    %v1195 = vunpack.c.l.b16 %v215
    %v1196 = vunpack.c.l.b16 %v216
    %v1197 = vunpack.c.l.b16 %v217
    %v1198 = vunpack.c.l.b16 %v218
    %v1199 = vunpack.c.l.b16 %v219
    %v1200 = vunpack.c.l.b16 %v220
    %v1201 = vunpack.c.l.b16 %v221
    %v1202 = vunpack.c.l.b16 %v222
    %v1203 = vunpack.c.l.b16 %v223
    %v1204 = vunpack.c.l.b16 %v224
    %v1205 = vunpack.c.l.b16 %v225
    %v1206 = vunpack.c.l.b16 %v226
    %v1207 = vunpack.c.l.b16 %v227
    %v1208 = vunpack.c.l.b16 %v228
    %v1209 = vunpack.c.l.b16 %v229
    %v1210 = vunpack.c.l.b16 %v230
    %v1211 = vunpack.c.l.b16 %v231
    %v1212 = vunpack.c.l.b16 %v232
    %v1213 = vunpack.c.l.b16 %v233
    %v1214 = vunpack.c.l.b16 %v234
    %v1215 = vunpack.c.l.b16 %v235
    %v1216 = vunpack.c.l.b16 %v236
    %v1217 = vunpack.c.l.b16 %v237
    %v1218 = vunpack.c.l.b16 %v238
    %v1219 = vunpack.c.l.b16 %v239
    %v1220 = vunpack.c.l.b16 %v240
    %v1221 = vunpack.c.l.b16 %v241
    %v1222 = vunpack.c.l.b16 %v242
    %v1223 = vunpack.c.l.b16 %v243
    %v1224 = vunpack.c.l.b16 %v244
    %v1225 = vunpack.c.l.b16 %v245
    %v1226 = vunpack.c.l.b16 %v246
    %v1227 = vunpack.c.l.b16 %v247
    %v1228 = vunpack.c.l.b16 %v248
    %v1229 = vunpack.c.l.b16 %v249
    %v1230 = vunpack.c.l.b16 %v250
    %v1231 = vunpack.c.l.b16 %v251
    %v1232 = vunpack.c.l.b16 %v252
    %v1233 = vunpack.c.l.b16 %v253
    %v1234 = vunpack.c.l.b16 %v254
    %v1235 = vunpack.c.l.b16 %v255
    %v1236 = vunpack.c.l.b16 %v256
    %v1237 = vunpack.c.l.b16 %v257
    %v1238 = vunpack.c.l.b16 %v258
    %v1239 = vunpack.c.l.b16 %v259
    %v1240 = vunpack.c.l.b16 %v260
    %v1241 = vunpack.c.l.b16 %v261
    %v1242 = vunpack.c.l.b16 %v262
    %v1243 = vunpack.c.l.b16 %v263
    %v1244 = vunpack.c.l.b16 %v264
    %v1245 = vunpack.c.l.b16 %v265
    %v1246 = vunpack.c.l.b16 %v266
    %v1247 = vunpack.c.l.b16 %v267
    %v1248 = vunpack.c.l.b16 %v268
    %v1249 = vunpack.c.l.b16 %v269
    %v1250 = vunpack.c.l.b16 %v270
    %v1251 = vunpack.c.l.b16 %v271
    %v1252 = vunpack.c.l.b16 %v272
    %v1253 = vunpack.c.l.b16 %v273
    %v1254 = vunpack.c.l.b16 %v274
    %v1255 = vunpack.c.l.b16 %v275
    %v1256 = vunpack.c.l.b16 %v276
    %v1257 = vunpack.c.l.b16 %v277
    %v1258 = vunpack.c.l.b16 %v278
    %v1259 = vunpack.c.l.b16 %v279
    %v1260 = vunpack.c.l.b16 %v280
    %v1261 = vunpack.c.l.b16 %v281
    %v1262 = vunpack.c.l.b16 %v282
    %v1263 = vunpack.c.l.b16 %v283
    %v1264 = vunpack.c.l.b16 %v284
    %v1265 = vunpack.c.l.b16 %v285
    %v1266 = vunpack.c.l.b16 %v286
    %v1267 = vunpack.c.l.b16 %v287
    %v1268 = vunpack.c.l.b16 %v288
    %v1269 = vunpack.c.l.b16 %v289
    %v1270 = vunpack.c.l.b16 %v290
    %v1271 = vunpack.c.l.b16 %v291
    %v1272 = vunpack.c.l.b16 %v292
    %v1273 = vunpack.c.l.b16 %v293
    %v1274 = vunpack.c.l.b16 %v294
    %v1275 = vunpack.c.l.b16 %v295
    %v1276 = vunpack.c.l.b16 %v296
    %v1277 = vunpack.c.l.b16 %v297
    %v1278 = vunpack.c.l.b16 %v298
    %v1279 = vunpack.c.l.b16 %v299
    %v1280 = vunpack.c.l.b16 %v300
    %v1281 = vunpack.c.l.b16 %v301
    %v1282 = vunpack.c.l.b16 %v302
    %v1283 = vunpack.c.l.b16 %v303
    %v1284 = vunpack.c.l.b16 %v304
    %v1285 = vunpack.c.l.b16 %v305
    %v1286 = vunpack.c.l.b16 %v306
    %v1287 = vunpack.c.l.b16 %v307
    %v1288 = vunpack.c.l.b16 %v308
    %v1289 = vunpack.c.l.b16 %v309
    %v1290 = vunpack.c.l.b16 %v310
    %v1291 = vunpack.c.l.b16 %v311
    %v1292 = vunpack.c.l.b16 %v312
    %v1293 = vunpack.c.l.b16 %v313
    %v1294 = vunpack.c.l.b16 %v314
    %v1295 = vunpack.c.l.b16 %v315
    %v1296 = vunpack.c.l.b16 %v316
    %v1297 = vunpack.c.l.b16 %v317
    %v1298 = vunpack.c.l.b16 %v318
    %v1299 = vunpack.c.l.b16 %v319
    %v1300 = vunpack.c.l.b16 %v320
    %v1301 = vunpack.c.l.b16 %v321
    %v1302 = vunpack.c.l.b16 %v322
    %v1303 = vunpack.c.l.b16 %v323
    %v1304 = vunpack.c.l.b16 %v324
    %v1305 = vunpack.c.l.b16 %v325
    %v1306 = vunpack.c.l.b16 %v326
    %v1307 = vunpack.c.l.b16 %v327
    %v1308 = vunpack.c.l.b16 %v328
    %v1309 = vunpack.c.l.b16 %v329
    %v1310 = vunpack.c.l.b16 %v330
    %v1311 = vunpack.c.l.b16 %v331
    %v1312 = vunpack.c.l.b16 %v332
    %v1313 = vunpack.c.l.b16 %v333
    %v1314 = vunpack.c.l.b16 %v334
    %v1315 = vunpack.c.l.b16 %v335
    %v1316 = vunpack.c.l.b16 %v336
    %v1317 = vunpack.c.l.b16 %v337
    %v1318 = vunpack.c.l.b16 %v338
    %v1319 = vunpack.c.l.b16 %v339
    %v1320 = vunpack.c.l.b16 %v340
    %v1321 = vunpack.c.l.b16 %v341
    %v1322 = vunpack.c.l.b16 %v342
    %v1323 = vunpack.c.l.b16 %v343
    %v1324 = vunpack.c.l.b16 %v344
    %v1325 = vunpack.c.l.b16 %v345
    %v1326 = vunpack.c.l.b16 %v346
    %v1327 = vunpack.c.l.b16 %v347
    %v1328 = vunpack.c.l.b16 %v348
    %v1329 = vunpack.c.l.b16 %v349
    %v1330 = vunpack.c.l.b16 %v350
    %v1331 = vunpack.c.l.b16 %v351
    %v1332 = vunpack.c.l.b16 %v352
    %v1333 = vunpack.c.l.b16 %v353
    %v1334 = vunpack.c.l.b16 %v354
    %v1335 = vunpack.c.l.b16 %v355
    %v1336 = vunpack.c.l.b16 %v356
    %v1337 = vunpack.c.l.b16 %v357
    %v1338 = vunpack.c.l.b16 %v358
    %v1339 = vunpack.c.l.b16 %v359
    %v1340 = vunpack.c.l.b16 %v360
    %v1341 = vunpack.c.l.b16 %v361
    %v1342 = vunpack.c.l.b16 %v362
    %v1343 = vunpack.c.l.b16 %v363
    %v1344 = vunpack.c.l.b16 %v364
    %v1345 = vunpack.c.l.b16 %v365
    %v1346 = vunpack.c.l.b16 %v366
    %v1347 = vunpack.c.l.b16 %v367
    %v1348 = vunpack.c.l.b16 %v368
    %v1349 = vunpack.c.l.b16 %v369
    %v1350 = vunpack.c.l.b16 %v370
    %v1351 = vunpack.c.l.b16 %v371
    %v1352 = vunpack.c.l.b16 %v372
    %v1353 = vunpack.c.l.b16 %v373
    %v1354 = vunpack.c.l.b16 %v374
    %v1355 = vunpack.c.l.b16 %v375
    %v1356 = vunpack.c.l.b16 %v376
    %v1357 = vunpack.c.l.b16 %v377
    %v1358 = vunpack.c.l.b16 %v378
    %v1359 = vunpack.c.l.b16 %v379
    %v1360 = vunpack.c.l.b16 %v380
    %v1361 = vunpack.c.l.b16 %v381
    %v1362 = vunpack.c.l.b16 %v382
    %v1363 = vunpack.c.l.b16 %v383
    %v1364 = vunpack.c.l.b16 %v384
    %v1365 = vunpack.c.l.b16 %v385
    %v1366 = vunpack.c.l.b16 %v386
    %v1367 = vunpack.c.l.b16 %v387
    %v1368 = vunpack.c.l.b16 %v388
    %v1369 = vunpack.c.l.b16 %v389
    %v1370 = vunpack.c.l.b16 %v390
    %v1371 = vunpack.c.l.b16 %v391
    %v1372 = vunpack.c.l.b16 %v392
    %v1373 = vunpack.c.l.b16 %v393
    %v1374 = vunpack.c.l.b16 %v394
    %v1375 = vunpack.c.l.b16 %v395
    %v1376 = vunpack.c.l.b16 %v396
    %v1377 = vunpack.c.l.b16 %v397
    %v1378 = vunpack.c.l.b16 %v398
    %v1379 = vunpack.c.l.b16 %v399
    %v1380 = vunpack.c.l.b16 %v400
    %v1381 = vunpack.c.l.b16 %v401
    %v1382 = vunpack.c.l.b16 %v402
    %v1383 = vunpack.c.l.b16 %v403
    %v1384 = vunpack.c.l.b16 %v404
    %v1385 = vunpack.c.l.b16 %v405
    %v1386 = vunpack.c.l.b16 %v406
    %v1387 = vunpack.c.l.b16 %v407
    %v1388 = vunpack.c.l.b16 %v408
    %v1389 = vunpack.c.l.b16 %v409
    %v1390 = vunpack.c.l.b16 %v410
    %v1391 = vunpack.c.l.b16 %v411
    %v1392 = vunpack.c.l.b16 %v412
    %v1393 = vunpack.c.l.b16 %v413
    %v1394 = vunpack.c.l.b16 %v414
    %v1395 = vunpack.c.l.b16 %v415
    %v1396 = vunpack.c.l.b16 %v416
    %v1397 = vunpack.c.l.b16 %v417
    %v1398 = vpack.c.b16 %v1007, %v1006
    %v1399 = vpack.c.b16 %v1009, %v1008
    %v1400 = vpack.c.b16 %v1011, %v1010
    %v1401 = vpack.c.b16 %v1013, %v1012
    %v1402 = vpack.c.b16 %v1015, %v1014
    %v1403 = vpack.c.b16 %v1017, %v1016
    %v1404 = vpack.c.b16 %v1019, %v1018
    %v1405 = vpack.c.b16 %v1021, %v1020
    %v1406 = vpack.c.b16 %v1023, %v1022
    %v1407 = vpack.c.b16 %v1025, %v1024
    %v1408 = vpack.c.b16 %v1027, %v1026
    %v1409 = vpack.c.b16 %v1029, %v1028
    %v1410 = vpack.c.b16 %v1031, %v1030
    %v1411 = vpack.c.b16 %v1033, %v1032
    %v1412 = vpack.c.b16 %v1035, %v1034
    %v1413 = vpack.c.b16 %v1037, %v1036
    %v1414 = vpack.c.b16 %v1039, %v1038
    %v1415 = vpack.c.b16 %v1041, %v1040
    %v1416 = vpack.c.b16 %v1043, %v1042
    %v1417 = vpack.c.b16 %v1045, %v1044
    %v1418 = vpack.c.b16 %v1047, %v1046
    %v1419 = vpack.c.b16 %v1049, %v1048
    %v1420 = vpack.c.b16 %v1051, %v1050
    %v1421 = vpack.c.b16 %v1053, %v1052
    %v1422 = vpack.c.b16 %v1055, %v1054
    %v1423 = vpack.c.b16 %v1057, %v1056
    %v1424 = vpack.c.b16 %v1059, %v1058
    %v1425 = vpack.c.b16 %v1061, %v1060
    %v1426 = vpack.c.b16 %v1063, %v1062
    %v1427 = vpack.c.b16 %v1065, %v1064
    %v1428 = vpack.c.b16 %v1067, %v1066
    %v1429 = vpack.c.b16 %v1069, %v1068
    %v1430 = vpack.c.b16 %v1071, %v1070
    %v1431 = vpack.c.b16 %v1073, %v1072
    %v1432 = vpack.c.b16 %v1075, %v1074
    %v1433 = vpack.c.b16 %v1077, %v1076
    %v1434 = vpack.c.b16 %v1079, %v1078
    %v1435 = vpack.c.b16 %v1081, %v1080
    %v1436 = vpack.c.b16 %v1083, %v1082
    %v1437 = vpack.c.b16 %v1085, %v1084
    %v1438 = vpack.c.b16 %v1087, %v1086
    %v1439 = vpack.c.b16 %v1089, %v1088
    %v1440 = vpack.c.b16 %v1091, %v1090
    %v1441 = vpack.c.b16 %v1093, %v1092
    %v1442 = vpack.c.b16 %v1095, %v1094
    %v1443 = vpack.c.b16 %v1097, %v1096
    %v1444 = vpack.c.b16 %v1099, %v1098
    %v1445 = vpack.c.b16 %v1101, %v1100
    %v1446 = vpack.c.b16 %v1103, %v1102
    %v1447 = vpack.c.b16 %v1105, %v1104
    %v1448 = vpack.c.b16 %v1107, %v1106
    %v1449 = vpack.c.b16 %v1109, %v1108
    %v1450 = vpack.c.b16 %v1111, %v1110
    %v1451 = vpack.c.b16 %v1113, %v1112
    %v1452 = vpack.c.b16 %v1115, %v1114
    %v1453 = vpack.c.b16 %v1117, %v1116
    %v1454 = vpack.c.b16 %v1119, %v1118
    %v1455 = vpack.c.b16 %v1121, %v1120
    %v1456 = vpack.c.b16 %v1123, %v1122
    %v1457 = vpack.c.b16 %v1125, %v1124
    %v1458 = vpack.c.b16 %v1127, %v1126
    %v1459 = vpack.c.b16 %v1129, %v1128
    %v1460 = vpack.c.b16 %v1131, %v1130
    %v1461 = vpack.c.b16 %v1133, %v1132
    %v1462 = vpack.c.b16 %v1135, %v1134
    %v1463 = vpack.c.b16 %v1137, %v1136
    %v1464 = vpack.c.b16 %v1139, %v1138
    %v1465 = vpack.c.b16 %v1141, %v1140
    %v1466 = vpack.c.b16 %v1143, %v1142
    %v1467 = vpack.c.b16 %v1145, %v1144
    %v1468 = vpack.c.b16 %v1147, %v1146
    %v1469 = vpack.c.b16 %v1149, %v1148
    %v1470 = vpack.c.b16 %v1151, %v1150
    %v1471 = vpack.c.b16 %v1153, %v1152
    %v1472 = vpack.c.b16 %v1155, %v1154
    %v1473 = vpack.c.b16 %v1157, %v1156
    %v1474 = vpack.c.b16 %v1159, %v1158
    %v1475 = vpack.c.b16 %v1161, %v1160
    %v1476 = vpack.c.b16 %v1163, %v1162
    %v1477 = vpack.c.b16 %v1165, %v1164
    %v1478 = vpack.c.b16 %v1167, %v1166
    %v1479 = vpack.c.b16 %v1169, %v1168
    %v1480 = vpack.c.b16 %v1171, %v1170
    %v1481 = vpack.c.b16 %v1173, %v1172
    %v1482 = vpack.c.b16 %v1175, %v1174
    %v1483 = vpack.c.b16 %v1177, %v1176
    %v1484 = vpack.c.b16 %v1179, %v1178
    %v1485 = vpack.c.b16 %v1181, %v1180
    %v1486 = vpack.c.b16 %v1183, %v1182
    %v1487 = vpack.c.b16 %v1185, %v1184
    %v1488 = vpack.c.b16 %v1187, %v1186
    %v1489 = vpack.c.b16 %v1189, %v1188
    %v1490 = vpack.c.b16 %v1191, %v1190
    %v1491 = vpack.c.b16 %v1193, %v1192
    %v1492 = vpack.c.b16 %v1195, %v1194
    %v1493 = vpack.c.b16 %v1197, %v1196
    %v1494 = vpack.c.b16 %v1199, %v1198
    %v1495 = vpack.c.b16 %v1201, %v1200
    %v1496 = vpack.c.b16 %v1203, %v1202
    %v1497 = vpack.c.b16 %v1205, %v1204
    %v1498 = vpack.c.b16 %v1207, %v1206
    %v1499 = vpack.c.b16 %v1209, %v1208
    %v1500 = vpack.c.b16 %v1211, %v1210
    %v1501 = vpack.c.b16 %v1213, %v1212
    %v1502 = vpack.c.b16 %v1215, %v1214
    %v1503 = vpack.c.b16 %v1217, %v1216
    %v1504 = vpack.c.b16 %v1219, %v1218
    %v1505 = vpack.c.b16 %v1221, %v1220
    %v1506 = vpack.c.b16 %v1223, %v1222
    %v1507 = vpack.c.b16 %v1225, %v1224
    %v1508 = vpack.c.b16 %v1227, %v1226
    %v1509 = vpack.c.b16 %v1229, %v1228
    %v1510 = vpack.c.b16 %v1231, %v1230
    %v1511 = vpack.c.b16 %v1233, %v1232
    %v1512 = vpack.c.b16 %v1235, %v1234
    %v1513 = vpack.c.b16 %v1237, %v1236
    %v1514 = vpack.c.b16 %v1239, %v1238
    %v1515 = vpack.c.b16 %v1241, %v1240
    %v1516 = vpack.c.b16 %v1243, %v1242
    %v1517 = vpack.c.b16 %v1245, %v1244
    %v1518 = vpack.c.b16 %v1247, %v1246
    %v1519 = vpack.c.b16 %v1249, %v1248
    %v1520 = vpack.c.b16 %v1251, %v1250
    %v1521 = vpack.c.b16 %v1253, %v1252
    %v1522 = vpack.c.b16 %v1255, %v1254
    %v1523 = vpack.c.b16 %v1257, %v1256
    %v1524 = vpack.c.b16 %v1259, %v1258
    %v1525 = vpack.c.b16 %v1261, %v1260
    %v1526 = vpack.c.b16 %v1263, %v1262
    %v1527 = vpack.c.b16 %v1265, %v1264
    %v1528 = vpack.c.b16 %v1267, %v1266
    %v1529 = vpack.c.b16 %v1269, %v1268
    %v1530 = vpack.c.b16 %v1271, %v1270
    %v1531 = vpack.c.b16 %v1273, %v1272
    %v1532 = vpack.c.b16 %v1275, %v1274
    %v1533 = vpack.c.b16 %v1277, %v1276
    %v1534 = vpack.c.b16 %v1279, %v1278
    %v1535 = vpack.c.b16 %v1281, %v1280
    %v1536 = vpack.c.b16 %v1283, %v1282
    %v1537 = vpack.c.b16 %v1285, %v1284
    %v1538 = vpack.c.b16 %v1287, %v1286
    %v1539 = vpack.c.b16 %v1289, %v1288
    %v1540 = vpack.c.b16 %v1291, %v1290
    %v1541 = vpack.c.b16 %v1293, %v1292
    %v1542 = vpack.c.b16 %v1295, %v1294
    %v1543 = vpack.c.b16 %v1297, %v1296
    %v1544 = vpack.c.b16 %v1299, %v1298
    %v1545 = vpack.c.b16 %v1301, %v1300
    %v1546 = vpack.c.b16 %v1303, %v1302
    %v1547 = vpack.c.b16 %v1305, %v1304
    %v1548 = vpack.c.b16 %v1307, %v1306
    %v1549 = vpack.c.b16 %v1309, %v1308
    %v1550 = vpack.c.b16 %v1311, %v1310
    %v1551 = vpack.c.b16 %v1313, %v1312
    %v1552 = vpack.c.b16 %v1315, %v1314
    %v1553 = vpack.c.b16 %v1317, %v1316
    %v1554 = vpack.c.b16 %v1319, %v1318
    %v1555 = vpack.c.b16 %v1321, %v1320
    %v1556 = vpack.c.b16 %v1323, %v1322
    %v1557 = vpack.c.b16 %v1325, %v1324
    %v1558 = vpack.c.b16 %v1327, %v1326
    %v1559 = vpack.c.b16 %v1329, %v1328
    %v1560 = vpack.c.b16 %v1331, %v1330
    %v1561 = vpack.c.b16 %v1333, %v1332
    %v1562 = vpack.c.b16 %v1335, %v1334
    %v1563 = vpack.c.b16 %v1337, %v1336
    %v1564 = vpack.c.b16 %v1339, %v1338
    %v1565 = vpack.c.b16 %v1341, %v1340
    %v1566 = vpack.c.b16 %v1343, %v1342
    %v1567 = vpack.c.b16 %v1345, %v1344
    %v1568 = vpack.c.b16 %v1347, %v1346
    %v1569 = vpack.c.b16 %v1349, %v1348
    %v1570 = vpack.c.b16 %v1351, %v1350
    %v1571 = vpack.c.b16 %v1353, %v1352
    %v1572 = vpack.c.b16 %v1355, %v1354
    %v1573 = vpack.c.b16 %v1357, %v1356
    %v1574 = vpack.c.b16 %v1359, %v1358
    %v1575 = vpack.c.b16 %v1361, %v1360
    %v1576 = vpack.c.b16 %v1363, %v1362
    %v1577 = vpack.c.b16 %v1365, %v1364
    %v1578 = vpack.c.b16 %v1367, %v1366
    %v1579 = vpack.c.b16 %v1369, %v1368
    %v1580 = vpack.c.b16 %v1371, %v1370
    %v1581 = vpack.c.b16 %v1373, %v1372
    %v1582 = vpack.c.b16 %v1375, %v1374
    %v1583 = vpack.c.b16 %v1377, %v1376
    %v1584 = vpack.c.b16 %v1379, %v1378
    %v1585 = vpack.c.b16 %v1381, %v1380
    %v1586 = vpack.c.b16 %v1383, %v1382
    %v1587 = vpack.c.b16 %v1385, %v1384
    %v1588 = vpack.c.b16 %v1387, %v1386
    %v1589 = vpack.c.b16 %v1389, %v1388
    %v1590 = vpack.c.b16 %v1391, %v1390
    %v1591 = vpack.c.b16 %v1393, %v1392
    %v1592 = vpack.c.b16 %v1395, %v1394
    %v1593 = vpack.c.b16 %v1397, %v1396
    %vm1790 = vcmask 523264
    %v1792 = vsel %vm1790, %v589, 0
    %1794 = vmatprep.subr.bf16.mxu0 0
    %1795 = vmatpush1.bf16.msra.mxu0 %v1405
    %1796 = vmatprep.subr.bf16.mxu0 0
    %1797 = vmatpush1.bf16.msra.mxu0 %v1404
    %1798 = vmatprep.subr.bf16.mxu0 0
    %1799 = vmatpush1.bf16.msra.mxu0 %v1403
    %1800 = vmatprep.subr.bf16.mxu0 0
    %1801 = vmatpush1.bf16.msra.mxu0 %v1402
    %1802 = vmatprep.subr.bf16.mxu0 0
    %1803 = vmatpush1.bf16.msra.mxu0 %v1401
    %1804 = vmatprep.subr.bf16.mxu0 0
    %1805 = vmatpush1.bf16.msra.mxu0 %v1400
    %1806 = vmatprep.subr.bf16.mxu0 0
    %1807 = vmatpush1.bf16.msra.mxu0 %v1399
    %1808 = vmatprep.subr.bf16.mxu0 0
    %1809 = vmatpush1.bf16.msra.mxu0 %v1398
    %1810 = vmatprep.subr.bf16.mxu0 0
    %1811 = vmatpush2.bf16.msra.mxu0 %v1413
    %1812 = vmatprep.subr.bf16.mxu0 0
    %1813 = vmatpush2.bf16.msra.mxu0 %v1412
    %1814 = vmatprep.subr.bf16.mxu0 0
    %1815 = vmatpush2.bf16.msra.mxu0 %v1411
    %1816 = vmatprep.subr.bf16.mxu0 0
    %1817 = vmatpush2.bf16.msra.mxu0 %v1410
    %1818 = vmatprep.subr.bf16.mxu0 0
    %1819 = vmatpush2.bf16.msra.mxu0 %v1409
    %1820 = vmatprep.subr.bf16.mxu0 0
    %1821 = vmatpush2.bf16.msra.mxu0 %v1408
    %1822 = vmatprep.subr.bf16.mxu0 0
    %1823 = vmatpush2.bf16.msra.mxu0 %v1407
    %1824 = vmatprep.subr.bf16.mxu0 0
    %1825 = vmatpush2.bf16.msra.mxu0 %v1406
    %1826 = vmatprep.mubr.bf16.mxu0 %v466
    %1827 = vmatmul.mubr.bf16.gmra.mxu0 %v452
    %v1828 = vpop.f32.mrf.mxu0
    %v1829 = vadd.f32 %v423, %v1828
    %v1830 = vpop.f32.mrf.mxu0
    %v1831 = vpop.f32.mrf.mxu0
    %v1832 = vpop.f32.mrf.mxu0
    %1833 = vdwg.mxu0
    %1834 = vmatprep.subr.bf16.mxu0 0
    %1835 = vmatpush1.bf16.msra.mxu0 %v1421
    %1836 = vmatprep.subr.bf16.mxu0 0
    %1837 = vmatpush1.bf16.msra.mxu0 %v1420
    %1838 = vmatprep.subr.bf16.mxu0 0
    %1839 = vmatpush1.bf16.msra.mxu0 %v1419
    %1840 = vmatprep.subr.bf16.mxu0 0
    %1841 = vmatpush1.bf16.msra.mxu0 %v1418
    %1842 = vmatprep.subr.bf16.mxu0 0
    %1843 = vmatpush1.bf16.msra.mxu0 %v1417
    %1844 = vmatprep.subr.bf16.mxu0 0
    %1845 = vmatpush1.bf16.msra.mxu0 %v1416
    %1846 = vmatprep.subr.bf16.mxu0 0
    %1847 = vmatpush1.bf16.msra.mxu0 %v1415
    %1848 = vmatprep.subr.bf16.mxu0 0
    %1849 = vmatpush1.bf16.msra.mxu0 %v1414
    %1850 = vmatprep.subr.bf16.mxu0 0
    %1851 = vmatpush2.bf16.msra.mxu0 %v1429
    %1852 = vmatprep.subr.bf16.mxu0 0
    %1853 = vmatpush2.bf16.msra.mxu0 %v1428
    %1854 = vmatprep.subr.bf16.mxu0 0
    %1855 = vmatpush2.bf16.msra.mxu0 %v1427
    %1856 = vmatprep.subr.bf16.mxu0 0
    %1857 = vmatpush2.bf16.msra.mxu0 %v1426
    %1858 = vmatprep.subr.bf16.mxu0 0
    %1859 = vmatpush2.bf16.msra.mxu0 %v1425
    %1860 = vmatprep.subr.bf16.mxu0 0
    %1861 = vmatpush2.bf16.msra.mxu0 %v1424
    %1862 = vmatprep.subr.bf16.mxu0 0
    %1863 = vmatpush2.bf16.msra.mxu0 %v1423
    %1864 = vmatprep.subr.bf16.mxu0 0
    %1865 = vmatpush2.bf16.msra.mxu0 %v1422
    %1866 = vmatprep.mubr.bf16.mxu0 %v476
    %1867 = vmatmul.mubr.bf16.gmra.mxu0 %v474
    %v1868 = vpop.f32.mrf.mxu0
    %v1869 = vadd.f32 %v1829, %v1868
    %v1870 = vpop.f32.mrf.mxu0
    %v1871 = vpop.f32.mrf.mxu0
    %v1872 = vpop.f32.mrf.mxu0
    %1873 = vdwg.mxu0
    %1874 = vmatprep.subr.bf16.mxu0 0
    %1875 = vmatpush1.bf16.msra.mxu0 %v1437
    %1876 = vmatprep.subr.bf16.mxu0 0
    %1877 = vmatpush1.bf16.msra.mxu0 %v1436
    %1878 = vmatprep.subr.bf16.mxu0 0
    %1879 = vmatpush1.bf16.msra.mxu0 %v1435
    %1880 = vmatprep.subr.bf16.mxu0 0
    %1881 = vmatpush1.bf16.msra.mxu0 %v1434
    %1882 = vmatprep.subr.bf16.mxu0 0
    %1883 = vmatpush1.bf16.msra.mxu0 %v1433
    %1884 = vmatprep.subr.bf16.mxu0 0
    %1885 = vmatpush1.bf16.msra.mxu0 %v1432
    %1886 = vmatprep.subr.bf16.mxu0 0
    %1887 = vmatpush1.bf16.msra.mxu0 %v1431
    %1888 = vmatprep.subr.bf16.mxu0 0
    %1889 = vmatpush1.bf16.msra.mxu0 %v1430
    %1890 = vmatprep.subr.bf16.mxu0 0
    %1891 = vmatpush2.bf16.msra.mxu0 %v1445
    %1892 = vmatprep.subr.bf16.mxu0 0
    %1893 = vmatpush2.bf16.msra.mxu0 %v1444
    %1894 = vmatprep.subr.bf16.mxu0 0
    %1895 = vmatpush2.bf16.msra.mxu0 %v1443
    %1896 = vmatprep.subr.bf16.mxu0 0
    %1897 = vmatpush2.bf16.msra.mxu0 %v1442
    %1898 = vmatprep.subr.bf16.mxu0 0
    %1899 = vmatpush2.bf16.msra.mxu0 %v1441
    %1900 = vmatprep.subr.bf16.mxu0 0
    %1901 = vmatpush2.bf16.msra.mxu0 %v1440
    %1902 = vmatprep.subr.bf16.mxu0 0
    %1903 = vmatpush2.bf16.msra.mxu0 %v1439
    %1904 = vmatprep.subr.bf16.mxu0 0
    %1905 = vmatpush2.bf16.msra.mxu0 %v1438
    %1906 = vmatprep.mubr.bf16.mxu0 %v473
    %1907 = vmatmul.mubr.bf16.gmra.mxu0 %v459
    %v1908 = vpop.f32.mrf.mxu0
    %v1909 = vadd.f32 %v1869, %v1908
    %v1910 = vpop.f32.mrf.mxu0
    %v1911 = vpop.f32.mrf.mxu0
    %v1912 = vpop.f32.mrf.mxu0
    %1913 = vdwg.mxu0
    %1914 = vmatprep.subr.bf16.mxu0 0
    %1915 = vmatpush1.bf16.msra.mxu0 %v1453
    %1916 = vmatprep.subr.bf16.mxu0 0
    %1917 = vmatpush1.bf16.msra.mxu0 %v1452
    %1918 = vmatprep.subr.bf16.mxu0 0
    %1919 = vmatpush1.bf16.msra.mxu0 %v1451
    %1920 = vmatprep.subr.bf16.mxu0 0
    %1921 = vmatpush1.bf16.msra.mxu0 %v1450
    %1922 = vmatprep.subr.bf16.mxu0 0
    %1923 = vmatpush1.bf16.msra.mxu0 %v1449
    %1924 = vmatprep.subr.bf16.mxu0 0
    %1925 = vmatpush1.bf16.msra.mxu0 %v1448
    %1926 = vmatprep.subr.bf16.mxu0 0
    %1927 = vmatpush1.bf16.msra.mxu0 %v1447
    %1928 = vmatprep.subr.bf16.mxu0 0
    %1929 = vmatpush1.bf16.msra.mxu0 %v1446
    %1930 = vmatprep.subr.bf16.mxu0 0
    %1931 = vmatpush2.bf16.msra.mxu0 %v1461
    %1932 = vmatprep.subr.bf16.mxu0 0
    %1933 = vmatpush2.bf16.msra.mxu0 %v1460
    %1934 = vmatprep.subr.bf16.mxu0 0
    %1935 = vmatpush2.bf16.msra.mxu0 %v1459
    %1936 = vmatprep.subr.bf16.mxu0 0
    %1937 = vmatpush2.bf16.msra.mxu0 %v1458
    %1938 = vmatprep.subr.bf16.mxu0 0
    %1939 = vmatpush2.bf16.msra.mxu0 %v1457
    %1940 = vmatprep.subr.bf16.mxu0 0
    %1941 = vmatpush2.bf16.msra.mxu0 %v1456
    %1942 = vmatprep.subr.bf16.mxu0 0
    %1943 = vmatpush2.bf16.msra.mxu0 %v1455
    %1944 = vmatprep.subr.bf16.mxu0 0
    %1945 = vmatpush2.bf16.msra.mxu0 %v1454
    %1946 = vmatprep.mubr.bf16.mxu0 %v477
    %1947 = vmatmul.mubr.bf16.gmra.mxu0 %v475
    %v1948 = vpop.f32.mrf.mxu0
    %v1949 = vadd.f32 %v1909, %v1948
    %v1950 = vpop.f32.mrf.mxu0
    %v1951 = vpop.f32.mrf.mxu0
    %v1952 = vpop.f32.mrf.mxu0
    %1953 = vdwg.mxu0
    %1954 = vmatprep.subr.bf16.mxu0 0
    %1955 = vmatpush1.bf16.msra.mxu0 %v1469
    %1956 = vmatprep.subr.bf16.mxu0 0
    %1957 = vmatpush1.bf16.msra.mxu0 %v1468
    %1958 = vmatprep.subr.bf16.mxu0 0
    %1959 = vmatpush1.bf16.msra.mxu0 %v1467
    %1960 = vmatprep.subr.bf16.mxu0 0
    %1961 = vmatpush1.bf16.msra.mxu0 %v1466
    %1962 = vmatprep.subr.bf16.mxu0 0
    %1963 = vmatpush1.bf16.msra.mxu0 %v1465
    %1964 = vmatprep.subr.bf16.mxu0 0
    %1965 = vmatpush1.bf16.msra.mxu0 %v1464
    %1966 = vmatprep.subr.bf16.mxu0 0
    %1967 = vmatpush1.bf16.msra.mxu0 %v1463
    %1968 = vmatprep.subr.bf16.mxu0 0
    %1969 = vmatpush1.bf16.msra.mxu0 %v1462
    %1970 = vmatprep.subr.bf16.mxu0 0
    %1971 = vmatpush2.bf16.msra.mxu0 %v1477
    %1972 = vmatprep.subr.bf16.mxu0 0
    %1973 = vmatpush2.bf16.msra.mxu0 %v1476
    %1974 = vmatprep.subr.bf16.mxu0 0
    %1975 = vmatpush2.bf16.msra.mxu0 %v1475
    %1976 = vmatprep.subr.bf16.mxu0 0
    %1977 = vmatpush2.bf16.msra.mxu0 %v1474
    %1978 = vmatprep.subr.bf16.mxu0 0
    %1979 = vmatpush2.bf16.msra.mxu0 %v1473
    %1980 = vmatprep.subr.bf16.mxu0 0
    %1981 = vmatpush2.bf16.msra.mxu0 %v1472
    %1982 = vmatprep.subr.bf16.mxu0 0
    %1983 = vmatpush2.bf16.msra.mxu0 %v1471
    %1984 = vmatprep.subr.bf16.mxu0 0
    %1985 = vmatpush2.bf16.msra.mxu0 %v1470
    %1986 = vmatprep.mubr.bf16.mxu0 %v515
    %1987 = vmatmul.mubr.bf16.gmra.mxu0 %v501
    %v1988 = vpop.f32.mrf.mxu0
    %v1989 = vadd.f32 %v1949, %v1988
    %v1990 = vpop.f32.mrf.mxu0
    %v1991 = vpop.f32.mrf.mxu0
    %v1992 = vpop.f32.mrf.mxu0
    %1993 = vdwg.mxu0
    %1994 = vmatprep.subr.bf16.mxu0 0
    %1995 = vmatpush1.bf16.msra.mxu0 %v1485
    %1996 = vmatprep.subr.bf16.mxu0 0
    %1997 = vmatpush1.bf16.msra.mxu0 %v1484
    %1998 = vmatprep.subr.bf16.mxu0 0
    %1999 = vmatpush1.bf16.msra.mxu0 %v1483
    %2000 = vmatprep.subr.bf16.mxu0 0
    %2001 = vmatpush1.bf16.msra.mxu0 %v1482
    %2002 = vmatprep.subr.bf16.mxu0 0
    %2003 = vmatpush1.bf16.msra.mxu0 %v1481
    %2004 = vmatprep.subr.bf16.mxu0 0
    %2005 = vmatpush1.bf16.msra.mxu0 %v1480
    %2006 = vmatprep.subr.bf16.mxu0 0
    %2007 = vmatpush1.bf16.msra.mxu0 %v1479
    %2008 = vmatprep.subr.bf16.mxu0 0
    %2009 = vmatpush1.bf16.msra.mxu0 %v1478
    %2010 = vmatprep.subr.bf16.mxu0 0
    %2011 = vmatpush2.bf16.msra.mxu0 %v1493
    %2012 = vmatprep.subr.bf16.mxu0 0
    %2013 = vmatpush2.bf16.msra.mxu0 %v1492
    %2014 = vmatprep.subr.bf16.mxu0 0
    %2015 = vmatpush2.bf16.msra.mxu0 %v1491
    %2016 = vmatprep.subr.bf16.mxu0 0
    %2017 = vmatpush2.bf16.msra.mxu0 %v1490
    %2018 = vmatprep.subr.bf16.mxu0 0
    %2019 = vmatpush2.bf16.msra.mxu0 %v1489
    %2020 = vmatprep.subr.bf16.mxu0 0
    %2021 = vmatpush2.bf16.msra.mxu0 %v1488
    %2022 = vmatprep.subr.bf16.mxu0 0
    %2023 = vmatpush2.bf16.msra.mxu0 %v1487
    %2024 = vmatprep.subr.bf16.mxu0 0
    %2025 = vmatpush2.bf16.msra.mxu0 %v1486
    %2026 = vmatprep.mubr.bf16.mxu0 %v525
    %2027 = vmatmul.mubr.bf16.gmra.mxu0 %v523
    %v2028 = vpop.f32.mrf.mxu0
    %v2029 = vadd.f32 %v1989, %v2028
    %v2030 = vpop.f32.mrf.mxu0
    %v2031 = vpop.f32.mrf.mxu0
    %v2032 = vpop.f32.mrf.mxu0
    %2033 = vdwg.mxu0
    %2034 = vmatprep.subr.bf16.mxu0 0
    %2035 = vmatpush1.bf16.msra.mxu0 %v1501
    %2036 = vmatprep.subr.bf16.mxu0 0
    %2037 = vmatpush1.bf16.msra.mxu0 %v1500
    %2038 = vmatprep.subr.bf16.mxu0 0
    %2039 = vmatpush1.bf16.msra.mxu0 %v1499
    %2040 = vmatprep.subr.bf16.mxu0 0
    %2041 = vmatpush1.bf16.msra.mxu0 %v1498
    %2042 = vmatprep.subr.bf16.mxu0 0
    %2043 = vmatpush1.bf16.msra.mxu0 %v1497
    %2044 = vmatprep.subr.bf16.mxu0 0
    %2045 = vmatpush1.bf16.msra.mxu0 %v1496
    %2046 = vmatprep.subr.bf16.mxu0 0
    %2047 = vmatpush1.bf16.msra.mxu0 %v1495
    %2048 = vmatprep.subr.bf16.mxu0 0
    %2049 = vmatpush1.bf16.msra.mxu0 %v1494
    %2050 = vmatprep.subr.bf16.mxu0 0
    %2051 = vmatpush2.bf16.msra.mxu0 %v1509
    %2052 = vmatprep.subr.bf16.mxu0 0
    %2053 = vmatpush2.bf16.msra.mxu0 %v1508
    %2054 = vmatprep.subr.bf16.mxu0 0
    %2055 = vmatpush2.bf16.msra.mxu0 %v1507
    %2056 = vmatprep.subr.bf16.mxu0 0
    %2057 = vmatpush2.bf16.msra.mxu0 %v1506
    %2058 = vmatprep.subr.bf16.mxu0 0
    %2059 = vmatpush2.bf16.msra.mxu0 %v1505
    %2060 = vmatprep.subr.bf16.mxu0 0
    %2061 = vmatpush2.bf16.msra.mxu0 %v1504
    %2062 = vmatprep.subr.bf16.mxu0 0
    %2063 = vmatpush2.bf16.msra.mxu0 %v1503
    %2064 = vmatprep.subr.bf16.mxu0 0
    %2065 = vmatpush2.bf16.msra.mxu0 %v1502
    %2066 = vmatprep.mubr.bf16.mxu0 %v522
    %2067 = vmatmul.mubr.bf16.gmra.mxu0 %v508
    %v2068 = vpop.f32.mrf.mxu0
    %v2069 = vadd.f32 %v2029, %v2068
    %v2070 = vpop.f32.mrf.mxu0
    %v2071 = vpop.f32.mrf.mxu0
    %v2072 = vpop.f32.mrf.mxu0
    %2073 = vdwg.mxu0
    %2074 = vmatprep.subr.bf16.mxu0 0
    %2075 = vmatpush1.bf16.msra.mxu0 %v1517
    %2076 = vmatprep.subr.bf16.mxu0 0
    %2077 = vmatpush1.bf16.msra.mxu0 %v1516
    %2078 = vmatprep.subr.bf16.mxu0 0
    %2079 = vmatpush1.bf16.msra.mxu0 %v1515
    %2080 = vmatprep.subr.bf16.mxu0 0
    %2081 = vmatpush1.bf16.msra.mxu0 %v1514
    %2082 = vmatprep.subr.bf16.mxu0 0
    %2083 = vmatpush1.bf16.msra.mxu0 %v1513
    %2084 = vmatprep.subr.bf16.mxu0 0
    %2085 = vmatpush1.bf16.msra.mxu0 %v1512
    %2086 = vmatprep.subr.bf16.mxu0 0
    %2087 = vmatpush1.bf16.msra.mxu0 %v1511
    %2088 = vmatprep.subr.bf16.mxu0 0
    %2089 = vmatpush1.bf16.msra.mxu0 %v1510
    %2090 = vmatprep.subr.bf16.mxu0 0
    %2091 = vmatpush2.bf16.msra.mxu0 %v1525
    %2092 = vmatprep.subr.bf16.mxu0 0
    %2093 = vmatpush2.bf16.msra.mxu0 %v1524
    %2094 = vmatprep.subr.bf16.mxu0 0
    %2095 = vmatpush2.bf16.msra.mxu0 %v1523
    %2096 = vmatprep.subr.bf16.mxu0 0
    %2097 = vmatpush2.bf16.msra.mxu0 %v1522
    %2098 = vmatprep.subr.bf16.mxu0 0
    %2099 = vmatpush2.bf16.msra.mxu0 %v1521
    %2100 = vmatprep.subr.bf16.mxu0 0
    %2101 = vmatpush2.bf16.msra.mxu0 %v1520
    %2102 = vmatprep.subr.bf16.mxu0 0
    %2103 = vmatpush2.bf16.msra.mxu0 %v1519
    %2104 = vmatprep.subr.bf16.mxu0 0
    %2105 = vmatpush2.bf16.msra.mxu0 %v1518
    %2106 = vmatprep.mubr.bf16.mxu0 %v526
    %2107 = vmatmul.mubr.bf16.gmra.mxu0 %v524
    %v2108 = vpop.f32.mrf.mxu0
    %v2109 = vadd.f32 %v2069, %v2108
    %v2110 = vpop.f32.mrf.mxu0
    %v2111 = vpop.f32.mrf.mxu0
    %v2112 = vpop.f32.mrf.mxu0
    %2113 = vdwg.mxu0
    %2114 = vmatprep.subr.bf16.mxu0 0
    %2115 = vmatpush1.bf16.msra.mxu0 %v1533
    %2116 = vmatprep.subr.bf16.mxu0 0
    %2117 = vmatpush1.bf16.msra.mxu0 %v1532
    %2118 = vmatprep.subr.bf16.mxu0 0
    %2119 = vmatpush1.bf16.msra.mxu0 %v1531
    %2120 = vmatprep.subr.bf16.mxu0 0
    %2121 = vmatpush1.bf16.msra.mxu0 %v1530
    %2122 = vmatprep.subr.bf16.mxu0 0
    %2123 = vmatpush1.bf16.msra.mxu0 %v1529
    %2124 = vmatprep.subr.bf16.mxu0 0
    %2125 = vmatpush1.bf16.msra.mxu0 %v1528
    %2126 = vmatprep.subr.bf16.mxu0 0
    %2127 = vmatpush1.bf16.msra.mxu0 %v1527
    %2128 = vmatprep.subr.bf16.mxu0 0
    %2129 = vmatpush1.bf16.msra.mxu0 %v1526
    %2130 = vmatprep.subr.bf16.mxu0 0
    %2131 = vmatpush2.bf16.msra.mxu0 %v1541
    %2132 = vmatprep.subr.bf16.mxu0 0
    %2133 = vmatpush2.bf16.msra.mxu0 %v1540
    %2134 = vmatprep.subr.bf16.mxu0 0
    %2135 = vmatpush2.bf16.msra.mxu0 %v1539
    %2136 = vmatprep.subr.bf16.mxu0 0
    %2137 = vmatpush2.bf16.msra.mxu0 %v1538
    %2138 = vmatprep.subr.bf16.mxu0 0
    %2139 = vmatpush2.bf16.msra.mxu0 %v1537
    %2140 = vmatprep.subr.bf16.mxu0 0
    %2141 = vmatpush2.bf16.msra.mxu0 %v1536
    %2142 = vmatprep.subr.bf16.mxu0 0
    %2143 = vmatpush2.bf16.msra.mxu0 %v1535
    %2144 = vmatprep.subr.bf16.mxu0 0
    %2145 = vmatpush2.bf16.msra.mxu0 %v1534
    %2146 = vmatprep.mubr.bf16.mxu0 %v564
    %2147 = vmatmul.mubr.bf16.gmra.mxu0 %v550
    %v2148 = vpop.f32.mrf.mxu0
    %v2149 = vadd.f32 %v2109, %v2148
    %v2150 = vpop.f32.mrf.mxu0
    %v2151 = vpop.f32.mrf.mxu0
    %v2152 = vpop.f32.mrf.mxu0
    %2153 = vdwg.mxu0
    %2154 = vmatprep.subr.bf16.mxu0 0
    %2155 = vmatpush1.bf16.msra.mxu0 %v1549
    %2156 = vmatprep.subr.bf16.mxu0 0
    %2157 = vmatpush1.bf16.msra.mxu0 %v1548
    %2158 = vmatprep.subr.bf16.mxu0 0
    %2159 = vmatpush1.bf16.msra.mxu0 %v1547
    %2160 = vmatprep.subr.bf16.mxu0 0
    %2161 = vmatpush1.bf16.msra.mxu0 %v1546
    %2162 = vmatprep.subr.bf16.mxu0 0
    %2163 = vmatpush1.bf16.msra.mxu0 %v1545
    %2164 = vmatprep.subr.bf16.mxu0 0
    %2165 = vmatpush1.bf16.msra.mxu0 %v1544
    %2166 = vmatprep.subr.bf16.mxu0 0
    %2167 = vmatpush1.bf16.msra.mxu0 %v1543
    %2168 = vmatprep.subr.bf16.mxu0 0
    %2169 = vmatpush1.bf16.msra.mxu0 %v1542
    %2170 = vmatprep.subr.bf16.mxu0 0
    %2171 = vmatpush2.bf16.msra.mxu0 %v1557
    %2172 = vmatprep.subr.bf16.mxu0 0
    %2173 = vmatpush2.bf16.msra.mxu0 %v1556
    %2174 = vmatprep.subr.bf16.mxu0 0
    %2175 = vmatpush2.bf16.msra.mxu0 %v1555
    %2176 = vmatprep.subr.bf16.mxu0 0
    %2177 = vmatpush2.bf16.msra.mxu0 %v1554
    %2178 = vmatprep.subr.bf16.mxu0 0
    %2179 = vmatpush2.bf16.msra.mxu0 %v1553
    %2180 = vmatprep.subr.bf16.mxu0 0
    %2181 = vmatpush2.bf16.msra.mxu0 %v1552
    %2182 = vmatprep.subr.bf16.mxu0 0
    %2183 = vmatpush2.bf16.msra.mxu0 %v1551
    %2184 = vmatprep.subr.bf16.mxu0 0
    %2185 = vmatpush2.bf16.msra.mxu0 %v1550
    %2186 = vmatprep.mubr.bf16.mxu0 %v574
    %2187 = vmatmul.mubr.bf16.gmra.mxu0 %v572
    %v2188 = vpop.f32.mrf.mxu0
    %v2189 = vadd.f32 %v2149, %v2188
    %v2190 = vpop.f32.mrf.mxu0
    %v2191 = vpop.f32.mrf.mxu0
    %v2192 = vpop.f32.mrf.mxu0
    %2193 = vdwg.mxu0
    %2194 = vmatprep.subr.bf16.mxu0 0
    %2195 = vmatpush1.bf16.msra.mxu0 %v1565
    %2196 = vmatprep.subr.bf16.mxu0 0
    %2197 = vmatpush1.bf16.msra.mxu0 %v1564
    %2198 = vmatprep.subr.bf16.mxu0 0
    %2199 = vmatpush1.bf16.msra.mxu0 %v1563
    %2200 = vmatprep.subr.bf16.mxu0 0
    %2201 = vmatpush1.bf16.msra.mxu0 %v1562
    %2202 = vmatprep.subr.bf16.mxu0 0
    %2203 = vmatpush1.bf16.msra.mxu0 %v1561
    %2204 = vmatprep.subr.bf16.mxu0 0
    %2205 = vmatpush1.bf16.msra.mxu0 %v1560
    %2206 = vmatprep.subr.bf16.mxu0 0
    %2207 = vmatpush1.bf16.msra.mxu0 %v1559
    %2208 = vmatprep.subr.bf16.mxu0 0
    %2209 = vmatpush1.bf16.msra.mxu0 %v1558
    %2210 = vmatprep.subr.bf16.mxu0 0
    %2211 = vmatpush2.bf16.msra.mxu0 %v1573
    %2212 = vmatprep.subr.bf16.mxu0 0
    %2213 = vmatpush2.bf16.msra.mxu0 %v1572
    %2214 = vmatprep.subr.bf16.mxu0 0
    %2215 = vmatpush2.bf16.msra.mxu0 %v1571
    %2216 = vmatprep.subr.bf16.mxu0 0
    %2217 = vmatpush2.bf16.msra.mxu0 %v1570
    %2218 = vmatprep.subr.bf16.mxu0 0
    %2219 = vmatpush2.bf16.msra.mxu0 %v1569
    %2220 = vmatprep.subr.bf16.mxu0 0
    %2221 = vmatpush2.bf16.msra.mxu0 %v1568
    %2222 = vmatprep.subr.bf16.mxu0 0
    %2223 = vmatpush2.bf16.msra.mxu0 %v1567
    %2224 = vmatprep.subr.bf16.mxu0 0
    %2225 = vmatpush2.bf16.msra.mxu0 %v1566
    %2226 = vmatprep.mubr.bf16.mxu0 %v571
    %2227 = vmatmul.mubr.bf16.gmra.mxu0 %v557
    %v2228 = vpop.f32.mrf.mxu0
    %v2229 = vadd.f32 %v2189, %v2228
    %v2230 = vpop.f32.mrf.mxu0
    %v2231 = vpop.f32.mrf.mxu0
    %v2232 = vpop.f32.mrf.mxu0
    %2233 = vdwg.mxu0
    %2234 = vmatprep.subr.bf16.mxu0 0
    %2235 = vmatpush1.bf16.msra.mxu0 %v1581
    %2236 = vmatprep.subr.bf16.mxu0 0
    %2237 = vmatpush1.bf16.msra.mxu0 %v1580
    %2238 = vmatprep.subr.bf16.mxu0 0
    %2239 = vmatpush1.bf16.msra.mxu0 %v1579
    %2240 = vmatprep.subr.bf16.mxu0 0
    %2241 = vmatpush1.bf16.msra.mxu0 %v1578
    %2242 = vmatprep.subr.bf16.mxu0 0
    %2243 = vmatpush1.bf16.msra.mxu0 %v1577
    %2244 = vmatprep.subr.bf16.mxu0 0
    %2245 = vmatpush1.bf16.msra.mxu0 %v1576
    %2246 = vmatprep.subr.bf16.mxu0 0
    %2247 = vmatpush1.bf16.msra.mxu0 %v1575
    %2248 = vmatprep.subr.bf16.mxu0 0
    %2249 = vmatpush1.bf16.msra.mxu0 %v1574
    %2250 = vmatprep.subr.bf16.mxu0 0
    %2251 = vmatpush2.bf16.msra.mxu0 %v1589
    %2252 = vmatprep.subr.bf16.mxu0 0
    %2253 = vmatpush2.bf16.msra.mxu0 %v1588
    %2254 = vmatprep.subr.bf16.mxu0 0
    %2255 = vmatpush2.bf16.msra.mxu0 %v1587
    %2256 = vmatprep.subr.bf16.mxu0 0
    %2257 = vmatpush2.bf16.msra.mxu0 %v1586
    %2258 = vmatprep.subr.bf16.mxu0 0
    %2259 = vmatpush2.bf16.msra.mxu0 %v1585
    %2260 = vmatprep.subr.bf16.mxu0 0
    %2261 = vmatpush2.bf16.msra.mxu0 %v1584
    %2262 = vmatprep.subr.bf16.mxu0 0
    %2263 = vmatpush2.bf16.msra.mxu0 %v1583
    %2264 = vmatprep.subr.bf16.mxu0 0
    %2265 = vmatpush2.bf16.msra.mxu0 %v1582
    %2266 = vmatprep.mubr.bf16.mxu0 %v575
    %2267 = vmatmul.mubr.bf16.gmra.mxu0 %v573
    %v2268 = vpop.f32.mrf.mxu0
    %v2269 = vadd.f32 %v2229, %v2268
    %v2270 = vpop.f32.mrf.mxu0
    %v2271 = vpop.f32.mrf.mxu0
    %v2272 = vpop.f32.mrf.mxu0
    %2273 = vdwg.mxu0
    %2274 = vmatprep.subr.bf16.mxu0 0
    %2275 = vmatpush1.bf16.msra.mxu0 0
    %2276 = vmatprep.subr.bf16.mxu0 0
    %2277 = vmatpush1.bf16.msra.mxu0 0
    %2278 = vmatprep.subr.bf16.mxu0 0
    %2279 = vmatpush1.bf16.msra.mxu0 0
    %2280 = vmatprep.subr.bf16.mxu0 0
    %2281 = vmatpush1.bf16.msra.mxu0 0
    %2282 = vmatprep.subr.bf16.mxu0 0
    %2283 = vmatpush1.bf16.msra.mxu0 %v1593
    %2284 = vmatprep.subr.bf16.mxu0 0
    %2285 = vmatpush1.bf16.msra.mxu0 %v1592
    %2286 = vmatprep.subr.bf16.mxu0 0
    %2287 = vmatpush1.bf16.msra.mxu0 %v1591
    %2288 = vmatprep.subr.bf16.mxu0 0
    %2289 = vmatpush1.bf16.msra.mxu0 %v1590
    %2290 = vmatprep.subr.bf16.mxu0 0
    %2291 = vmatpush2.bf16.msra.mxu0 0
    %2292 = vmatprep.subr.bf16.mxu0 0
    %2293 = vmatpush2.bf16.msra.mxu0 0
    %2294 = vmatprep.subr.bf16.mxu0 0
    %2295 = vmatpush2.bf16.msra.mxu0 0
    %2296 = vmatprep.subr.bf16.mxu0 0
    %2297 = vmatpush2.bf16.msra.mxu0 0
    %2298 = vmatprep.subr.bf16.mxu0 0
    %2299 = vmatpush2.bf16.msra.mxu0 0
    %2300 = vmatprep.subr.bf16.mxu0 0
    %2301 = vmatpush2.bf16.msra.mxu0 0
    %2302 = vmatprep.subr.bf16.mxu0 0
    %2303 = vmatpush2.bf16.msra.mxu0 0
    %2304 = vmatprep.subr.bf16.mxu0 0
    %2305 = vmatpush2.bf16.msra.mxu0 0
    %2306 = vmatprep.mubr.bf16.mxu0 0
    %2307 = vmatmul.mubr.bf16.gmra.mxu0 %v1792
    %v2308 = vpop.f32.mrf.mxu0
    %v2309 = vadd.f32 %v2269, %v2308
    %v2310 = vpop.f32.mrf.mxu0
    %v2311 = vpop.f32.mrf.mxu0
    %v2312 = vpop.f32.mrf.mxu0
    %2313 = vdwg.mxu0
    %v2314 = vmax.f32 %v2309, 0.0
    %v2315 = vld [vmem:[%s3] sm:$0xf]
    %v2316 = vld [vmem:[%s3 + $0x4] sm:$0xf]
    %v2317 = vld [vmem:[%s3 + $0x8] sm:$0xf]
    %v2318 = vld [vmem:[%s3 + $0xc] sm:$0xf]
    %v2319 = vld [vmem:[%s3 + $0x10] sm:$0xf]
    %v2320 = vld [vmem:[%s3 + $0x14] sm:$0xf]
    %v2321 = vld [vmem:[%s3 + $0x18] sm:$0xf]
    %v2322 = vld [vmem:[%s3 + $0x1c] sm:$0xf]
    %v2323 = vunpack.c.l.bf16 %v2315
    %v2324 = vunpack.c.l.bf16 %v2316
    %v2325 = vunpack.c.l.bf16 %v2317
    %v2326 = vunpack.c.l.bf16 %v2318
    %v2327 = vunpack.c.l.bf16 %v2319
    %v2328 = vunpack.c.l.bf16 %v2320
    %v2329 = vunpack.c.l.bf16 %v2321
    %v2330 = vunpack.c.l.bf16 %v2322
    %v2331 = vld [vmem:[%s4] sm:$0x1]
    %v2333 = vlaneseq
    %v2334 = vshrl.u32 %v2333, 7
    %v2335 = vsub.s32 0, %v2334
    %v2336 = vrot.slane %v2331, %v2335
    %v2339 = vsel %vm1790, %v2314, 0
    %2341 = vmatprep.subr.mxu0 0.0
    %2342 = vmatpush1.msra.mxu0 0.0
    %2343 = vmatprep.subr.mxu0 0.0
    %2344 = vmatpush1.msra.mxu0 0.0
    %2345 = vmatprep.subr.mxu0 0.0
    %2346 = vmatpush1.msra.mxu0 0.0
    %2347 = vmatprep.subr.mxu0 0.0
    %2348 = vmatpush1.msra.mxu0 0.0
    %2349 = vmatprep.subr.mxu0 0.0
    %2350 = vmatpush1.msra.mxu0 0.0
    %2351 = vmatprep.subr.mxu0 0.0
    %2352 = vmatpush1.msra.mxu0 0.0
    %2353 = vmatprep.subr.mxu0 0.0
    %2354 = vmatpush1.msra.mxu0 0.0
    %2355 = vmatprep.subr.mxu0 0.0
    %2356 = vmatpush1.msra.mxu0 0.0
    %2357 = vmatprep.subr.mxu0 0.0
    %2358 = vmatpush1.msra.mxu0 %v2330
    %2359 = vmatprep.subr.mxu0 0.0
    %2360 = vmatpush1.msra.mxu0 %v2329
    %2361 = vmatprep.subr.mxu0 0.0
    %2362 = vmatpush1.msra.mxu0 %v2328
    %2363 = vmatprep.subr.mxu0 0.0
    %2364 = vmatpush1.msra.mxu0 %v2327
    %2365 = vmatprep.subr.mxu0 0.0
    %2366 = vmatpush1.msra.mxu0 %v2326
    %2367 = vmatprep.subr.mxu0 0.0
    %2368 = vmatpush1.msra.mxu0 %v2325
    %2369 = vmatprep.subr.mxu0 0.0
    %2370 = vmatpush1.msra.mxu0 %v2324
    %2371 = vmatprep.subr.mxu0 0.0
    %2372 = vmatpush1.msra.mxu0 %v2323
    %2373 = vmatprep.subr.mxu0 0.0
    %2374 = vmatpush2.msra.mxu0 0.0
    %2375 = vmatprep.subr.mxu0 0.0
    %2376 = vmatpush2.msra.mxu0 0.0
    %2377 = vmatprep.subr.mxu0 0.0
    %2378 = vmatpush2.msra.mxu0 0.0
    %2379 = vmatprep.subr.mxu0 0.0
    %2380 = vmatpush2.msra.mxu0 0.0
    %2381 = vmatprep.subr.mxu0 0.0
    %2382 = vmatpush2.msra.mxu0 0.0
    %2383 = vmatprep.subr.mxu0 0.0
    %2384 = vmatpush2.msra.mxu0 0.0
    %2385 = vmatprep.subr.mxu0 0.0
    %2386 = vmatpush2.msra.mxu0 0.0
    %2387 = vmatprep.subr.mxu0 0.0
    %2388 = vmatpush2.msra.mxu0 0.0
    %2389 = vmatprep.subr.mxu0 0.0
    %2390 = vmatpush2.msra.mxu0 0.0
    %2391 = vmatprep.subr.mxu0 0.0
    %2392 = vmatpush2.msra.mxu0 0.0
    %2393 = vmatprep.subr.mxu0 0.0
    %2394 = vmatpush2.msra.mxu0 0.0
    %2395 = vmatprep.subr.mxu0 0.0
    %2396 = vmatpush2.msra.mxu0 0.0
    %2397 = vmatprep.subr.mxu0 0.0
    %2398 = vmatpush2.msra.mxu0 0.0
    %2399 = vmatprep.subr.mxu0 0.0
    %2400 = vmatpush2.msra.mxu0 0.0
    %2401 = vmatprep.subr.mxu0 0.0
    %2402 = vmatpush2.msra.mxu0 0.0
    %2403 = vmatprep.subr.mxu0 0.0
    %2404 = vmatpush2.msra.mxu0 0.0
    %2405 = vmatprep.mubr.f32.mxu0 0.0
    %2406 = vmatmul.mubr.f32.gmra.mxu0 %v2339
    %v2407 = vpop.f32.mrf.mxu0
    %v2408 = vadd.f32 %v2336, %v2407
    %v2409 = vpop.f32.mrf.mxu0
    %2410 = vdwg.mxu0
    %vm2411 = vcmask 9216
    %2412 = vst.msk [vmem:[#allocation2] sm:$0x3] %vm2411, %v2408
    // Predicated region
    $region22: #{vgg_forward.3} parent=1 // pred_check
      _
    $region23: #{vgg_forward.3} parent=1 // pred_check_branch
      %2414 = sbr.rel (0) target = $region25
    $region24: #{vgg_forward.3} parent=1 // pred_region
      %s2416 = ssub.s32 32, 32
      %2417 = vsyncadd [#allocation3], %s2416
      %s2419 = sshll.u32 [#allocation2], 4
      %s2420 = int_to_ptr.vmem [resolvable:$true] %s2419
      %2422 = dma.vmem_to_hbm [thread:$0]  %s2420, 32, %s5, [#allocation3]
    $region25: #{vgg_forward.3} parent=1 // pred_fallthru
      _
    // Predicated region
    $region26: #{vgg_forward.3} parent=1 // pred_check
      _
    $region27: #{vgg_forward.3} parent=1 // pred_check_branch
      %2424 = sbr.rel (0) target = $region29
    $region28: #{vgg_forward.3} parent=1 // pred_region
      %2425 = dma.done [#allocation3], 32
    $region29: #{vgg_forward.3} parent=1 // pred_fallthru
      _
    %2426 = vsyncpa [#allocation3], 1

// kernel: vgg_forward.2
$region0: #{vgg_forward.2}
  #allocation0 [shape = 'u32[]', space=smem, size = 0x4, offset = 0x4, fixed_abs, tag = 'smem constant byte address 0x4 - core index']
  #allocation1 [shape = 'u32[144,128]{1,0:T(1,128)}', space=vmem, size = 0x12000, scoped, tag = 'internal scratch']
  %s0 = inlined_call_operand.vmem [shape: bf16[2,4,384], index: 0, kind: input, shape index: {}]
  %s1 = inlined_call_operand.vmem [shape: bf16[9,64,4], index: 1, kind: input, shape index: {}]
  %s2 = inlined_call_operand.vmem [shape: f32[64,1], index: 2, kind: input, shape index: {}]
  %s3 = inlined_call_operand.vmem [shape: f32[4,288,64], index: 3, kind: input, shape index: {}]
  %s4 = inlined_call_operand.vmem [shape: f32[64,49], index: 4, kind: input, shape index: {}]
  %s5 = inlined_call_operand.vmem [shape: bf16[2,64,49], index: 5, kind: output, shape index: {}]
  %s6 = sld [smem:[#allocation0]]
  $region53: #{vgg_forward.2} parent=0
    _
  %s8 = ssub.s32 1, %s6
  %s9 = scalar_select 0, %s8, %s6
  loop: start=0, step=1, limit=4
  $region2: #{vgg_forward.2} parent=0 // loop_pre_header
    _
  $region3: #{vgg_forward.2} parent=0 // loop_header
    %s11 = sphi 0, %s15
    %p12 = scmp.ge.s32.totalorder %s11, 4
    %s21 = sphi 0, %s23
    %s24 = sphi 0, %s21
    %s25 = sphi 0, %s24
    %s41 = sphi 0, %s25
    %s45 = sphi 0, %s45
    %s47 = sphi 0, %s45
    %s48 = sphi 0, %s47
    %s62 = sphi 0, %s48
    %s66 = sphi 0, %s66
    %s68 = sphi 0, %s66
    %s69 = sphi 0, %s68
    %s83 = sphi 0, %s69
    %s87 = sphi 0, %s87
    %s89 = sphi 0, %s87
    %s90 = sphi 0, %s89
    %s104 = sphi 0, %s90
    %s108 = sphi 0, %s108
    %s110 = sphi 0, %s108
    %s111 = sphi 0, %s110
    %s125 = sphi 0, %s111
    %s131 = sphi 0, %s133
    %s134 = sphi 0, %s131
    %s135 = sphi 0, %s134
    %s151 = sphi 0, %s135
  $region4: #{vgg_forward.2} parent=0 // loop_header_branch
    %14 = sbr.rel (%p12) target = $region8
  $region5: #{vgg_forward.2} parent=0 // loop_body
    %s16 = ssub.s32 %s11, 1
    %s17 = ssub.s32 %s11, 2
    %s18 = sadd.s32 %s11, 1
    %s19 = ssub.s32 %s11, %s18
    %p20 = scmp.eq.s32.totalorder %s19, 0
    %s22 = sadd.s32 %s21, 1
    %s23 = scalar_select %p20, %s21, %s22
    %p26 = pneg %p20
    %p27 = scmp.eq.s32.totalorder %s11, 1
    %p28 = por %p26, %p27
    %p29 = scmp.ne.s32.totalorder %s21, %s24
    %p30 = scmp.eq.s32.totalorder %s11, 0
    %p31 = por %p29, %p30
    %p32 = scmp.ne.s32.totalorder %s21, %s24
    %p33 = scmp.eq.s32.totalorder %s16, 1
    %p34 = por %p32, %p33
    %p35 = scmp.ne.s32.totalorder %s24, %s25
    %p36 = scmp.eq.s32.totalorder %s16, 0
    %p37 = por %p35, %p36
    %p38 = scmp.ne.s32.totalorder %s24, %s25
    %p39 = scmp.eq.s32.totalorder %s17, 1
    %p40 = por %p38, %p39
    %p42 = scmp.ne.s32.totalorder %s25, %s41
    %p43 = scmp.eq.s32.totalorder %s17, 0
    %p44 = por %p42, %p43
    %s46 = sadd.s32 %s45, 1
    %p49 = scmp.eq.s32.totalorder %s11, 1
    %p50 = scmp.ne.s32.totalorder %s45, %s47
    %p51 = scmp.eq.s32.totalorder %s11, 0
    %p52 = por %p50, %p51
    %p53 = scmp.ne.s32.totalorder %s45, %s47
    %p54 = scmp.eq.s32.totalorder %s16, 1
    %p55 = por %p53, %p54
    %p56 = scmp.ne.s32.totalorder %s47, %s48
    %p57 = scmp.eq.s32.totalorder %s16, 0
    %p58 = por %p56, %p57
    %p59 = scmp.ne.s32.totalorder %s47, %s48
    %p60 = scmp.eq.s32.totalorder %s17, 1
    %p61 = por %p59, %p60
    %p63 = scmp.ne.s32.totalorder %s48, %s62
    %p64 = scmp.eq.s32.totalorder %s17, 0
    %p65 = por %p63, %p64
    %s67 = sadd.s32 %s66, 1
    %p70 = scmp.eq.s32.totalorder %s11, 1
    %p71 = scmp.ne.s32.totalorder %s66, %s68
    %p72 = scmp.eq.s32.totalorder %s11, 0
    %p73 = por %p71, %p72
    %p74 = scmp.ne.s32.totalorder %s66, %s68
    %p75 = scmp.eq.s32.totalorder %s16, 1
    %p76 = por %p74, %p75
    %p77 = scmp.ne.s32.totalorder %s68, %s69
    %p78 = scmp.eq.s32.totalorder %s16, 0
    %p79 = por %p77, %p78
    %p80 = scmp.ne.s32.totalorder %s68, %s69
    %p81 = scmp.eq.s32.totalorder %s17, 1
    %p82 = por %p80, %p81
    %p84 = scmp.ne.s32.totalorder %s69, %s83
    %p85 = scmp.eq.s32.totalorder %s17, 0
    %p86 = por %p84, %p85
    %s88 = sadd.s32 %s87, 1
    %p91 = scmp.eq.s32.totalorder %s11, 1
    %p92 = scmp.ne.s32.totalorder %s87, %s89
    %p93 = scmp.eq.s32.totalorder %s11, 0
    %p94 = por %p92, %p93
    %p95 = scmp.ne.s32.totalorder %s87, %s89
    %p96 = scmp.eq.s32.totalorder %s16, 1
    %p97 = por %p95, %p96
    %p98 = scmp.ne.s32.totalorder %s89, %s90
    %p99 = scmp.eq.s32.totalorder %s16, 0
    %p100 = por %p98, %p99
    %p101 = scmp.ne.s32.totalorder %s89, %s90
    %p102 = scmp.eq.s32.totalorder %s17, 1
    %p103 = por %p101, %p102
    %p105 = scmp.ne.s32.totalorder %s90, %s104
    %p106 = scmp.eq.s32.totalorder %s17, 0
    %p107 = por %p105, %p106
    %s109 = sadd.s32 %s108, 1
    %p112 = scmp.eq.s32.totalorder %s11, 1
    %p113 = scmp.ne.s32.totalorder %s108, %s110
    %p114 = scmp.eq.s32.totalorder %s11, 0
    %p115 = por %p113, %p114
    %p116 = scmp.ne.s32.totalorder %s108, %s110
    %p117 = scmp.eq.s32.totalorder %s16, 1
    %p118 = por %p116, %p117
    %p119 = scmp.ne.s32.totalorder %s110, %s111
    %p120 = scmp.eq.s32.totalorder %s16, 0
    %p121 = por %p119, %p120
    %p122 = scmp.ne.s32.totalorder %s110, %s111
    %p123 = scmp.eq.s32.totalorder %s17, 1
    %p124 = por %p122, %p123
    %p126 = scmp.ne.s32.totalorder %s111, %s125
    %p127 = scmp.eq.s32.totalorder %s17, 0
    %p128 = por %p126, %p127
    %s129 = ssub.s32 %s11, %s18
    %p130 = scmp.eq.s32.totalorder %s129, 0
    %s132 = sadd.s32 %s131, 1
    %s133 = scalar_select %p130, %s131, %s132
    %p136 = pneg %p130
    %p137 = scmp.eq.s32.totalorder %s11, 1
    %p138 = por %p136, %p137
    %p139 = scmp.ne.s32.totalorder %s131, %s134
    %p140 = scmp.eq.s32.totalorder %s11, 0
    %p141 = por %p139, %p140
    %p142 = scmp.ne.s32.totalorder %s131, %s134
    %p143 = scmp.eq.s32.totalorder %s16, 1
    %p144 = por %p142, %p143
    %p145 = scmp.ne.s32.totalorder %s134, %s135
    %p146 = scmp.eq.s32.totalorder %s16, 0
    %p147 = por %p145, %p146
    %p148 = scmp.ne.s32.totalorder %s134, %s135
    %p149 = scmp.eq.s32.totalorder %s17, 1
    %p150 = por %p148, %p149
    %p152 = scmp.ne.s32.totalorder %s135, %s151
    %p153 = scmp.eq.s32.totalorder %s17, 0
    %p154 = por %p152, %p153
    %p155 = scmp.le.s32.totalorder 1, %s11
    %p156 = scmp.lt.s32.totalorder %s11, 3
    %p157 = pnand %p155, %p156
    %p158 = pneg %p157
    // Predicated region
    $region9: #{vgg_forward.2} parent=5 // pred_check
      _
    $region10: #{vgg_forward.2} parent=5 // pred_check_branch
      %160 = sbr.rel (%p157) target = $region12
    $region11: #{vgg_forward.2} parent=5 // pred_region
      %s161 = ssub.s32 %s11, 1
      // Predicated region
      $region13: #{vgg_forward.2} parent=11 // pred_check
        %p162 = pneg %p58
      $region14: #{vgg_forward.2} parent=11 // pred_check_branch
        %164 = sbr.rel (%p162) target = $region16
      $region15: #{vgg_forward.2} parent=11 // pred_region
        _
      $region16: #{vgg_forward.2} parent=11 // pred_fallthru
        _
      // Predicated region
      $region17: #{vgg_forward.2} parent=11 // pred_check
        %p165 = pneg %p79
      $region18: #{vgg_forward.2} parent=11 // pred_check_branch
        %167 = sbr.rel (%p165) target = $region20
      $region19: #{vgg_forward.2} parent=11 // pred_region
        _
      $region20: #{vgg_forward.2} parent=11 // pred_fallthru
        _
      // Predicated region
      $region21: #{vgg_forward.2} parent=11 // pred_check
        %p168 = pneg %p100
      $region22: #{vgg_forward.2} parent=11 // pred_check_branch
        %170 = sbr.rel (%p168) target = $region24
      $region23: #{vgg_forward.2} parent=11 // pred_region
        _
      $region24: #{vgg_forward.2} parent=11 // pred_fallthru
        _
      // Predicated region
      $region25: #{vgg_forward.2} parent=11 // pred_check
        %p171 = pneg %p121
      $region26: #{vgg_forward.2} parent=11 // pred_check_branch
        %173 = sbr.rel (%p171) target = $region28
      $region27: #{vgg_forward.2} parent=11 // pred_region
        _
      $region28: #{vgg_forward.2} parent=11 // pred_fallthru
        _
    $region12: #{vgg_forward.2} parent=5 // pred_fallthru
      _
    %p174 = scmp.lt.s32.totalorder %s11, 2
    // Predicated region
    $region29: #{vgg_forward.2} parent=5 // pred_check
      %p175 = pneg %p174
    $region30: #{vgg_forward.2} parent=5 // pred_check_branch
      %177 = sbr.rel (%p175) target = $region32
    $region31: #{vgg_forward.2} parent=5 // pred_region
      // Predicated region
      $region33: #{vgg_forward.2} parent=31 // pred_check
        %p178 = pneg %p31
      $region34: #{vgg_forward.2} parent=31 // pred_check_branch
        %180 = sbr.rel (%p178) target = $region36
      $region35: #{vgg_forward.2} parent=31 // pred_region
        %p181 = scmp.lt.s32.totalorder %s11, 1
        %s182 = scalar_select %p181, %s11, 1
        %s183 = smul.addr %s182, 3
        %s184 = smul.addr %s183, 2
        %s185 = scalar_lea.vmem %s0, %s184
      $region36: #{vgg_forward.2} parent=31 // pred_fallthru
        _
    $region32: #{vgg_forward.2} parent=5 // pred_fallthru
      _
    %p186 = scmp.le.s32.totalorder 1, %s11
    %p187 = scmp.lt.s32.totalorder %s11, 3
    %p188 = pnand %p186, %p187
    %p189 = pneg %p188
    // Predicated region
    $region37: #{vgg_forward.2} parent=5 // pred_check
      _
    $region38: #{vgg_forward.2} parent=5 // pred_check_branch
      %191 = sbr.rel (%p188) target = $region40
    $region39: #{vgg_forward.2} parent=5 // pred_region
      %s192 = ssub.s32 %s11, 1
      %p193 = scmp.lt.s32.totalorder %s16, 1
      %s194 = scalar_select %p193, %s16, 1
      %s195 = smul.addr %s194, 3
      %s196 = smul.addr %s195, 2
      %s197 = scalar_lea.vmem %s0, %s196
      %p198 = pneg %p37
      %p199 = pneg %p34
      %p200 = pneg %p58
      %p201 = pneg %p55
      %p202 = pneg %p79
      %p203 = pneg %p76
      %p204 = pneg %p100
      %p205 = pneg %p97
      %p206 = pneg %p121
      %p207 = pneg %p118
      %p208 = pneg %p147
      %p209 = pneg %p144
      %p210 = scmp.lt.s32.totalorder %s16, 1
      %s211 = scalar_select %p210, %s16, 1
      %s212 = smul.addr %s211, 8
      %s213 = smul.addr %s212, 4
      %s214 = scalar_lea.vmem %s5, %s213
      %p215 = scmp.lt.s32.totalorder %s16, 1
      %s216 = scalar_select %p215, %s16, 1
      %s217 = smul.addr %s216, 3
      %s218 = smul.addr %s217, 2
      %s219 = scalar_lea.vmem %s0, %s218
      %p220 = scmp.lt.s32.totalorder %s16, 1
      %s221 = scalar_select %p220, %s16, 1
      %s222 = smul.addr %s221, 8
      %s223 = smul.addr %s222, 4
      %s224 = scalar_lea.vmem %s5, %s223
      %v226 = vld [vmem:[%s219] sm:$0x3f]
      %v227 = vld [vmem:[%s1] sm:$0xf]
      %v228 = vld [vmem:[%s1 + $0x4] sm:$0xf]
      %v229 = vld [vmem:[%s1 + $0x8] sm:$0xf]
      %v230 = vld [vmem:[%s1 + $0xc] sm:$0xf]
      %v231 = vld [vmem:[%s1 + $0x10] sm:$0xf]
      %v232 = vld [vmem:[%s1 + $0x14] sm:$0xf]
      %v233 = vld [vmem:[%s1 + $0x18] sm:$0xf]
      %v234 = vld [vmem:[%s1 + $0x1c] sm:$0xf]
      %s235 = scalar_lea.vmem %s1, 32
      %v236 = vld [vmem:[%s235] sm:$0xf]
      %v237 = vld [vmem:[%s235 + $0x4] sm:$0xf]
      %v238 = vld [vmem:[%s235 + $0x8] sm:$0xf]
      %v239 = vld [vmem:[%s235 + $0xc] sm:$0xf]
      %v240 = vld [vmem:[%s235 + $0x10] sm:$0xf]
      %v241 = vld [vmem:[%s235 + $0x14] sm:$0xf]
      %v242 = vld [vmem:[%s235 + $0x18] sm:$0xf]
      %v243 = vld [vmem:[%s235 + $0x1c] sm:$0xf]
      %v252 = vunpack.c.l.b16 %v236
      %v253 = vunpack.c.l.b16 %v237
      %v254 = vunpack.c.l.b16 %v238
      %v255 = vunpack.c.l.b16 %v239
      %v256 = vunpack.c.l.b16 %v240
      %v257 = vunpack.c.l.b16 %v241
      %v258 = vunpack.c.l.b16 %v242
      %v259 = vunpack.c.l.b16 %v243
      %v260 = vpack.c.b16 %v253, %v252
      %v261 = vpack.c.b16 %v255, %v254
      %v262 = vpack.c.b16 %v257, %v256
      %v263 = vpack.c.b16 %v259, %v258
      %v265 = vcombine.high %v226, %v226
      %v267 = vunpack.c.l.s4 1983009808
      %v268 = vunpack.c.0.s8 %v267
      %v269 = vlaneseq
      %v270 = vshrl.u32 %v269, 7
      %v271 = vsub.s32 %v268, %v270
      %v272 = vrot.slane %v226, %v271
      %v274 = vunpack.c.l.s4 1983009808
      %v275 = vunpack.c.0.s8 %v274
      %v276 = vlaneseq
      %v277 = vshrl.u32 %v276, 7
      %v278 = vsub.s32 %v275, %v277
      %v279 = vrot.slane %v265, %v278
      %v280 = vcombine.high %v272, %v272
      %281 = vrot.lane.b32.xlu0 %v272, 127
      %v282 = vpop.permute.xlu0 %281
      %283 = vrot.lane.b32.xlu0 %v280, 127
      %v284 = vpop.permute.xlu0 %283
      %285 = vrot.lane.b32.xlu0 %v279, 127
      %v286 = vpop.permute.xlu0 %285
      %vm287 = vcmask 1039360
      %v288 = vsel %vm287, %v282, %v284
      %v289 = vsel %vm287, %v284, %v286
      %vm290 = vcmask 31744
      %v292 = vsel %vm290, %v260, 0
      %v295 = vsel %vm290, %v261, 0
      %v298 = vsel %vm290, %v262, 0
      %v301 = vsel %vm290, %v263, 0
      %vm303 = vcmask 1041408
      %v305 = vsel %vm303, %v288, 0
      %v308 = vsel %vm303, %v289, 0
      %v311 = vsel %vm303, %v286, 0
      %313 = vmatprep.subr.bf16.mxu0 0
      %314 = vmatpush1.bf16.msra.mxu0 0
      %315 = vmatprep.subr.bf16.mxu0 0
      %316 = vmatpush1.bf16.msra.mxu0 0
      %317 = vmatprep.subr.bf16.mxu0 0
      %318 = vmatpush1.bf16.msra.mxu0 0
      %319 = vmatprep.subr.bf16.mxu0 0
      %320 = vmatpush1.bf16.msra.mxu0 0
      %321 = vmatprep.subr.bf16.mxu0 0
      %322 = vmatpush1.bf16.msra.mxu0 0
      %323 = vmatprep.subr.bf16.mxu0 0
      %324 = vmatpush1.bf16.msra.mxu0 0
      %325 = vmatprep.subr.bf16.mxu0 0
      %326 = vmatpush1.bf16.msra.mxu0 0
      %327 = vmatprep.subr.bf16.mxu0 %v308
      %328 = vmatpush1.bf16.msra.mxu0 %v305
      %329 = vmatprep.subr.bf16.mxu0 0
      %330 = vmatpush2.bf16.msra.mxu0 0
      %331 = vmatprep.subr.bf16.mxu0 0
      %332 = vmatpush2.bf16.msra.mxu0 0
      %333 = vmatprep.subr.bf16.mxu0 0
      %334 = vmatpush2.bf16.msra.mxu0 0
      %335 = vmatprep.subr.bf16.mxu0 0
      %336 = vmatpush2.bf16.msra.mxu0 0
      %337 = vmatprep.subr.bf16.mxu0 0
      %338 = vmatpush2.bf16.msra.mxu0 0
      %339 = vmatprep.subr.bf16.mxu0 0
      %340 = vmatpush2.bf16.msra.mxu0 0
      %341 = vmatprep.subr.bf16.mxu0 0
      %342 = vmatpush2.bf16.msra.mxu0 0
      %343 = vmatprep.subr.bf16.mxu0 0
      %344 = vmatpush2.bf16.msra.mxu0 0
      %345 = vmatprep.mubr.bf16.mxu0 0
      %346 = vmatmul.mubr.bf16.gmra.mxu0 %v292
      %v347 = vpop.f32.mrf.mxu0
      %v348 = vadd.f32 0.0, %v347
      %v349 = vpop.f32.mrf.mxu0
      %v350 = vadd.f32 0.0, %v349
      %v351 = vpop.f32.mrf.mxu0
      %v352 = vadd.f32 0.0, %v351
      %v353 = vpop.f32.mrf.mxu0
      %v354 = vadd.f32 0.0, %v353
      %355 = vmatprep.mubr.bf16.mxu0 0
      %356 = vmatmul.mubr.bf16.gmra.mxu0 %v295
      %v357 = vpop.f32.mrf.mxu0
      %v358 = vadd.f32 0.0, %v357
      %v359 = vpop.f32.mrf.mxu0
      %v360 = vadd.f32 0.0, %v359
      %v361 = vpop.f32.mrf.mxu0
      %v362 = vadd.f32 0.0, %v361
      %v363 = vpop.f32.mrf.mxu0
      %v364 = vadd.f32 0.0, %v363
      %365 = vmatprep.mubr.bf16.mxu0 0
      %366 = vmatmul.mubr.bf16.gmra.mxu0 %v298
      %v367 = vpop.f32.mrf.mxu0
      %v368 = vadd.f32 0.0, %v367
      %v369 = vpop.f32.mrf.mxu0
      %v370 = vadd.f32 0.0, %v369
      %v371 = vpop.f32.mrf.mxu0
      %v372 = vadd.f32 0.0, %v371
      %v373 = vpop.f32.mrf.mxu0
      %v374 = vadd.f32 0.0, %v373
      %375 = vmatprep.mubr.bf16.mxu0 0
      %376 = vmatmul.mubr.bf16.gmra.mxu0 %v301
      %v377 = vpop.f32.mrf.mxu0
      %v378 = vadd.f32 0.0, %v377
      %v379 = vpop.f32.mrf.mxu0
      %v380 = vadd.f32 0.0, %v379
      %v381 = vpop.f32.mrf.mxu0
      %v382 = vadd.f32 0.0, %v381
      %v383 = vpop.f32.mrf.mxu0
      %v384 = vadd.f32 0.0, %v383
      %385 = vdwg.mxu0
      %386 = vmatprep.subr.bf16.mxu0 0
      %387 = vmatpush1.bf16.msra.mxu0 0
      %388 = vmatprep.subr.bf16.mxu0 0
      %389 = vmatpush1.bf16.msra.mxu0 0
      %390 = vmatprep.subr.bf16.mxu0 0
      %391 = vmatpush1.bf16.msra.mxu0 0
      %392 = vmatprep.subr.bf16.mxu0 0
      %393 = vmatpush1.bf16.msra.mxu0 0
      %394 = vmatprep.subr.bf16.mxu0 0
      %395 = vmatpush1.bf16.msra.mxu0 0
      %396 = vmatprep.subr.bf16.mxu0 0
      %397 = vmatpush1.bf16.msra.mxu0 0
      %398 = vmatprep.subr.bf16.mxu0 0
      %399 = vmatpush1.bf16.msra.mxu0 0
      %400 = vmatprep.subr.bf16.mxu0 0
      %401 = vmatpush1.bf16.msra.mxu0 %v311
      %402 = vmatprep.subr.bf16.mxu0 0
      %403 = vmatpush2.bf16.msra.mxu0 0
      %404 = vmatprep.subr.bf16.mxu0 0
      %405 = vmatpush2.bf16.msra.mxu0 0
      %406 = vmatprep.subr.bf16.mxu0 0
      %407 = vmatpush2.bf16.msra.mxu0 0
      %408 = vmatprep.subr.bf16.mxu0 0
      %409 = vmatpush2.bf16.msra.mxu0 0
      %410 = vmatprep.subr.bf16.mxu0 0
      %411 = vmatpush2.bf16.msra.mxu0 0
      %412 = vmatprep.subr.bf16.mxu0 0
      %413 = vmatpush2.bf16.msra.mxu0 0
      %414 = vmatprep.subr.bf16.mxu0 0
      %415 = vmatpush2.bf16.msra.mxu0 0
      %416 = vmatprep.subr.bf16.mxu0 0
      %417 = vmatpush2.bf16.msra.mxu0 0
      %418 = vmatprep.mubr.bf16.mxu0 0
      %419 = vmatmul.mubr.bf16.gmra.mxu0 %v292
      %v420 = vpop.f32.mrf.mxu0
      %v421 = vadd.f32 0.0, %v420
      %v422 = vpop.f32.mrf.mxu0
      %v423 = vpop.f32.mrf.mxu0
      %v424 = vadd.f32 0.0, %v423
      %v425 = vpop.f32.mrf.mxu0
      %426 = vmatprep.mubr.bf16.mxu0 0
      %427 = vmatmul.mubr.bf16.gmra.mxu0 %v295
      %v428 = vpop.f32.mrf.mxu0
      %v429 = vadd.f32 0.0, %v428
      %v430 = vpop.f32.mrf.mxu0
      %v431 = vpop.f32.mrf.mxu0
      %v432 = vadd.f32 0.0, %v431
      %v433 = vpop.f32.mrf.mxu0
      %434 = vmatprep.mubr.bf16.mxu0 0
      %435 = vmatmul.mubr.bf16.gmra.mxu0 %v298
      %v436 = vpop.f32.mrf.mxu0
      %v437 = vadd.f32 0.0, %v436
      %v438 = vpop.f32.mrf.mxu0
      %v439 = vpop.f32.mrf.mxu0
      %v440 = vadd.f32 0.0, %v439
      %v441 = vpop.f32.mrf.mxu0
      %442 = vmatprep.mubr.bf16.mxu0 0
      %443 = vmatmul.mubr.bf16.gmra.mxu0 %v301
      %v444 = vpop.f32.mrf.mxu0
      %v445 = vadd.f32 0.0, %v444
      %v446 = vpop.f32.mrf.mxu0
      %v447 = vpop.f32.mrf.mxu0
      %v448 = vadd.f32 0.0, %v447
      %v449 = vpop.f32.mrf.mxu0
      %450 = vdwg.mxu0
      %v459 = vunpack.c.l.b16 %v227
      %v460 = vunpack.c.l.b16 %v228
      %v461 = vunpack.c.l.b16 %v229
      %v462 = vunpack.c.l.b16 %v230
      %v463 = vunpack.c.l.b16 %v231
      %v464 = vunpack.c.l.b16 %v232
      %v465 = vunpack.c.l.b16 %v233
      %v466 = vunpack.c.l.b16 %v234
      %v467 = vpack.c.b16 %v460, %v459
      %v468 = vpack.c.b16 %v462, %v461
      %v469 = vpack.c.b16 %v464, %v463
      %v470 = vpack.c.b16 %v466, %v465
      %v472 = vsel %vm290, %v467, 0
      %v475 = vsel %vm290, %v468, 0
      %v478 = vsel %vm290, %v469, 0
      %v481 = vsel %vm290, %v470, 0
      %v484 = vsel %vm303, %v272, 0
      %v487 = vsel %vm303, %v280, 0
      %v490 = vsel %vm303, %v279, 0
      %492 = vmatprep.subr.bf16.mxu0 0
      %493 = vmatpush1.bf16.msra.mxu0 0
      %494 = vmatprep.subr.bf16.mxu0 0
      %495 = vmatpush1.bf16.msra.mxu0 0
      %496 = vmatprep.subr.bf16.mxu0 0
      %497 = vmatpush1.bf16.msra.mxu0 0
      %498 = vmatprep.subr.bf16.mxu0 0
      %499 = vmatpush1.bf16.msra.mxu0 0
      %500 = vmatprep.subr.bf16.mxu0 0
      %501 = vmatpush1.bf16.msra.mxu0 0
      %502 = vmatprep.subr.bf16.mxu0 0
      %503 = vmatpush1.bf16.msra.mxu0 0
      %504 = vmatprep.subr.bf16.mxu0 0
      %505 = vmatpush1.bf16.msra.mxu0 0
      %506 = vmatprep.subr.bf16.mxu0 %v487
      %507 = vmatpush1.bf16.msra.mxu0 %v484
      %508 = vmatprep.subr.bf16.mxu0 0
      %509 = vmatpush2.bf16.msra.mxu0 0
      %510 = vmatprep.subr.bf16.mxu0 0
      %511 = vmatpush2.bf16.msra.mxu0 0
      %512 = vmatprep.subr.bf16.mxu0 0
      %513 = vmatpush2.bf16.msra.mxu0 0
      %514 = vmatprep.subr.bf16.mxu0 0
      %515 = vmatpush2.bf16.msra.mxu0 0
      %516 = vmatprep.subr.bf16.mxu0 0
      %517 = vmatpush2.bf16.msra.mxu0 0
      %518 = vmatprep.subr.bf16.mxu0 0
      %519 = vmatpush2.bf16.msra.mxu0 0
      %520 = vmatprep.subr.bf16.mxu0 0
      %521 = vmatpush2.bf16.msra.mxu0 0
      %522 = vmatprep.subr.bf16.mxu0 0
      %523 = vmatpush2.bf16.msra.mxu0 0
      %524 = vmatprep.mubr.bf16.mxu0 0
      %525 = vmatmul.mubr.bf16.gmra.mxu0 %v472
      %v526 = vpop.f32.mrf.mxu0
      %v527 = vadd.f32 %v348, %v526
      %v528 = vpop.f32.mrf.mxu0
      %v529 = vadd.f32 %v350, %v528
      %v530 = vpop.f32.mrf.mxu0
      %v531 = vadd.f32 %v352, %v530
      %v532 = vpop.f32.mrf.mxu0
      %v533 = vadd.f32 %v354, %v532
      %534 = vmatprep.mubr.bf16.mxu0 0
      %535 = vmatmul.mubr.bf16.gmra.mxu0 %v475
      %v536 = vpop.f32.mrf.mxu0
      %v537 = vadd.f32 %v358, %v536
      %v538 = vpop.f32.mrf.mxu0
      %v539 = vadd.f32 %v360, %v538
      %v540 = vpop.f32.mrf.mxu0
      %v541 = vadd.f32 %v362, %v540
      %v542 = vpop.f32.mrf.mxu0
      %v543 = vadd.f32 %v364, %v542
      %544 = vmatprep.mubr.bf16.mxu0 0
      %545 = vmatmul.mubr.bf16.gmra.mxu0 %v478
      %v546 = vpop.f32.mrf.mxu0
      %v547 = vadd.f32 %v368, %v546
      %v548 = vpop.f32.mrf.mxu0
      %v549 = vadd.f32 %v370, %v548
      %v550 = vpop.f32.mrf.mxu0
      %v551 = vadd.f32 %v372, %v550
      %v552 = vpop.f32.mrf.mxu0
      %v553 = vadd.f32 %v374, %v552
      %554 = vmatprep.mubr.bf16.mxu0 0
      %555 = vmatmul.mubr.bf16.gmra.mxu0 %v481
      %v556 = vpop.f32.mrf.mxu0
      %v557 = vadd.f32 %v378, %v556
      %v558 = vpop.f32.mrf.mxu0
      %v559 = vadd.f32 %v380, %v558
      %v560 = vpop.f32.mrf.mxu0
      %v561 = vadd.f32 %v382, %v560
      %v562 = vpop.f32.mrf.mxu0
      %v563 = vadd.f32 %v384, %v562
      %564 = vdwg.mxu0
      %565 = vmatprep.subr.bf16.mxu0 0
      %566 = vmatpush1.bf16.msra.mxu0 0
      %567 = vmatprep.subr.bf16.mxu0 0
      %568 = vmatpush1.bf16.msra.mxu0 0
      %569 = vmatprep.subr.bf16.mxu0 0
      %570 = vmatpush1.bf16.msra.mxu0 0
      %571 = vmatprep.subr.bf16.mxu0 0
      %572 = vmatpush1.bf16.msra.mxu0 0
      %573 = vmatprep.subr.bf16.mxu0 0
      %574 = vmatpush1.bf16.msra.mxu0 0
      %575 = vmatprep.subr.bf16.mxu0 0
      %576 = vmatpush1.bf16.msra.mxu0 0
      %577 = vmatprep.subr.bf16.mxu0 0
      %578 = vmatpush1.bf16.msra.mxu0 0
      %579 = vmatprep.subr.bf16.mxu0 0
      %580 = vmatpush1.bf16.msra.mxu0 %v490
      %581 = vmatprep.subr.bf16.mxu0 0
      %582 = vmatpush2.bf16.msra.mxu0 0
      %583 = vmatprep.subr.bf16.mxu0 0
      %584 = vmatpush2.bf16.msra.mxu0 0
      %585 = vmatprep.subr.bf16.mxu0 0
      %586 = vmatpush2.bf16.msra.mxu0 0
      %587 = vmatprep.subr.bf16.mxu0 0
      %588 = vmatpush2.bf16.msra.mxu0 0
      %589 = vmatprep.subr.bf16.mxu0 0
      %590 = vmatpush2.bf16.msra.mxu0 0
      %591 = vmatprep.subr.bf16.mxu0 0
      %592 = vmatpush2.bf16.msra.mxu0 0
      %593 = vmatprep.subr.bf16.mxu0 0
      %594 = vmatpush2.bf16.msra.mxu0 0
      %595 = vmatprep.subr.bf16.mxu0 0
      %596 = vmatpush2.bf16.msra.mxu0 0
      %597 = vmatprep.mubr.bf16.mxu0 0
      %598 = vmatmul.mubr.bf16.gmra.mxu0 %v472
      %v599 = vpop.f32.mrf.mxu0
      %v600 = vadd.f32 %v421, %v599
      %v601 = vpop.f32.mrf.mxu0
      %v602 = vpop.f32.mrf.mxu0
      %v603 = vadd.f32 %v424, %v602
      %v604 = vpop.f32.mrf.mxu0
      %605 = vmatprep.mubr.bf16.mxu0 0
      %606 = vmatmul.mubr.bf16.gmra.mxu0 %v475
      %v607 = vpop.f32.mrf.mxu0
      %v608 = vadd.f32 %v429, %v607
      %v609 = vpop.f32.mrf.mxu0
      %v610 = vpop.f32.mrf.mxu0
      %v611 = vadd.f32 %v432, %v610
      %v612 = vpop.f32.mrf.mxu0
      %613 = vmatprep.mubr.bf16.mxu0 0
      %614 = vmatmul.mubr.bf16.gmra.mxu0 %v478
      %v615 = vpop.f32.mrf.mxu0
      %v616 = vadd.f32 %v437, %v615
      %v617 = vpop.f32.mrf.mxu0
      %v618 = vpop.f32.mrf.mxu0
      %v619 = vadd.f32 %v440, %v618
      %v620 = vpop.f32.mrf.mxu0
      %621 = vmatprep.mubr.bf16.mxu0 0
      %622 = vmatmul.mubr.bf16.gmra.mxu0 %v481
      %v623 = vpop.f32.mrf.mxu0
      %v624 = vadd.f32 %v445, %v623
      %v625 = vpop.f32.mrf.mxu0
      %v626 = vpop.f32.mrf.mxu0
      %v627 = vadd.f32 %v448, %v626
      %v628 = vpop.f32.mrf.mxu0
      %629 = vdwg.mxu0
      %v630 = vld [vmem:[%s219] sm:$0x3f]
      %s631 = scalar_lea.vmem %s1, 64
      %v632 = vld [vmem:[%s631] sm:$0xf]
      %v633 = vld [vmem:[%s631 + $0x4] sm:$0xf]
      %v634 = vld [vmem:[%s631 + $0x8] sm:$0xf]
      %v635 = vld [vmem:[%s631 + $0xc] sm:$0xf]
      %v636 = vld [vmem:[%s631 + $0x10] sm:$0xf]
      %v637 = vld [vmem:[%s631 + $0x14] sm:$0xf]
      %v638 = vld [vmem:[%s631 + $0x18] sm:$0xf]
      %v639 = vld [vmem:[%s631 + $0x1c] sm:$0xf]
      %v648 = vunpack.c.l.b16 %v632
      %v649 = vunpack.c.l.b16 %v633
      %v650 = vunpack.c.l.b16 %v634
      %v651 = vunpack.c.l.b16 %v635
      %v652 = vunpack.c.l.b16 %v636
      %v653 = vunpack.c.l.b16 %v637
      %v654 = vunpack.c.l.b16 %v638
      %v655 = vunpack.c.l.b16 %v639
      %v656 = vpack.c.b16 %v649, %v648
      %v657 = vpack.c.b16 %v651, %v650
      %v658 = vpack.c.b16 %v653, %v652
      %v659 = vpack.c.b16 %v655, %v654
      %v661 = vcombine.high %v630, %v630
      %v663 = vunpack.c.l.s4 1983009808
      %v664 = vunpack.c.0.s8 %v663
      %v665 = vlaneseq
      %v666 = vshrl.u32 %v665, 7
      %v667 = vsub.s32 %v664, %v666
      %v668 = vrot.slane %v630, %v667
      %v670 = vunpack.c.l.s4 1983009808
      %v671 = vunpack.c.0.s8 %v670
      %v672 = vlaneseq
      %v673 = vshrl.u32 %v672, 7
      %v674 = vsub.s32 %v671, %v673
      %v675 = vrot.slane %v661, %v674
      %v676 = vcombine.high %v668, %v668
      %677 = vrot.lane.b32.xlu0 %v668, 126
      %v678 = vpop.permute.xlu0 %677
      %679 = vrot.lane.b32.xlu0 %v676, 126
      %v680 = vpop.permute.xlu0 %679
      %681 = vrot.lane.b32.xlu0 %v675, 126
      %v682 = vpop.permute.xlu0 %681
      %vm683 = vcmask 1031168
      %v684 = vsel %vm683, %v678, %v680
      %v685 = vsel %vm683, %v680, %v682
      %v687 = vsel %vm290, %v656, 0
      %v690 = vsel %vm290, %v657, 0
      %v693 = vsel %vm290, %v658, 0
      %v696 = vsel %vm290, %v659, 0
      %v699 = vsel %vm303, %v684, 0
      %v702 = vsel %vm303, %v685, 0
      %v705 = vsel %vm303, %v682, 0
      %707 = vmatprep.subr.bf16.mxu0 0
      %708 = vmatpush1.bf16.msra.mxu0 0
      %709 = vmatprep.subr.bf16.mxu0 0
      %710 = vmatpush1.bf16.msra.mxu0 0
      %711 = vmatprep.subr.bf16.mxu0 0
      %712 = vmatpush1.bf16.msra.mxu0 0
      %713 = vmatprep.subr.bf16.mxu0 0
      %714 = vmatpush1.bf16.msra.mxu0 0
      %715 = vmatprep.subr.bf16.mxu0 0
      %716 = vmatpush1.bf16.msra.mxu0 0
      %717 = vmatprep.subr.bf16.mxu0 0
      %718 = vmatpush1.bf16.msra.mxu0 0
      %719 = vmatprep.subr.bf16.mxu0 0
      %720 = vmatpush1.bf16.msra.mxu0 0
      %721 = vmatprep.subr.bf16.mxu0 %v702
      %722 = vmatpush1.bf16.msra.mxu0 %v699
      %723 = vmatprep.subr.bf16.mxu0 0
      %724 = vmatpush2.bf16.msra.mxu0 0
      %725 = vmatprep.subr.bf16.mxu0 0
      %726 = vmatpush2.bf16.msra.mxu0 0
      %727 = vmatprep.subr.bf16.mxu0 0
      %728 = vmatpush2.bf16.msra.mxu0 0
      %729 = vmatprep.subr.bf16.mxu0 0
      %730 = vmatpush2.bf16.msra.mxu0 0
      %731 = vmatprep.subr.bf16.mxu0 0
      %732 = vmatpush2.bf16.msra.mxu0 0
      %733 = vmatprep.subr.bf16.mxu0 0
      %734 = vmatpush2.bf16.msra.mxu0 0
      %735 = vmatprep.subr.bf16.mxu0 0
      %736 = vmatpush2.bf16.msra.mxu0 0
      %737 = vmatprep.subr.bf16.mxu0 0
      %738 = vmatpush2.bf16.msra.mxu0 0
      %739 = vmatprep.mubr.bf16.mxu0 0
      %740 = vmatmul.mubr.bf16.gmra.mxu0 %v687
      %v741 = vpop.f32.mrf.mxu0
      %v742 = vadd.f32 0.0, %v741
      %v743 = vpop.f32.mrf.mxu0
      %v744 = vadd.f32 0.0, %v743
      %v745 = vpop.f32.mrf.mxu0
      %v746 = vadd.f32 0.0, %v745
      %v747 = vpop.f32.mrf.mxu0
      %v748 = vadd.f32 0.0, %v747
      %749 = vmatprep.mubr.bf16.mxu0 0
      %750 = vmatmul.mubr.bf16.gmra.mxu0 %v690
      %v751 = vpop.f32.mrf.mxu0
      %v752 = vadd.f32 0.0, %v751
      %v753 = vpop.f32.mrf.mxu0
      %v754 = vadd.f32 0.0, %v753
      %v755 = vpop.f32.mrf.mxu0
      %v756 = vadd.f32 0.0, %v755
      %v757 = vpop.f32.mrf.mxu0
      %v758 = vadd.f32 0.0, %v757
      %759 = vmatprep.mubr.bf16.mxu0 0
      %760 = vmatmul.mubr.bf16.gmra.mxu0 %v693
      %v761 = vpop.f32.mrf.mxu0
      %v762 = vadd.f32 0.0, %v761
      %v763 = vpop.f32.mrf.mxu0
      %v764 = vadd.f32 0.0, %v763
      %v765 = vpop.f32.mrf.mxu0
      %v766 = vadd.f32 0.0, %v765
      %v767 = vpop.f32.mrf.mxu0
      %v768 = vadd.f32 0.0, %v767
      %769 = vmatprep.mubr.bf16.mxu0 0
      %770 = vmatmul.mubr.bf16.gmra.mxu0 %v696
      %v771 = vpop.f32.mrf.mxu0
      %v772 = vadd.f32 0.0, %v771
      %v773 = vpop.f32.mrf.mxu0
      %v774 = vadd.f32 0.0, %v773
      %v775 = vpop.f32.mrf.mxu0
      %v776 = vadd.f32 0.0, %v775
      %v777 = vpop.f32.mrf.mxu0
      %v778 = vadd.f32 0.0, %v777
      %779 = vdwg.mxu0
      %780 = vmatprep.subr.bf16.mxu0 0
      %781 = vmatpush1.bf16.msra.mxu0 0
      %782 = vmatprep.subr.bf16.mxu0 0
      %783 = vmatpush1.bf16.msra.mxu0 0
      %784 = vmatprep.subr.bf16.mxu0 0
      %785 = vmatpush1.bf16.msra.mxu0 0
      %786 = vmatprep.subr.bf16.mxu0 0
      %787 = vmatpush1.bf16.msra.mxu0 0
      %788 = vmatprep.subr.bf16.mxu0 0
      %789 = vmatpush1.bf16.msra.mxu0 0
      %790 = vmatprep.subr.bf16.mxu0 0
      %791 = vmatpush1.bf16.msra.mxu0 0
      %792 = vmatprep.subr.bf16.mxu0 0
      %793 = vmatpush1.bf16.msra.mxu0 0
      %794 = vmatprep.subr.bf16.mxu0 0
      %795 = vmatpush1.bf16.msra.mxu0 %v705
      %796 = vmatprep.subr.bf16.mxu0 0
      %797 = vmatpush2.bf16.msra.mxu0 0
      %798 = vmatprep.subr.bf16.mxu0 0
      %799 = vmatpush2.bf16.msra.mxu0 0
      %800 = vmatprep.subr.bf16.mxu0 0
      %801 = vmatpush2.bf16.msra.mxu0 0
      %802 = vmatprep.subr.bf16.mxu0 0
      %803 = vmatpush2.bf16.msra.mxu0 0
      %804 = vmatprep.subr.bf16.mxu0 0
      %805 = vmatpush2.bf16.msra.mxu0 0
      %806 = vmatprep.subr.bf16.mxu0 0
      %807 = vmatpush2.bf16.msra.mxu0 0
      %808 = vmatprep.subr.bf16.mxu0 0
      %809 = vmatpush2.bf16.msra.mxu0 0
      %810 = vmatprep.subr.bf16.mxu0 0
      %811 = vmatpush2.bf16.msra.mxu0 0
      %812 = vmatprep.mubr.bf16.mxu0 0
      %813 = vmatmul.mubr.bf16.gmra.mxu0 %v687
      %v814 = vpop.f32.mrf.mxu0
      %v815 = vadd.f32 0.0, %v814
      %v816 = vpop.f32.mrf.mxu0
      %v817 = vpop.f32.mrf.mxu0
      %v818 = vadd.f32 0.0, %v817
      %v819 = vpop.f32.mrf.mxu0
      %820 = vmatprep.mubr.bf16.mxu0 0
      %821 = vmatmul.mubr.bf16.gmra.mxu0 %v690
      %v822 = vpop.f32.mrf.mxu0
      %v823 = vadd.f32 0.0, %v822
      %v824 = vpop.f32.mrf.mxu0
      %v825 = vpop.f32.mrf.mxu0
      %v826 = vadd.f32 0.0, %v825
      %v827 = vpop.f32.mrf.mxu0
      %828 = vmatprep.mubr.bf16.mxu0 0
      %829 = vmatmul.mubr.bf16.gmra.mxu0 %v693
      %v830 = vpop.f32.mrf.mxu0
      %v831 = vadd.f32 0.0, %v830
      %v832 = vpop.f32.mrf.mxu0
      %v833 = vpop.f32.mrf.mxu0
      %v834 = vadd.f32 0.0, %v833
      %v835 = vpop.f32.mrf.mxu0
      %836 = vmatprep.mubr.bf16.mxu0 0
      %837 = vmatmul.mubr.bf16.gmra.mxu0 %v696
      %v838 = vpop.f32.mrf.mxu0
      %v839 = vadd.f32 0.0, %v838
      %v840 = vpop.f32.mrf.mxu0
      %v841 = vpop.f32.mrf.mxu0
      %v842 = vadd.f32 0.0, %v841
      %v843 = vpop.f32.mrf.mxu0
      %844 = vdwg.mxu0
      %v845 = vadd.f32 %v527, %v742
      %v846 = vadd.f32 %v529, %v744
      %v847 = vadd.f32 %v600, %v815
      %v848 = vadd.f32 %v531, %v746
      %v849 = vadd.f32 %v533, %v748
      %v850 = vadd.f32 %v603, %v818
      %v851 = vadd.f32 %v537, %v752
      %v852 = vadd.f32 %v539, %v754
      %v853 = vadd.f32 %v608, %v823
      %v854 = vadd.f32 %v541, %v756
      %v855 = vadd.f32 %v543, %v758
      %v856 = vadd.f32 %v611, %v826
      %v857 = vadd.f32 %v547, %v762
      %v858 = vadd.f32 %v549, %v764
      %v859 = vadd.f32 %v616, %v831
      %v860 = vadd.f32 %v551, %v766
      %v861 = vadd.f32 %v553, %v768
      %v862 = vadd.f32 %v619, %v834
      %v863 = vadd.f32 %v557, %v772
      %v864 = vadd.f32 %v559, %v774
      %v865 = vadd.f32 %v624, %v839
      %v866 = vadd.f32 %v561, %v776
      %v867 = vadd.f32 %v563, %v778
      %v868 = vadd.f32 %v627, %v842
      %v869 = vld [vmem:[%s219] sm:$0x3f]
      %s870 = scalar_lea.vmem %s1, 96
      %v871 = vld [vmem:[%s870] sm:$0xf]
      %v872 = vld [vmem:[%s870 + $0x4] sm:$0xf]
      %v873 = vld [vmem:[%s870 + $0x8] sm:$0xf]
      %v874 = vld [vmem:[%s870 + $0xc] sm:$0xf]
      %v875 = vld [vmem:[%s870 + $0x10] sm:$0xf]
      %v876 = vld [vmem:[%s870 + $0x14] sm:$0xf]
      %v877 = vld [vmem:[%s870 + $0x18] sm:$0xf]
      %v878 = vld [vmem:[%s870 + $0x1c] sm:$0xf]
      %v887 = vunpack.c.l.b16 %v871
      %v888 = vunpack.c.l.b16 %v872
      %v889 = vunpack.c.l.b16 %v873
      %v890 = vunpack.c.l.b16 %v874
      %v891 = vunpack.c.l.b16 %v875
      %v892 = vunpack.c.l.b16 %v876
      %v893 = vunpack.c.l.b16 %v877
      %v894 = vunpack.c.l.b16 %v878
      %v895 = vpack.c.b16 %v888, %v887
      %v896 = vpack.c.b16 %v890, %v889
      %v897 = vpack.c.b16 %v892, %v891
      %v898 = vpack.c.b16 %v894, %v893
      %v900 = vcombine.high %v869, %v869
      %v902 = vunpack.c.l.s4 1983009808
      %v903 = vunpack.c.0.s8 %v902
      %v904 = vlaneseq
      %v905 = vshrl.u32 %v904, 7
      %v906 = vsub.s32 %v903, %v905
      %v907 = vrot.slane %v869, %v906
      %v909 = vunpack.c.l.s4 1983009808
      %v910 = vunpack.c.0.s8 %v909
      %v911 = vlaneseq
      %v912 = vshrl.u32 %v911, 7
      %v913 = vsub.s32 %v910, %v912
      %v914 = vrot.slane %v900, %v913
      %v915 = vcombine.high %v907, %v907
      %916 = vrot.lane.b32.xlu0 %v907, 110
      %v917 = vpop.permute.xlu0 %916
      %918 = vrot.lane.b32.xlu0 %v915, 110
      %v919 = vpop.permute.xlu0 %918
      %920 = vrot.lane.b32.xlu0 %v914, 110
      %v921 = vpop.permute.xlu0 %920
      %vm922 = vcmask 900096
      %v923 = vsel %vm922, %v917, %v919
      %v924 = vsel %vm922, %v919, %v921
      %v926 = vsel %vm290, %v895, 0
      %v929 = vsel %vm290, %v896, 0
      %v932 = vsel %vm290, %v897, 0
      %v935 = vsel %vm290, %v898, 0
      %v938 = vsel %vm303, %v923, 0
      %v941 = vsel %vm303, %v924, 0
      %v944 = vsel %vm303, %v921, 0
      %946 = vmatprep.subr.bf16.mxu0 0
      %947 = vmatpush1.bf16.msra.mxu0 0
      %948 = vmatprep.subr.bf16.mxu0 0
      %949 = vmatpush1.bf16.msra.mxu0 0
      %950 = vmatprep.subr.bf16.mxu0 0
      %951 = vmatpush1.bf16.msra.mxu0 0
      %952 = vmatprep.subr.bf16.mxu0 0
      %953 = vmatpush1.bf16.msra.mxu0 0
      %954 = vmatprep.subr.bf16.mxu0 0
      %955 = vmatpush1.bf16.msra.mxu0 0
      %956 = vmatprep.subr.bf16.mxu0 0
      %957 = vmatpush1.bf16.msra.mxu0 0
      %958 = vmatprep.subr.bf16.mxu0 0
      %959 = vmatpush1.bf16.msra.mxu0 0
      %960 = vmatprep.subr.bf16.mxu0 %v941
      %961 = vmatpush1.bf16.msra.mxu0 %v938
      %962 = vmatprep.subr.bf16.mxu0 0
      %963 = vmatpush2.bf16.msra.mxu0 0
      %964 = vmatprep.subr.bf16.mxu0 0
      %965 = vmatpush2.bf16.msra.mxu0 0
      %966 = vmatprep.subr.bf16.mxu0 0
      %967 = vmatpush2.bf16.msra.mxu0 0
      %968 = vmatprep.subr.bf16.mxu0 0
      %969 = vmatpush2.bf16.msra.mxu0 0
      %970 = vmatprep.subr.bf16.mxu0 0
      %971 = vmatpush2.bf16.msra.mxu0 0
      %972 = vmatprep.subr.bf16.mxu0 0
      %973 = vmatpush2.bf16.msra.mxu0 0
      %974 = vmatprep.subr.bf16.mxu0 0
      %975 = vmatpush2.bf16.msra.mxu0 0
      %976 = vmatprep.subr.bf16.mxu0 0
      %977 = vmatpush2.bf16.msra.mxu0 0
      %978 = vmatprep.mubr.bf16.mxu0 0
      %979 = vmatmul.mubr.bf16.gmra.mxu0 %v926
      %v980 = vpop.f32.mrf.mxu0
      %v981 = vadd.f32 0.0, %v980
      %v982 = vpop.f32.mrf.mxu0
      %v983 = vadd.f32 0.0, %v982
      %v984 = vpop.f32.mrf.mxu0
      %v985 = vadd.f32 0.0, %v984
      %v986 = vpop.f32.mrf.mxu0
      %v987 = vadd.f32 0.0, %v986
      %988 = vmatprep.mubr.bf16.mxu0 0
      %989 = vmatmul.mubr.bf16.gmra.mxu0 %v929
      %v990 = vpop.f32.mrf.mxu0
      %v991 = vadd.f32 0.0, %v990
      %v992 = vpop.f32.mrf.mxu0
      %v993 = vadd.f32 0.0, %v992
      %v994 = vpop.f32.mrf.mxu0
      %v995 = vadd.f32 0.0, %v994
      %v996 = vpop.f32.mrf.mxu0
      %v997 = vadd.f32 0.0, %v996
      %998 = vmatprep.mubr.bf16.mxu0 0
      %999 = vmatmul.mubr.bf16.gmra.mxu0 %v932
      %v1000 = vpop.f32.mrf.mxu0
      %v1001 = vadd.f32 0.0, %v1000
      %v1002 = vpop.f32.mrf.mxu0
      %v1003 = vadd.f32 0.0, %v1002
      %v1004 = vpop.f32.mrf.mxu0
      %v1005 = vadd.f32 0.0, %v1004
      %v1006 = vpop.f32.mrf.mxu0
      %v1007 = vadd.f32 0.0, %v1006
      %1008 = vmatprep.mubr.bf16.mxu0 0
      %1009 = vmatmul.mubr.bf16.gmra.mxu0 %v935
      %v1010 = vpop.f32.mrf.mxu0
      %v1011 = vadd.f32 0.0, %v1010
      %v1012 = vpop.f32.mrf.mxu0
      %v1013 = vadd.f32 0.0, %v1012
      %v1014 = vpop.f32.mrf.mxu0
      %v1015 = vadd.f32 0.0, %v1014
      %v1016 = vpop.f32.mrf.mxu0
      %v1017 = vadd.f32 0.0, %v1016
      %1018 = vdwg.mxu0
      %1019 = vmatprep.subr.bf16.mxu0 0
      %1020 = vmatpush1.bf16.msra.mxu0 0
      %1021 = vmatprep.subr.bf16.mxu0 0
      %1022 = vmatpush1.bf16.msra.mxu0 0
      %1023 = vmatprep.subr.bf16.mxu0 0
      %1024 = vmatpush1.bf16.msra.mxu0 0
      %1025 = vmatprep.subr.bf16.mxu0 0
      %1026 = vmatpush1.bf16.msra.mxu0 0
      %1027 = vmatprep.subr.bf16.mxu0 0
      %1028 = vmatpush1.bf16.msra.mxu0 0
      %1029 = vmatprep.subr.bf16.mxu0 0
      %1030 = vmatpush1.bf16.msra.mxu0 0
      %1031 = vmatprep.subr.bf16.mxu0 0
      %1032 = vmatpush1.bf16.msra.mxu0 0
      %1033 = vmatprep.subr.bf16.mxu0 0
      %1034 = vmatpush1.bf16.msra.mxu0 %v944
      %1035 = vmatprep.subr.bf16.mxu0 0
      %1036 = vmatpush2.bf16.msra.mxu0 0
      %1037 = vmatprep.subr.bf16.mxu0 0
      %1038 = vmatpush2.bf16.msra.mxu0 0
      %1039 = vmatprep.subr.bf16.mxu0 0
      %1040 = vmatpush2.bf16.msra.mxu0 0
      %1041 = vmatprep.subr.bf16.mxu0 0
      %1042 = vmatpush2.bf16.msra.mxu0 0
      %1043 = vmatprep.subr.bf16.mxu0 0
      %1044 = vmatpush2.bf16.msra.mxu0 0
      %1045 = vmatprep.subr.bf16.mxu0 0
      %1046 = vmatpush2.bf16.msra.mxu0 0
      %1047 = vmatprep.subr.bf16.mxu0 0
      %1048 = vmatpush2.bf16.msra.mxu0 0
      %1049 = vmatprep.subr.bf16.mxu0 0
      %1050 = vmatpush2.bf16.msra.mxu0 0
      %1051 = vmatprep.mubr.bf16.mxu0 0
      %1052 = vmatmul.mubr.bf16.gmra.mxu0 %v926
      %v1053 = vpop.f32.mrf.mxu0
      %v1054 = vadd.f32 0.0, %v1053
      %v1055 = vpop.f32.mrf.mxu0
      %v1056 = vpop.f32.mrf.mxu0
      %v1057 = vadd.f32 0.0, %v1056
      %v1058 = vpop.f32.mrf.mxu0
      %1059 = vmatprep.mubr.bf16.mxu0 0
      %1060 = vmatmul.mubr.bf16.gmra.mxu0 %v929
      %v1061 = vpop.f32.mrf.mxu0
      %v1062 = vadd.f32 0.0, %v1061
      %v1063 = vpop.f32.mrf.mxu0
      %v1064 = vpop.f32.mrf.mxu0
      %v1065 = vadd.f32 0.0, %v1064
      %v1066 = vpop.f32.mrf.mxu0
      %1067 = vmatprep.mubr.bf16.mxu0 0
      %1068 = vmatmul.mubr.bf16.gmra.mxu0 %v932
      %v1069 = vpop.f32.mrf.mxu0
      %v1070 = vadd.f32 0.0, %v1069
      %v1071 = vpop.f32.mrf.mxu0
      %v1072 = vpop.f32.mrf.mxu0
      %v1073 = vadd.f32 0.0, %v1072
      %v1074 = vpop.f32.mrf.mxu0
      %1075 = vmatprep.mubr.bf16.mxu0 0
      %1076 = vmatmul.mubr.bf16.gmra.mxu0 %v935
      %v1077 = vpop.f32.mrf.mxu0
      %v1078 = vadd.f32 0.0, %v1077
      %v1079 = vpop.f32.mrf.mxu0
      %v1080 = vpop.f32.mrf.mxu0
      %v1081 = vadd.f32 0.0, %v1080
      %v1082 = vpop.f32.mrf.mxu0
      %1083 = vdwg.mxu0
      %v1084 = vadd.f32 %v845, %v981
      %v1085 = vadd.f32 %v846, %v983
      %v1086 = vadd.f32 %v847, %v1054
      %v1087 = vadd.f32 %v848, %v985
      %v1088 = vadd.f32 %v849, %v987
      %v1089 = vadd.f32 %v850, %v1057
      %v1090 = vadd.f32 %v851, %v991
      %v1091 = vadd.f32 %v852, %v993
      %v1092 = vadd.f32 %v853, %v1062
      %v1093 = vadd.f32 %v854, %v995
      %v1094 = vadd.f32 %v855, %v997
      %v1095 = vadd.f32 %v856, %v1065
      %v1096 = vadd.f32 %v857, %v1001
      %v1097 = vadd.f32 %v858, %v1003
      %v1098 = vadd.f32 %v859, %v1070
      %v1099 = vadd.f32 %v860, %v1005
      %v1100 = vadd.f32 %v861, %v1007
      %v1101 = vadd.f32 %v862, %v1073
      %v1102 = vadd.f32 %v863, %v1011
      %v1103 = vadd.f32 %v864, %v1013
      %v1104 = vadd.f32 %v865, %v1078
      %v1105 = vadd.f32 %v866, %v1015
      %v1106 = vadd.f32 %v867, %v1017
      %v1107 = vadd.f32 %v868, %v1081
      %v1108 = vld [vmem:[%s219] sm:$0x3f]
      %s1109 = scalar_lea.vmem %s1, 128
      %v1110 = vld [vmem:[%s1109] sm:$0xf]
      %v1111 = vld [vmem:[%s1109 + $0x4] sm:$0xf]
      %v1112 = vld [vmem:[%s1109 + $0x8] sm:$0xf]
      %v1113 = vld [vmem:[%s1109 + $0xc] sm:$0xf]
      %v1114 = vld [vmem:[%s1109 + $0x10] sm:$0xf]
      %v1115 = vld [vmem:[%s1109 + $0x14] sm:$0xf]
      %v1116 = vld [vmem:[%s1109 + $0x18] sm:$0xf]
      %v1117 = vld [vmem:[%s1109 + $0x1c] sm:$0xf]
      %v1126 = vunpack.c.l.b16 %v1110
      %v1127 = vunpack.c.l.b16 %v1111
      %v1128 = vunpack.c.l.b16 %v1112
      %v1129 = vunpack.c.l.b16 %v1113
      %v1130 = vunpack.c.l.b16 %v1114
      %v1131 = vunpack.c.l.b16 %v1115
      %v1132 = vunpack.c.l.b16 %v1116
      %v1133 = vunpack.c.l.b16 %v1117
      %v1134 = vpack.c.b16 %v1127, %v1126
      %v1135 = vpack.c.b16 %v1129, %v1128
      %v1136 = vpack.c.b16 %v1131, %v1130
      %v1137 = vpack.c.b16 %v1133, %v1132
      %v1139 = vcombine.high %v1108, %v1108
      %v1141 = vunpack.c.l.s4 1983009808
      %v1142 = vunpack.c.0.s8 %v1141
      %v1143 = vlaneseq
      %v1144 = vshrl.u32 %v1143, 7
      %v1145 = vsub.s32 %v1142, %v1144
      %v1146 = vrot.slane %v1108, %v1145
      %v1148 = vunpack.c.l.s4 1983009808
      %v1149 = vunpack.c.0.s8 %v1148
      %v1150 = vlaneseq
      %v1151 = vshrl.u32 %v1150, 7
      %v1152 = vsub.s32 %v1149, %v1151
      %v1153 = vrot.slane %v1139, %v1152
      %v1154 = vcombine.high %v1146, %v1146
      %1155 = vrot.lane.b32.xlu0 %v1146, 109
      %v1156 = vpop.permute.xlu0 %1155
      %1157 = vrot.lane.b32.xlu0 %v1154, 109
      %v1158 = vpop.permute.xlu0 %1157
      %1159 = vrot.lane.b32.xlu0 %v1153, 109
      %v1160 = vpop.permute.xlu0 %1159
      %vm1161 = vcmask 891904
      %v1162 = vsel %vm1161, %v1156, %v1158
      %v1163 = vsel %vm1161, %v1158, %v1160
      %v1165 = vsel %vm290, %v1134, 0
      %v1168 = vsel %vm290, %v1135, 0
      %v1171 = vsel %vm290, %v1136, 0
      %v1174 = vsel %vm290, %v1137, 0
      %v1177 = vsel %vm303, %v1162, 0
      %v1180 = vsel %vm303, %v1163, 0
      %v1183 = vsel %vm303, %v1160, 0
      %1185 = vmatprep.subr.bf16.mxu0 0
      %1186 = vmatpush1.bf16.msra.mxu0 0
      %1187 = vmatprep.subr.bf16.mxu0 0
      %1188 = vmatpush1.bf16.msra.mxu0 0
      %1189 = vmatprep.subr.bf16.mxu0 0
      %1190 = vmatpush1.bf16.msra.mxu0 0
      %1191 = vmatprep.subr.bf16.mxu0 0
      %1192 = vmatpush1.bf16.msra.mxu0 0
      %1193 = vmatprep.subr.bf16.mxu0 0
      %1194 = vmatpush1.bf16.msra.mxu0 0
      %1195 = vmatprep.subr.bf16.mxu0 0
      %1196 = vmatpush1.bf16.msra.mxu0 0
      %1197 = vmatprep.subr.bf16.mxu0 0
      %1198 = vmatpush1.bf16.msra.mxu0 0
      %1199 = vmatprep.subr.bf16.mxu0 %v1180
      %1200 = vmatpush1.bf16.msra.mxu0 %v1177
      %1201 = vmatprep.subr.bf16.mxu0 0
      %1202 = vmatpush2.bf16.msra.mxu0 0
      %1203 = vmatprep.subr.bf16.mxu0 0
      %1204 = vmatpush2.bf16.msra.mxu0 0
      %1205 = vmatprep.subr.bf16.mxu0 0
      %1206 = vmatpush2.bf16.msra.mxu0 0
      %1207 = vmatprep.subr.bf16.mxu0 0
      %1208 = vmatpush2.bf16.msra.mxu0 0
      %1209 = vmatprep.subr.bf16.mxu0 0
      %1210 = vmatpush2.bf16.msra.mxu0 0
      %1211 = vmatprep.subr.bf16.mxu0 0
      %1212 = vmatpush2.bf16.msra.mxu0 0
      %1213 = vmatprep.subr.bf16.mxu0 0
      %1214 = vmatpush2.bf16.msra.mxu0 0
      %1215 = vmatprep.subr.bf16.mxu0 0
      %1216 = vmatpush2.bf16.msra.mxu0 0
      %1217 = vmatprep.mubr.bf16.mxu0 0
      %1218 = vmatmul.mubr.bf16.gmra.mxu0 %v1165
      %v1219 = vpop.f32.mrf.mxu0
      %v1220 = vadd.f32 0.0, %v1219
      %v1221 = vpop.f32.mrf.mxu0
      %v1222 = vadd.f32 0.0, %v1221
      %v1223 = vpop.f32.mrf.mxu0
      %v1224 = vadd.f32 0.0, %v1223
      %v1225 = vpop.f32.mrf.mxu0
      %v1226 = vadd.f32 0.0, %v1225
      %1227 = vmatprep.mubr.bf16.mxu0 0
      %1228 = vmatmul.mubr.bf16.gmra.mxu0 %v1168
      %v1229 = vpop.f32.mrf.mxu0
      %v1230 = vadd.f32 0.0, %v1229
      %v1231 = vpop.f32.mrf.mxu0
      %v1232 = vadd.f32 0.0, %v1231
      %v1233 = vpop.f32.mrf.mxu0
      %v1234 = vadd.f32 0.0, %v1233
      %v1235 = vpop.f32.mrf.mxu0
      %v1236 = vadd.f32 0.0, %v1235
      %1237 = vmatprep.mubr.bf16.mxu0 0
      %1238 = vmatmul.mubr.bf16.gmra.mxu0 %v1171
      %v1239 = vpop.f32.mrf.mxu0
      %v1240 = vadd.f32 0.0, %v1239
      %v1241 = vpop.f32.mrf.mxu0
      %v1242 = vadd.f32 0.0, %v1241
      %v1243 = vpop.f32.mrf.mxu0
      %v1244 = vadd.f32 0.0, %v1243
      %v1245 = vpop.f32.mrf.mxu0
      %v1246 = vadd.f32 0.0, %v1245
      %1247 = vmatprep.mubr.bf16.mxu0 0
      %1248 = vmatmul.mubr.bf16.gmra.mxu0 %v1174
      %v1249 = vpop.f32.mrf.mxu0
      %v1250 = vadd.f32 0.0, %v1249
      %v1251 = vpop.f32.mrf.mxu0
      %v1252 = vadd.f32 0.0, %v1251
      %v1253 = vpop.f32.mrf.mxu0
      %v1254 = vadd.f32 0.0, %v1253
      %v1255 = vpop.f32.mrf.mxu0
      %v1256 = vadd.f32 0.0, %v1255
      %1257 = vdwg.mxu0
      %1258 = vmatprep.subr.bf16.mxu0 0
      %1259 = vmatpush1.bf16.msra.mxu0 0
      %1260 = vmatprep.subr.bf16.mxu0 0
      %1261 = vmatpush1.bf16.msra.mxu0 0
      %1262 = vmatprep.subr.bf16.mxu0 0
      %1263 = vmatpush1.bf16.msra.mxu0 0
      %1264 = vmatprep.subr.bf16.mxu0 0
      %1265 = vmatpush1.bf16.msra.mxu0 0
      %1266 = vmatprep.subr.bf16.mxu0 0
      %1267 = vmatpush1.bf16.msra.mxu0 0
      %1268 = vmatprep.subr.bf16.mxu0 0
      %1269 = vmatpush1.bf16.msra.mxu0 0
      %1270 = vmatprep.subr.bf16.mxu0 0
      %1271 = vmatpush1.bf16.msra.mxu0 0
      %1272 = vmatprep.subr.bf16.mxu0 0
      %1273 = vmatpush1.bf16.msra.mxu0 %v1183
      %1274 = vmatprep.subr.bf16.mxu0 0
      %1275 = vmatpush2.bf16.msra.mxu0 0
      %1276 = vmatprep.subr.bf16.mxu0 0
      %1277 = vmatpush2.bf16.msra.mxu0 0
      %1278 = vmatprep.subr.bf16.mxu0 0
      %1279 = vmatpush2.bf16.msra.mxu0 0
      %1280 = vmatprep.subr.bf16.mxu0 0
      %1281 = vmatpush2.bf16.msra.mxu0 0
      %1282 = vmatprep.subr.bf16.mxu0 0
      %1283 = vmatpush2.bf16.msra.mxu0 0
      %1284 = vmatprep.subr.bf16.mxu0 0
      %1285 = vmatpush2.bf16.msra.mxu0 0
      %1286 = vmatprep.subr.bf16.mxu0 0
      %1287 = vmatpush2.bf16.msra.mxu0 0
      %1288 = vmatprep.subr.bf16.mxu0 0
      %1289 = vmatpush2.bf16.msra.mxu0 0
      %1290 = vmatprep.mubr.bf16.mxu0 0
      %1291 = vmatmul.mubr.bf16.gmra.mxu0 %v1165
      %v1292 = vpop.f32.mrf.mxu0
      %v1293 = vadd.f32 0.0, %v1292
      %v1294 = vpop.f32.mrf.mxu0
      %v1295 = vpop.f32.mrf.mxu0
      %v1296 = vadd.f32 0.0, %v1295
      %v1297 = vpop.f32.mrf.mxu0
      %1298 = vmatprep.mubr.bf16.mxu0 0
      %1299 = vmatmul.mubr.bf16.gmra.mxu0 %v1168
      %v1300 = vpop.f32.mrf.mxu0
      %v1301 = vadd.f32 0.0, %v1300
      %v1302 = vpop.f32.mrf.mxu0
      %v1303 = vpop.f32.mrf.mxu0
      %v1304 = vadd.f32 0.0, %v1303
      %v1305 = vpop.f32.mrf.mxu0
      %1306 = vmatprep.mubr.bf16.mxu0 0
      %1307 = vmatmul.mubr.bf16.gmra.mxu0 %v1171
      %v1308 = vpop.f32.mrf.mxu0
      %v1309 = vadd.f32 0.0, %v1308
      %v1310 = vpop.f32.mrf.mxu0
      %v1311 = vpop.f32.mrf.mxu0
      %v1312 = vadd.f32 0.0, %v1311
      %v1313 = vpop.f32.mrf.mxu0
      %1314 = vmatprep.mubr.bf16.mxu0 0
      %1315 = vmatmul.mubr.bf16.gmra.mxu0 %v1174
      %v1316 = vpop.f32.mrf.mxu0
      %v1317 = vadd.f32 0.0, %v1316
      %v1318 = vpop.f32.mrf.mxu0
      %v1319 = vpop.f32.mrf.mxu0
      %v1320 = vadd.f32 0.0, %v1319
      %v1321 = vpop.f32.mrf.mxu0
      %1322 = vdwg.mxu0
      %v1323 = vadd.f32 %v1084, %v1220
      %v1324 = vadd.f32 %v1085, %v1222
      %v1325 = vadd.f32 %v1086, %v1293
      %v1326 = vadd.f32 %v1087, %v1224
      %v1327 = vadd.f32 %v1088, %v1226
      %v1328 = vadd.f32 %v1089, %v1296
      %v1329 = vadd.f32 %v1090, %v1230
      %v1330 = vadd.f32 %v1091, %v1232
      %v1331 = vadd.f32 %v1092, %v1301
      %v1332 = vadd.f32 %v1093, %v1234
      %v1333 = vadd.f32 %v1094, %v1236
      %v1334 = vadd.f32 %v1095, %v1304
      %v1335 = vadd.f32 %v1096, %v1240
      %v1336 = vadd.f32 %v1097, %v1242
      %v1337 = vadd.f32 %v1098, %v1309
      %v1338 = vadd.f32 %v1099, %v1244
      %v1339 = vadd.f32 %v1100, %v1246
      %v1340 = vadd.f32 %v1101, %v1312
      %v1341 = vadd.f32 %v1102, %v1250
      %v1342 = vadd.f32 %v1103, %v1252
      %v1343 = vadd.f32 %v1104, %v1317
      %v1344 = vadd.f32 %v1105, %v1254
      %v1345 = vadd.f32 %v1106, %v1256
      %v1346 = vadd.f32 %v1107, %v1320
      %v1347 = vld [vmem:[%s219] sm:$0x3f]
      %s1348 = scalar_lea.vmem %s1, 160
      %v1349 = vld [vmem:[%s1348] sm:$0xf]
      %v1350 = vld [vmem:[%s1348 + $0x4] sm:$0xf]
      %v1351 = vld [vmem:[%s1348 + $0x8] sm:$0xf]
      %v1352 = vld [vmem:[%s1348 + $0xc] sm:$0xf]
      %v1353 = vld [vmem:[%s1348 + $0x10] sm:$0xf]
      %v1354 = vld [vmem:[%s1348 + $0x14] sm:$0xf]
      %v1355 = vld [vmem:[%s1348 + $0x18] sm:$0xf]
      %v1356 = vld [vmem:[%s1348 + $0x1c] sm:$0xf]
      %v1365 = vunpack.c.l.b16 %v1349
      %v1366 = vunpack.c.l.b16 %v1350
      %v1367 = vunpack.c.l.b16 %v1351
      %v1368 = vunpack.c.l.b16 %v1352
      %v1369 = vunpack.c.l.b16 %v1353
      %v1370 = vunpack.c.l.b16 %v1354
      %v1371 = vunpack.c.l.b16 %v1355
      %v1372 = vunpack.c.l.b16 %v1356
      %v1373 = vpack.c.b16 %v1366, %v1365
      %v1374 = vpack.c.b16 %v1368, %v1367
      %v1375 = vpack.c.b16 %v1370, %v1369
      %v1376 = vpack.c.b16 %v1372, %v1371
      %v1378 = vcombine.high %v1347, %v1347
      %v1380 = vunpack.c.l.s4 1983009808
      %v1381 = vunpack.c.0.s8 %v1380
      %v1382 = vlaneseq
      %v1383 = vshrl.u32 %v1382, 7
      %v1384 = vsub.s32 %v1381, %v1383
      %v1385 = vrot.slane %v1347, %v1384
      %v1387 = vunpack.c.l.s4 1983009808
      %v1388 = vunpack.c.0.s8 %v1387
      %v1389 = vlaneseq
      %v1390 = vshrl.u32 %v1389, 7
      %v1391 = vsub.s32 %v1388, %v1390
      %v1392 = vrot.slane %v1378, %v1391
      %v1393 = vcombine.high %v1385, %v1385
      %1394 = vrot.lane.b32.xlu0 %v1385, 108
      %v1395 = vpop.permute.xlu0 %1394
      %1396 = vrot.lane.b32.xlu0 %v1393, 108
      %v1397 = vpop.permute.xlu0 %1396
      %1398 = vrot.lane.b32.xlu0 %v1392, 108
      %v1399 = vpop.permute.xlu0 %1398
      %vm1400 = vcmask 883712
      %v1401 = vsel %vm1400, %v1395, %v1397
      %v1402 = vsel %vm1400, %v1397, %v1399
      %v1404 = vsel %vm290, %v1373, 0
      %v1407 = vsel %vm290, %v1374, 0
      %v1410 = vsel %vm290, %v1375, 0
      %v1413 = vsel %vm290, %v1376, 0
      %v1416 = vsel %vm303, %v1401, 0
      %v1419 = vsel %vm303, %v1402, 0
      %v1422 = vsel %vm303, %v1399, 0
      %1424 = vmatprep.subr.bf16.mxu0 0
      %1425 = vmatpush1.bf16.msra.mxu0 0
      %1426 = vmatprep.subr.bf16.mxu0 0
      %1427 = vmatpush1.bf16.msra.mxu0 0
      %1428 = vmatprep.subr.bf16.mxu0 0
      %1429 = vmatpush1.bf16.msra.mxu0 0
      %1430 = vmatprep.subr.bf16.mxu0 0
      %1431 = vmatpush1.bf16.msra.mxu0 0
      %1432 = vmatprep.subr.bf16.mxu0 0
      %1433 = vmatpush1.bf16.msra.mxu0 0
      %1434 = vmatprep.subr.bf16.mxu0 0
      %1435 = vmatpush1.bf16.msra.mxu0 0
      %1436 = vmatprep.subr.bf16.mxu0 0
      %1437 = vmatpush1.bf16.msra.mxu0 0
      %1438 = vmatprep.subr.bf16.mxu0 %v1419
      %1439 = vmatpush1.bf16.msra.mxu0 %v1416
      %1440 = vmatprep.subr.bf16.mxu0 0
      %1441 = vmatpush2.bf16.msra.mxu0 0
      %1442 = vmatprep.subr.bf16.mxu0 0
      %1443 = vmatpush2.bf16.msra.mxu0 0
      %1444 = vmatprep.subr.bf16.mxu0 0
      %1445 = vmatpush2.bf16.msra.mxu0 0
      %1446 = vmatprep.subr.bf16.mxu0 0
      %1447 = vmatpush2.bf16.msra.mxu0 0
      %1448 = vmatprep.subr.bf16.mxu0 0
      %1449 = vmatpush2.bf16.msra.mxu0 0
      %1450 = vmatprep.subr.bf16.mxu0 0
      %1451 = vmatpush2.bf16.msra.mxu0 0
      %1452 = vmatprep.subr.bf16.mxu0 0
      %1453 = vmatpush2.bf16.msra.mxu0 0
      %1454 = vmatprep.subr.bf16.mxu0 0
      %1455 = vmatpush2.bf16.msra.mxu0 0
      %1456 = vmatprep.mubr.bf16.mxu0 0
      %1457 = vmatmul.mubr.bf16.gmra.mxu0 %v1404
      %v1458 = vpop.f32.mrf.mxu0
      %v1459 = vadd.f32 0.0, %v1458
      %v1460 = vpop.f32.mrf.mxu0
      %v1461 = vadd.f32 0.0, %v1460
      %v1462 = vpop.f32.mrf.mxu0
      %v1463 = vadd.f32 0.0, %v1462
      %v1464 = vpop.f32.mrf.mxu0
      %v1465 = vadd.f32 0.0, %v1464
      %1466 = vmatprep.mubr.bf16.mxu0 0
      %1467 = vmatmul.mubr.bf16.gmra.mxu0 %v1407
      %v1468 = vpop.f32.mrf.mxu0
      %v1469 = vadd.f32 0.0, %v1468
      %v1470 = vpop.f32.mrf.mxu0
      %v1471 = vadd.f32 0.0, %v1470
      %v1472 = vpop.f32.mrf.mxu0
      %v1473 = vadd.f32 0.0, %v1472
      %v1474 = vpop.f32.mrf.mxu0
      %v1475 = vadd.f32 0.0, %v1474
      %1476 = vmatprep.mubr.bf16.mxu0 0
      %1477 = vmatmul.mubr.bf16.gmra.mxu0 %v1410
      %v1478 = vpop.f32.mrf.mxu0
      %v1479 = vadd.f32 0.0, %v1478
      %v1480 = vpop.f32.mrf.mxu0
      %v1481 = vadd.f32 0.0, %v1480
      %v1482 = vpop.f32.mrf.mxu0
      %v1483 = vadd.f32 0.0, %v1482
      %v1484 = vpop.f32.mrf.mxu0
      %v1485 = vadd.f32 0.0, %v1484
      %1486 = vmatprep.mubr.bf16.mxu0 0
      %1487 = vmatmul.mubr.bf16.gmra.mxu0 %v1413
      %v1488 = vpop.f32.mrf.mxu0
      %v1489 = vadd.f32 0.0, %v1488
      %v1490 = vpop.f32.mrf.mxu0
      %v1491 = vadd.f32 0.0, %v1490
      %v1492 = vpop.f32.mrf.mxu0
      %v1493 = vadd.f32 0.0, %v1492
      %v1494 = vpop.f32.mrf.mxu0
      %v1495 = vadd.f32 0.0, %v1494
      %1496 = vdwg.mxu0
      %1497 = vmatprep.subr.bf16.mxu0 0
      %1498 = vmatpush1.bf16.msra.mxu0 0
      %1499 = vmatprep.subr.bf16.mxu0 0
      %1500 = vmatpush1.bf16.msra.mxu0 0
      %1501 = vmatprep.subr.bf16.mxu0 0
      %1502 = vmatpush1.bf16.msra.mxu0 0
      %1503 = vmatprep.subr.bf16.mxu0 0
      %1504 = vmatpush1.bf16.msra.mxu0 0
      %1505 = vmatprep.subr.bf16.mxu0 0
      %1506 = vmatpush1.bf16.msra.mxu0 0
      %1507 = vmatprep.subr.bf16.mxu0 0
      %1508 = vmatpush1.bf16.msra.mxu0 0
      %1509 = vmatprep.subr.bf16.mxu0 0
      %1510 = vmatpush1.bf16.msra.mxu0 0
      %1511 = vmatprep.subr.bf16.mxu0 0
      %1512 = vmatpush1.bf16.msra.mxu0 %v1422
      %1513 = vmatprep.subr.bf16.mxu0 0
      %1514 = vmatpush2.bf16.msra.mxu0 0
      %1515 = vmatprep.subr.bf16.mxu0 0
      %1516 = vmatpush2.bf16.msra.mxu0 0
      %1517 = vmatprep.subr.bf16.mxu0 0
      %1518 = vmatpush2.bf16.msra.mxu0 0
      %1519 = vmatprep.subr.bf16.mxu0 0
      %1520 = vmatpush2.bf16.msra.mxu0 0
      %1521 = vmatprep.subr.bf16.mxu0 0
      %1522 = vmatpush2.bf16.msra.mxu0 0
      %1523 = vmatprep.subr.bf16.mxu0 0
      %1524 = vmatpush2.bf16.msra.mxu0 0
      %1525 = vmatprep.subr.bf16.mxu0 0
      %1526 = vmatpush2.bf16.msra.mxu0 0
      %1527 = vmatprep.subr.bf16.mxu0 0
      %1528 = vmatpush2.bf16.msra.mxu0 0
      %1529 = vmatprep.mubr.bf16.mxu0 0
      %1530 = vmatmul.mubr.bf16.gmra.mxu0 %v1404
      %v1531 = vpop.f32.mrf.mxu0
      %v1532 = vadd.f32 0.0, %v1531
      %v1533 = vpop.f32.mrf.mxu0
      %v1534 = vpop.f32.mrf.mxu0
      %v1535 = vadd.f32 0.0, %v1534
      %v1536 = vpop.f32.mrf.mxu0
      %1537 = vmatprep.mubr.bf16.mxu0 0
      %1538 = vmatmul.mubr.bf16.gmra.mxu0 %v1407
      %v1539 = vpop.f32.mrf.mxu0
      %v1540 = vadd.f32 0.0, %v1539
      %v1541 = vpop.f32.mrf.mxu0
      %v1542 = vpop.f32.mrf.mxu0
      %v1543 = vadd.f32 0.0, %v1542
      %v1544 = vpop.f32.mrf.mxu0
      %1545 = vmatprep.mubr.bf16.mxu0 0
      %1546 = vmatmul.mubr.bf16.gmra.mxu0 %v1410
      %v1547 = vpop.f32.mrf.mxu0
      %v1548 = vadd.f32 0.0, %v1547
      %v1549 = vpop.f32.mrf.mxu0
      %v1550 = vpop.f32.mrf.mxu0
      %v1551 = vadd.f32 0.0, %v1550
      %v1552 = vpop.f32.mrf.mxu0
      %1553 = vmatprep.mubr.bf16.mxu0 0
      %1554 = vmatmul.mubr.bf16.gmra.mxu0 %v1413
      %v1555 = vpop.f32.mrf.mxu0
      %v1556 = vadd.f32 0.0, %v1555
      %v1557 = vpop.f32.mrf.mxu0
      %v1558 = vpop.f32.mrf.mxu0
      %v1559 = vadd.f32 0.0, %v1558
      %v1560 = vpop.f32.mrf.mxu0
      %1561 = vdwg.mxu0
      %v1562 = vadd.f32 %v1323, %v1459
      %v1563 = vadd.f32 %v1324, %v1461
      %v1564 = vadd.f32 %v1325, %v1532
      %v1565 = vadd.f32 %v1326, %v1463
      %v1566 = vadd.f32 %v1327, %v1465
      %v1567 = vadd.f32 %v1328, %v1535
      %v1568 = vadd.f32 %v1329, %v1469
      %v1569 = vadd.f32 %v1330, %v1471
      %v1570 = vadd.f32 %v1331, %v1540
      %v1571 = vadd.f32 %v1332, %v1473
      %v1572 = vadd.f32 %v1333, %v1475
      %v1573 = vadd.f32 %v1334, %v1543
      %v1574 = vadd.f32 %v1335, %v1479
      %v1575 = vadd.f32 %v1336, %v1481
      %v1576 = vadd.f32 %v1337, %v1548
      %v1577 = vadd.f32 %v1338, %v1483
      %v1578 = vadd.f32 %v1339, %v1485
      %v1579 = vadd.f32 %v1340, %v1551
      %v1580 = vadd.f32 %v1341, %v1489
      %v1581 = vadd.f32 %v1342, %v1491
      %v1582 = vadd.f32 %v1343, %v1556
      %v1583 = vadd.f32 %v1344, %v1493
      %v1584 = vadd.f32 %v1345, %v1495
      %v1585 = vadd.f32 %v1346, %v1559
      %v1586 = vld [vmem:[%s219] sm:$0x3f]
      %s1587 = scalar_lea.vmem %s1, 192
      %v1588 = vld [vmem:[%s1587] sm:$0xf]
      %v1589 = vld [vmem:[%s1587 + $0x4] sm:$0xf]
      %v1590 = vld [vmem:[%s1587 + $0x8] sm:$0xf]
      %v1591 = vld [vmem:[%s1587 + $0xc] sm:$0xf]
      %v1592 = vld [vmem:[%s1587 + $0x10] sm:$0xf]
      %v1593 = vld [vmem:[%s1587 + $0x14] sm:$0xf]
      %v1594 = vld [vmem:[%s1587 + $0x18] sm:$0xf]
      %v1595 = vld [vmem:[%s1587 + $0x1c] sm:$0xf]
      %v1604 = vunpack.c.l.b16 %v1588
      %v1605 = vunpack.c.l.b16 %v1589
      %v1606 = vunpack.c.l.b16 %v1590
      %v1607 = vunpack.c.l.b16 %v1591
      %v1608 = vunpack.c.l.b16 %v1592
      %v1609 = vunpack.c.l.b16 %v1593
      %v1610 = vunpack.c.l.b16 %v1594
      %v1611 = vunpack.c.l.b16 %v1595
      %v1612 = vpack.c.b16 %v1605, %v1604
      %v1613 = vpack.c.b16 %v1607, %v1606
      %v1614 = vpack.c.b16 %v1609, %v1608
      %v1615 = vpack.c.b16 %v1611, %v1610
      %v1617 = vcombine.high %v1586, %v1586
      %v1619 = vunpack.c.l.s4 1983009808
      %v1620 = vunpack.c.0.s8 %v1619
      %v1621 = vlaneseq
      %v1622 = vshrl.u32 %v1621, 7
      %v1623 = vsub.s32 %v1620, %v1622
      %v1624 = vrot.slane %v1586, %v1623
      %v1626 = vunpack.c.l.s4 1983009808
      %v1627 = vunpack.c.0.s8 %v1626
      %v1628 = vlaneseq
      %v1629 = vshrl.u32 %v1628, 7
      %v1630 = vsub.s32 %v1627, %v1629
      %v1631 = vrot.slane %v1617, %v1630
      %v1632 = vcombine.high %v1624, %v1624
      %1633 = vrot.lane.b32.xlu0 %v1624, 92
      %v1634 = vpop.permute.xlu0 %1633
      %1635 = vrot.lane.b32.xlu0 %v1632, 92
      %v1636 = vpop.permute.xlu0 %1635
      %1637 = vrot.lane.b32.xlu0 %v1631, 92
      %v1638 = vpop.permute.xlu0 %1637
      %vm1639 = vcmask 752640
      %v1640 = vsel %vm1639, %v1634, %v1636
      %v1641 = vsel %vm1639, %v1636, %v1638
      %v1643 = vsel %vm290, %v1612, 0
      %v1646 = vsel %vm290, %v1613, 0
      %v1649 = vsel %vm290, %v1614, 0
      %v1652 = vsel %vm290, %v1615, 0
      %v1655 = vsel %vm303, %v1640, 0
      %v1658 = vsel %vm303, %v1641, 0
      %v1661 = vsel %vm303, %v1638, 0
      %1663 = vmatprep.subr.bf16.mxu0 0
      %1664 = vmatpush1.bf16.msra.mxu0 0
      %1665 = vmatprep.subr.bf16.mxu0 0
      %1666 = vmatpush1.bf16.msra.mxu0 0
      %1667 = vmatprep.subr.bf16.mxu0 0
      %1668 = vmatpush1.bf16.msra.mxu0 0
      %1669 = vmatprep.subr.bf16.mxu0 0
      %1670 = vmatpush1.bf16.msra.mxu0 0
      %1671 = vmatprep.subr.bf16.mxu0 0
      %1672 = vmatpush1.bf16.msra.mxu0 0
      %1673 = vmatprep.subr.bf16.mxu0 0
      %1674 = vmatpush1.bf16.msra.mxu0 0
      %1675 = vmatprep.subr.bf16.mxu0 0
      %1676 = vmatpush1.bf16.msra.mxu0 0
      %1677 = vmatprep.subr.bf16.mxu0 %v1658
      %1678 = vmatpush1.bf16.msra.mxu0 %v1655
      %1679 = vmatprep.subr.bf16.mxu0 0
      %1680 = vmatpush2.bf16.msra.mxu0 0
      %1681 = vmatprep.subr.bf16.mxu0 0
      %1682 = vmatpush2.bf16.msra.mxu0 0
      %1683 = vmatprep.subr.bf16.mxu0 0
      %1684 = vmatpush2.bf16.msra.mxu0 0
      %1685 = vmatprep.subr.bf16.mxu0 0
      %1686 = vmatpush2.bf16.msra.mxu0 0
      %1687 = vmatprep.subr.bf16.mxu0 0
      %1688 = vmatpush2.bf16.msra.mxu0 0
      %1689 = vmatprep.subr.bf16.mxu0 0
      %1690 = vmatpush2.bf16.msra.mxu0 0
      %1691 = vmatprep.subr.bf16.mxu0 0
      %1692 = vmatpush2.bf16.msra.mxu0 0
      %1693 = vmatprep.subr.bf16.mxu0 0
      %1694 = vmatpush2.bf16.msra.mxu0 0
      %1695 = vmatprep.mubr.bf16.mxu0 0
      %1696 = vmatmul.mubr.bf16.gmra.mxu0 %v1643
      %v1697 = vpop.f32.mrf.mxu0
      %v1698 = vadd.f32 0.0, %v1697
      %v1699 = vpop.f32.mrf.mxu0
      %v1700 = vadd.f32 0.0, %v1699
      %v1701 = vpop.f32.mrf.mxu0
      %v1702 = vadd.f32 0.0, %v1701
      %v1703 = vpop.f32.mrf.mxu0
      %v1704 = vadd.f32 0.0, %v1703
      %1705 = vmatprep.mubr.bf16.mxu0 0
      %1706 = vmatmul.mubr.bf16.gmra.mxu0 %v1646
      %v1707 = vpop.f32.mrf.mxu0
      %v1708 = vadd.f32 0.0, %v1707
      %v1709 = vpop.f32.mrf.mxu0
      %v1710 = vadd.f32 0.0, %v1709
      %v1711 = vpop.f32.mrf.mxu0
      %v1712 = vadd.f32 0.0, %v1711
      %v1713 = vpop.f32.mrf.mxu0
      %v1714 = vadd.f32 0.0, %v1713
      %1715 = vmatprep.mubr.bf16.mxu0 0
      %1716 = vmatmul.mubr.bf16.gmra.mxu0 %v1649
      %v1717 = vpop.f32.mrf.mxu0
      %v1718 = vadd.f32 0.0, %v1717
      %v1719 = vpop.f32.mrf.mxu0
      %v1720 = vadd.f32 0.0, %v1719
      %v1721 = vpop.f32.mrf.mxu0
      %v1722 = vadd.f32 0.0, %v1721
      %v1723 = vpop.f32.mrf.mxu0
      %v1724 = vadd.f32 0.0, %v1723
      %1725 = vmatprep.mubr.bf16.mxu0 0
      %1726 = vmatmul.mubr.bf16.gmra.mxu0 %v1652
      %v1727 = vpop.f32.mrf.mxu0
      %v1728 = vadd.f32 0.0, %v1727
      %v1729 = vpop.f32.mrf.mxu0
      %v1730 = vadd.f32 0.0, %v1729
      %v1731 = vpop.f32.mrf.mxu0
      %v1732 = vadd.f32 0.0, %v1731
      %v1733 = vpop.f32.mrf.mxu0
      %v1734 = vadd.f32 0.0, %v1733
      %1735 = vdwg.mxu0
      %1736 = vmatprep.subr.bf16.mxu0 0
      %1737 = vmatpush1.bf16.msra.mxu0 0
      %1738 = vmatprep.subr.bf16.mxu0 0
      %1739 = vmatpush1.bf16.msra.mxu0 0
      %1740 = vmatprep.subr.bf16.mxu0 0
      %1741 = vmatpush1.bf16.msra.mxu0 0
      %1742 = vmatprep.subr.bf16.mxu0 0
      %1743 = vmatpush1.bf16.msra.mxu0 0
      %1744 = vmatprep.subr.bf16.mxu0 0
      %1745 = vmatpush1.bf16.msra.mxu0 0
      %1746 = vmatprep.subr.bf16.mxu0 0
      %1747 = vmatpush1.bf16.msra.mxu0 0
      %1748 = vmatprep.subr.bf16.mxu0 0
      %1749 = vmatpush1.bf16.msra.mxu0 0
      %1750 = vmatprep.subr.bf16.mxu0 0
      %1751 = vmatpush1.bf16.msra.mxu0 %v1661
      %1752 = vmatprep.subr.bf16.mxu0 0
      %1753 = vmatpush2.bf16.msra.mxu0 0
      %1754 = vmatprep.subr.bf16.mxu0 0
      %1755 = vmatpush2.bf16.msra.mxu0 0
      %1756 = vmatprep.subr.bf16.mxu0 0
      %1757 = vmatpush2.bf16.msra.mxu0 0
      %1758 = vmatprep.subr.bf16.mxu0 0
      %1759 = vmatpush2.bf16.msra.mxu0 0
      %1760 = vmatprep.subr.bf16.mxu0 0
      %1761 = vmatpush2.bf16.msra.mxu0 0
      %1762 = vmatprep.subr.bf16.mxu0 0
      %1763 = vmatpush2.bf16.msra.mxu0 0
      %1764 = vmatprep.subr.bf16.mxu0 0
      %1765 = vmatpush2.bf16.msra.mxu0 0
      %1766 = vmatprep.subr.bf16.mxu0 0
      %1767 = vmatpush2.bf16.msra.mxu0 0
      %1768 = vmatprep.mubr.bf16.mxu0 0
      %1769 = vmatmul.mubr.bf16.gmra.mxu0 %v1643
      %v1770 = vpop.f32.mrf.mxu0
      %v1771 = vadd.f32 0.0, %v1770
      %v1772 = vpop.f32.mrf.mxu0
      %v1773 = vpop.f32.mrf.mxu0
      %v1774 = vadd.f32 0.0, %v1773
      %v1775 = vpop.f32.mrf.mxu0
      %1776 = vmatprep.mubr.bf16.mxu0 0
      %1777 = vmatmul.mubr.bf16.gmra.mxu0 %v1646
      %v1778 = vpop.f32.mrf.mxu0
      %v1779 = vadd.f32 0.0, %v1778
      %v1780 = vpop.f32.mrf.mxu0
      %v1781 = vpop.f32.mrf.mxu0
      %v1782 = vadd.f32 0.0, %v1781
      %v1783 = vpop.f32.mrf.mxu0
      %1784 = vmatprep.mubr.bf16.mxu0 0
      %1785 = vmatmul.mubr.bf16.gmra.mxu0 %v1649
      %v1786 = vpop.f32.mrf.mxu0
      %v1787 = vadd.f32 0.0, %v1786
      %v1788 = vpop.f32.mrf.mxu0
      %v1789 = vpop.f32.mrf.mxu0
      %v1790 = vadd.f32 0.0, %v1789
      %v1791 = vpop.f32.mrf.mxu0
      %1792 = vmatprep.mubr.bf16.mxu0 0
      %1793 = vmatmul.mubr.bf16.gmra.mxu0 %v1652
      %v1794 = vpop.f32.mrf.mxu0
      %v1795 = vadd.f32 0.0, %v1794
      %v1796 = vpop.f32.mrf.mxu0
      %v1797 = vpop.f32.mrf.mxu0
      %v1798 = vadd.f32 0.0, %v1797
      %v1799 = vpop.f32.mrf.mxu0
      %1800 = vdwg.mxu0
      %v1801 = vadd.f32 %v1562, %v1698
      %v1802 = vadd.f32 %v1563, %v1700
      %v1803 = vadd.f32 %v1564, %v1771
      %v1804 = vadd.f32 %v1565, %v1702
      %v1805 = vadd.f32 %v1566, %v1704
      %v1806 = vadd.f32 %v1567, %v1774
      %v1807 = vadd.f32 %v1568, %v1708
      %v1808 = vadd.f32 %v1569, %v1710
      %v1809 = vadd.f32 %v1570, %v1779
      %v1810 = vadd.f32 %v1571, %v1712
      %v1811 = vadd.f32 %v1572, %v1714
      %v1812 = vadd.f32 %v1573, %v1782
      %v1813 = vadd.f32 %v1574, %v1718
      %v1814 = vadd.f32 %v1575, %v1720
      %v1815 = vadd.f32 %v1576, %v1787
      %v1816 = vadd.f32 %v1577, %v1722
      %v1817 = vadd.f32 %v1578, %v1724
      %v1818 = vadd.f32 %v1579, %v1790
      %v1819 = vadd.f32 %v1580, %v1728
      %v1820 = vadd.f32 %v1581, %v1730
      %v1821 = vadd.f32 %v1582, %v1795
      %v1822 = vadd.f32 %v1583, %v1732
      %v1823 = vadd.f32 %v1584, %v1734
      %v1824 = vadd.f32 %v1585, %v1798
      %v1825 = vld [vmem:[%s219] sm:$0x3f]
      %s1826 = scalar_lea.vmem %s1, 224
      %v1827 = vld [vmem:[%s1826] sm:$0xf]
      %v1828 = vld [vmem:[%s1826 + $0x4] sm:$0xf]
      %v1829 = vld [vmem:[%s1826 + $0x8] sm:$0xf]
      %v1830 = vld [vmem:[%s1826 + $0xc] sm:$0xf]
      %v1831 = vld [vmem:[%s1826 + $0x10] sm:$0xf]
      %v1832 = vld [vmem:[%s1826 + $0x14] sm:$0xf]
      %v1833 = vld [vmem:[%s1826 + $0x18] sm:$0xf]
      %v1834 = vld [vmem:[%s1826 + $0x1c] sm:$0xf]
      %v1843 = vunpack.c.l.b16 %v1827
      %v1844 = vunpack.c.l.b16 %v1828
      %v1845 = vunpack.c.l.b16 %v1829
      %v1846 = vunpack.c.l.b16 %v1830
      %v1847 = vunpack.c.l.b16 %v1831
      %v1848 = vunpack.c.l.b16 %v1832
      %v1849 = vunpack.c.l.b16 %v1833
      %v1850 = vunpack.c.l.b16 %v1834
      %v1851 = vpack.c.b16 %v1844, %v1843
      %v1852 = vpack.c.b16 %v1846, %v1845
      %v1853 = vpack.c.b16 %v1848, %v1847
      %v1854 = vpack.c.b16 %v1850, %v1849
      %v1856 = vcombine.high %v1825, %v1825
      %v1858 = vunpack.c.l.s4 1983009808
      %v1859 = vunpack.c.0.s8 %v1858
      %v1860 = vlaneseq
      %v1861 = vshrl.u32 %v1860, 7
      %v1862 = vsub.s32 %v1859, %v1861
      %v1863 = vrot.slane %v1825, %v1862
      %v1865 = vunpack.c.l.s4 1983009808
      %v1866 = vunpack.c.0.s8 %v1865
      %v1867 = vlaneseq
      %v1868 = vshrl.u32 %v1867, 7
      %v1869 = vsub.s32 %v1866, %v1868
      %v1870 = vrot.slane %v1856, %v1869
      %v1871 = vcombine.high %v1863, %v1863
      %1872 = vrot.lane.b32.xlu0 %v1863, 91
      %v1873 = vpop.permute.xlu0 %1872
      %1874 = vrot.lane.b32.xlu0 %v1871, 91
      %v1875 = vpop.permute.xlu0 %1874
      %1876 = vrot.lane.b32.xlu0 %v1870, 91
      %v1877 = vpop.permute.xlu0 %1876
      %vm1878 = vcmask 744448
      %v1879 = vsel %vm1878, %v1873, %v1875
      %v1880 = vsel %vm1878, %v1875, %v1877
      %v1882 = vsel %vm290, %v1851, 0
      %v1885 = vsel %vm290, %v1852, 0
      %v1888 = vsel %vm290, %v1853, 0
      %v1891 = vsel %vm290, %v1854, 0
      %v1894 = vsel %vm303, %v1879, 0
      %v1897 = vsel %vm303, %v1880, 0
      %v1900 = vsel %vm303, %v1877, 0
      %1902 = vmatprep.subr.bf16.mxu0 0
      %1903 = vmatpush1.bf16.msra.mxu0 0
      %1904 = vmatprep.subr.bf16.mxu0 0
      %1905 = vmatpush1.bf16.msra.mxu0 0
      %1906 = vmatprep.subr.bf16.mxu0 0
      %1907 = vmatpush1.bf16.msra.mxu0 0
      %1908 = vmatprep.subr.bf16.mxu0 0
      %1909 = vmatpush1.bf16.msra.mxu0 0
      %1910 = vmatprep.subr.bf16.mxu0 0
      %1911 = vmatpush1.bf16.msra.mxu0 0
      %1912 = vmatprep.subr.bf16.mxu0 0
      %1913 = vmatpush1.bf16.msra.mxu0 0
      %1914 = vmatprep.subr.bf16.mxu0 0
      %1915 = vmatpush1.bf16.msra.mxu0 0
      %1916 = vmatprep.subr.bf16.mxu0 %v1897
      %1917 = vmatpush1.bf16.msra.mxu0 %v1894
      %1918 = vmatprep.subr.bf16.mxu0 0
      %1919 = vmatpush2.bf16.msra.mxu0 0
      %1920 = vmatprep.subr.bf16.mxu0 0
      %1921 = vmatpush2.bf16.msra.mxu0 0
      %1922 = vmatprep.subr.bf16.mxu0 0
      %1923 = vmatpush2.bf16.msra.mxu0 0
      %1924 = vmatprep.subr.bf16.mxu0 0
      %1925 = vmatpush2.bf16.msra.mxu0 0
      %1926 = vmatprep.subr.bf16.mxu0 0
      %1927 = vmatpush2.bf16.msra.mxu0 0
      %1928 = vmatprep.subr.bf16.mxu0 0
      %1929 = vmatpush2.bf16.msra.mxu0 0
      %1930 = vmatprep.subr.bf16.mxu0 0
      %1931 = vmatpush2.bf16.msra.mxu0 0
      %1932 = vmatprep.subr.bf16.mxu0 0
      %1933 = vmatpush2.bf16.msra.mxu0 0
      %1934 = vmatprep.mubr.bf16.mxu0 0
      %1935 = vmatmul.mubr.bf16.gmra.mxu0 %v1882
      %v1936 = vpop.f32.mrf.mxu0
      %v1937 = vadd.f32 0.0, %v1936
      %v1938 = vpop.f32.mrf.mxu0
      %v1939 = vadd.f32 0.0, %v1938
      %v1940 = vpop.f32.mrf.mxu0
      %v1941 = vadd.f32 0.0, %v1940
      %v1942 = vpop.f32.mrf.mxu0
      %v1943 = vadd.f32 0.0, %v1942
      %1944 = vmatprep.mubr.bf16.mxu0 0
      %1945 = vmatmul.mubr.bf16.gmra.mxu0 %v1885
      %v1946 = vpop.f32.mrf.mxu0
      %v1947 = vadd.f32 0.0, %v1946
      %v1948 = vpop.f32.mrf.mxu0
      %v1949 = vadd.f32 0.0, %v1948
      %v1950 = vpop.f32.mrf.mxu0
      %v1951 = vadd.f32 0.0, %v1950
      %v1952 = vpop.f32.mrf.mxu0
      %v1953 = vadd.f32 0.0, %v1952
      %1954 = vmatprep.mubr.bf16.mxu0 0
      %1955 = vmatmul.mubr.bf16.gmra.mxu0 %v1888
      %v1956 = vpop.f32.mrf.mxu0
      %v1957 = vadd.f32 0.0, %v1956
      %v1958 = vpop.f32.mrf.mxu0
      %v1959 = vadd.f32 0.0, %v1958
      %v1960 = vpop.f32.mrf.mxu0
      %v1961 = vadd.f32 0.0, %v1960
      %v1962 = vpop.f32.mrf.mxu0
      %v1963 = vadd.f32 0.0, %v1962
      %1964 = vmatprep.mubr.bf16.mxu0 0
      %1965 = vmatmul.mubr.bf16.gmra.mxu0 %v1891
      %v1966 = vpop.f32.mrf.mxu0
      %v1967 = vadd.f32 0.0, %v1966
      %v1968 = vpop.f32.mrf.mxu0
      %v1969 = vadd.f32 0.0, %v1968
      %v1970 = vpop.f32.mrf.mxu0
      %v1971 = vadd.f32 0.0, %v1970
      %v1972 = vpop.f32.mrf.mxu0
      %v1973 = vadd.f32 0.0, %v1972
      %1974 = vdwg.mxu0
      %1975 = vmatprep.subr.bf16.mxu0 0
      %1976 = vmatpush1.bf16.msra.mxu0 0
      %1977 = vmatprep.subr.bf16.mxu0 0
      %1978 = vmatpush1.bf16.msra.mxu0 0
      %1979 = vmatprep.subr.bf16.mxu0 0
      %1980 = vmatpush1.bf16.msra.mxu0 0
      %1981 = vmatprep.subr.bf16.mxu0 0
      %1982 = vmatpush1.bf16.msra.mxu0 0
      %1983 = vmatprep.subr.bf16.mxu0 0
      %1984 = vmatpush1.bf16.msra.mxu0 0
      %1985 = vmatprep.subr.bf16.mxu0 0
      %1986 = vmatpush1.bf16.msra.mxu0 0
      %1987 = vmatprep.subr.bf16.mxu0 0
      %1988 = vmatpush1.bf16.msra.mxu0 0
      %1989 = vmatprep.subr.bf16.mxu0 0
      %1990 = vmatpush1.bf16.msra.mxu0 %v1900
      %1991 = vmatprep.subr.bf16.mxu0 0
      %1992 = vmatpush2.bf16.msra.mxu0 0
      %1993 = vmatprep.subr.bf16.mxu0 0
      %1994 = vmatpush2.bf16.msra.mxu0 0
      %1995 = vmatprep.subr.bf16.mxu0 0
      %1996 = vmatpush2.bf16.msra.mxu0 0
      %1997 = vmatprep.subr.bf16.mxu0 0
      %1998 = vmatpush2.bf16.msra.mxu0 0
      %1999 = vmatprep.subr.bf16.mxu0 0
      %2000 = vmatpush2.bf16.msra.mxu0 0
      %2001 = vmatprep.subr.bf16.mxu0 0
      %2002 = vmatpush2.bf16.msra.mxu0 0
      %2003 = vmatprep.subr.bf16.mxu0 0
      %2004 = vmatpush2.bf16.msra.mxu0 0
      %2005 = vmatprep.subr.bf16.mxu0 0
      %2006 = vmatpush2.bf16.msra.mxu0 0
      %2007 = vmatprep.mubr.bf16.mxu0 0
      %2008 = vmatmul.mubr.bf16.gmra.mxu0 %v1882
      %v2009 = vpop.f32.mrf.mxu0
      %v2010 = vadd.f32 0.0, %v2009
      %v2011 = vpop.f32.mrf.mxu0
      %v2012 = vpop.f32.mrf.mxu0
      %v2013 = vadd.f32 0.0, %v2012
      %v2014 = vpop.f32.mrf.mxu0
      %2015 = vmatprep.mubr.bf16.mxu0 0
      %2016 = vmatmul.mubr.bf16.gmra.mxu0 %v1885
      %v2017 = vpop.f32.mrf.mxu0
      %v2018 = vadd.f32 0.0, %v2017
      %v2019 = vpop.f32.mrf.mxu0
      %v2020 = vpop.f32.mrf.mxu0
      %v2021 = vadd.f32 0.0, %v2020
      %v2022 = vpop.f32.mrf.mxu0
      %2023 = vmatprep.mubr.bf16.mxu0 0
      %2024 = vmatmul.mubr.bf16.gmra.mxu0 %v1888
      %v2025 = vpop.f32.mrf.mxu0
      %v2026 = vadd.f32 0.0, %v2025
      %v2027 = vpop.f32.mrf.mxu0
      %v2028 = vpop.f32.mrf.mxu0
      %v2029 = vadd.f32 0.0, %v2028
      %v2030 = vpop.f32.mrf.mxu0
      %2031 = vmatprep.mubr.bf16.mxu0 0
      %2032 = vmatmul.mubr.bf16.gmra.mxu0 %v1891
      %v2033 = vpop.f32.mrf.mxu0
      %v2034 = vadd.f32 0.0, %v2033
      %v2035 = vpop.f32.mrf.mxu0
      %v2036 = vpop.f32.mrf.mxu0
      %v2037 = vadd.f32 0.0, %v2036
      %v2038 = vpop.f32.mrf.mxu0
      %2039 = vdwg.mxu0
      %v2040 = vadd.f32 %v1801, %v1937
      %v2041 = vadd.f32 %v1802, %v1939
      %v2042 = vadd.f32 %v1803, %v2010
      %v2043 = vadd.f32 %v1804, %v1941
      %v2044 = vadd.f32 %v1805, %v1943
      %v2045 = vadd.f32 %v1806, %v2013
      %v2046 = vadd.f32 %v1807, %v1947
      %v2047 = vadd.f32 %v1808, %v1949
      %v2048 = vadd.f32 %v1809, %v2018
      %v2049 = vadd.f32 %v1810, %v1951
      %v2050 = vadd.f32 %v1811, %v1953
      %v2051 = vadd.f32 %v1812, %v2021
      %v2052 = vadd.f32 %v1813, %v1957
      %v2053 = vadd.f32 %v1814, %v1959
      %v2054 = vadd.f32 %v1815, %v2026
      %v2055 = vadd.f32 %v1816, %v1961
      %v2056 = vadd.f32 %v1817, %v1963
      %v2057 = vadd.f32 %v1818, %v2029
      %v2058 = vadd.f32 %v1819, %v1967
      %v2059 = vadd.f32 %v1820, %v1969
      %v2060 = vadd.f32 %v1821, %v2034
      %v2061 = vadd.f32 %v1822, %v1971
      %v2062 = vadd.f32 %v1823, %v1973
      %v2063 = vadd.f32 %v1824, %v2037
      %v2064 = vld [vmem:[%s219] sm:$0x3f]
      %s2065 = scalar_lea.vmem %s1, 256
      %v2066 = vld [vmem:[%s2065] sm:$0xf]
      %v2067 = vld [vmem:[%s2065 + $0x4] sm:$0xf]
      %v2068 = vld [vmem:[%s2065 + $0x8] sm:$0xf]
      %v2069 = vld [vmem:[%s2065 + $0xc] sm:$0xf]
      %v2070 = vld [vmem:[%s2065 + $0x10] sm:$0xf]
      %v2071 = vld [vmem:[%s2065 + $0x14] sm:$0xf]
      %v2072 = vld [vmem:[%s2065 + $0x18] sm:$0xf]
      %v2073 = vld [vmem:[%s2065 + $0x1c] sm:$0xf]
      %v2082 = vunpack.c.l.b16 %v2066
      %v2083 = vunpack.c.l.b16 %v2067
      %v2084 = vunpack.c.l.b16 %v2068
      %v2085 = vunpack.c.l.b16 %v2069
      %v2086 = vunpack.c.l.b16 %v2070
      %v2087 = vunpack.c.l.b16 %v2071
      %v2088 = vunpack.c.l.b16 %v2072
      %v2089 = vunpack.c.l.b16 %v2073
      %v2090 = vpack.c.b16 %v2083, %v2082
      %v2091 = vpack.c.b16 %v2085, %v2084
      %v2092 = vpack.c.b16 %v2087, %v2086
      %v2093 = vpack.c.b16 %v2089, %v2088
      %v2095 = vcombine.high %v2064, %v2064
      %v2097 = vunpack.c.l.s4 1983009808
      %v2098 = vunpack.c.0.s8 %v2097
      %v2099 = vlaneseq
      %v2100 = vshrl.u32 %v2099, 7
      %v2101 = vsub.s32 %v2098, %v2100
      %v2102 = vrot.slane %v2064, %v2101
      %v2104 = vunpack.c.l.s4 1983009808
      %v2105 = vunpack.c.0.s8 %v2104
      %v2106 = vlaneseq
      %v2107 = vshrl.u32 %v2106, 7
      %v2108 = vsub.s32 %v2105, %v2107
      %v2109 = vrot.slane %v2095, %v2108
      %v2110 = vcombine.high %v2102, %v2102
      %2111 = vrot.lane.b32.xlu0 %v2102, 90
      %v2112 = vpop.permute.xlu0 %2111
      %2113 = vrot.lane.b32.xlu0 %v2110, 90
      %v2114 = vpop.permute.xlu0 %2113
      %2115 = vrot.lane.b32.xlu0 %v2109, 90
      %v2116 = vpop.permute.xlu0 %2115
      %vm2117 = vcmask 736256
      %v2118 = vsel %vm2117, %v2112, %v2114
      %v2119 = vsel %vm2117, %v2114, %v2116
      %v2121 = vsel %vm290, %v2090, 0
      %v2124 = vsel %vm290, %v2091, 0
      %v2127 = vsel %vm290, %v2092, 0
      %v2130 = vsel %vm290, %v2093, 0
      %v2133 = vsel %vm303, %v2118, 0
      %v2136 = vsel %vm303, %v2119, 0
      %v2139 = vsel %vm303, %v2116, 0
      %2141 = vmatprep.subr.bf16.mxu0 0
      %2142 = vmatpush1.bf16.msra.mxu0 0
      %2143 = vmatprep.subr.bf16.mxu0 0
      %2144 = vmatpush1.bf16.msra.mxu0 0
      %2145 = vmatprep.subr.bf16.mxu0 0
      %2146 = vmatpush1.bf16.msra.mxu0 0
      %2147 = vmatprep.subr.bf16.mxu0 0
      %2148 = vmatpush1.bf16.msra.mxu0 0
      %2149 = vmatprep.subr.bf16.mxu0 0
      %2150 = vmatpush1.bf16.msra.mxu0 0
      %2151 = vmatprep.subr.bf16.mxu0 0
      %2152 = vmatpush1.bf16.msra.mxu0 0
      %2153 = vmatprep.subr.bf16.mxu0 0
      %2154 = vmatpush1.bf16.msra.mxu0 0
      %2155 = vmatprep.subr.bf16.mxu0 %v2136
      %2156 = vmatpush1.bf16.msra.mxu0 %v2133
      %2157 = vmatprep.subr.bf16.mxu0 0
      %2158 = vmatpush2.bf16.msra.mxu0 0
      %2159 = vmatprep.subr.bf16.mxu0 0
      %2160 = vmatpush2.bf16.msra.mxu0 0
      %2161 = vmatprep.subr.bf16.mxu0 0
      %2162 = vmatpush2.bf16.msra.mxu0 0
      %2163 = vmatprep.subr.bf16.mxu0 0
      %2164 = vmatpush2.bf16.msra.mxu0 0
      %2165 = vmatprep.subr.bf16.mxu0 0
      %2166 = vmatpush2.bf16.msra.mxu0 0
      %2167 = vmatprep.subr.bf16.mxu0 0
      %2168 = vmatpush2.bf16.msra.mxu0 0
      %2169 = vmatprep.subr.bf16.mxu0 0
      %2170 = vmatpush2.bf16.msra.mxu0 0
      %2171 = vmatprep.subr.bf16.mxu0 0
      %2172 = vmatpush2.bf16.msra.mxu0 0
      %2173 = vmatprep.mubr.bf16.mxu0 0
      %2174 = vmatmul.mubr.bf16.gmra.mxu0 %v2121
      %v2175 = vpop.f32.mrf.mxu0
      %v2176 = vadd.f32 0.0, %v2175
      %v2177 = vpop.f32.mrf.mxu0
      %v2178 = vadd.f32 0.0, %v2177
      %v2179 = vpop.f32.mrf.mxu0
      %v2180 = vadd.f32 0.0, %v2179
      %v2181 = vpop.f32.mrf.mxu0
      %v2182 = vadd.f32 0.0, %v2181
      %2183 = vmatprep.mubr.bf16.mxu0 0
      %2184 = vmatmul.mubr.bf16.gmra.mxu0 %v2124
      %v2185 = vpop.f32.mrf.mxu0
      %v2186 = vadd.f32 0.0, %v2185
      %v2187 = vpop.f32.mrf.mxu0
      %v2188 = vadd.f32 0.0, %v2187
      %v2189 = vpop.f32.mrf.mxu0
      %v2190 = vadd.f32 0.0, %v2189
      %v2191 = vpop.f32.mrf.mxu0
      %v2192 = vadd.f32 0.0, %v2191
      %2193 = vmatprep.mubr.bf16.mxu0 0
      %2194 = vmatmul.mubr.bf16.gmra.mxu0 %v2127
      %v2195 = vpop.f32.mrf.mxu0
      %v2196 = vadd.f32 0.0, %v2195
      %v2197 = vpop.f32.mrf.mxu0
      %v2198 = vadd.f32 0.0, %v2197
      %v2199 = vpop.f32.mrf.mxu0
      %v2200 = vadd.f32 0.0, %v2199
      %v2201 = vpop.f32.mrf.mxu0
      %v2202 = vadd.f32 0.0, %v2201
      %2203 = vmatprep.mubr.bf16.mxu0 0
      %2204 = vmatmul.mubr.bf16.gmra.mxu0 %v2130
      %v2205 = vpop.f32.mrf.mxu0
      %v2206 = vadd.f32 0.0, %v2205
      %v2207 = vpop.f32.mrf.mxu0
      %v2208 = vadd.f32 0.0, %v2207
      %v2209 = vpop.f32.mrf.mxu0
      %v2210 = vadd.f32 0.0, %v2209
      %v2211 = vpop.f32.mrf.mxu0
      %v2212 = vadd.f32 0.0, %v2211
      %2213 = vdwg.mxu0
      %2214 = vmatprep.subr.bf16.mxu0 0
      %2215 = vmatpush1.bf16.msra.mxu0 0
      %2216 = vmatprep.subr.bf16.mxu0 0
      %2217 = vmatpush1.bf16.msra.mxu0 0
      %2218 = vmatprep.subr.bf16.mxu0 0
      %2219 = vmatpush1.bf16.msra.mxu0 0
      %2220 = vmatprep.subr.bf16.mxu0 0
      %2221 = vmatpush1.bf16.msra.mxu0 0
      %2222 = vmatprep.subr.bf16.mxu0 0
      %2223 = vmatpush1.bf16.msra.mxu0 0
      %2224 = vmatprep.subr.bf16.mxu0 0
      %2225 = vmatpush1.bf16.msra.mxu0 0
      %2226 = vmatprep.subr.bf16.mxu0 0
      %2227 = vmatpush1.bf16.msra.mxu0 0
      %2228 = vmatprep.subr.bf16.mxu0 0
      %2229 = vmatpush1.bf16.msra.mxu0 %v2139
      %2230 = vmatprep.subr.bf16.mxu0 0
      %2231 = vmatpush2.bf16.msra.mxu0 0
      %2232 = vmatprep.subr.bf16.mxu0 0
      %2233 = vmatpush2.bf16.msra.mxu0 0
      %2234 = vmatprep.subr.bf16.mxu0 0
      %2235 = vmatpush2.bf16.msra.mxu0 0
      %2236 = vmatprep.subr.bf16.mxu0 0
      %2237 = vmatpush2.bf16.msra.mxu0 0
      %2238 = vmatprep.subr.bf16.mxu0 0
      %2239 = vmatpush2.bf16.msra.mxu0 0
      %2240 = vmatprep.subr.bf16.mxu0 0
      %2241 = vmatpush2.bf16.msra.mxu0 0
      %2242 = vmatprep.subr.bf16.mxu0 0
      %2243 = vmatpush2.bf16.msra.mxu0 0
      %2244 = vmatprep.subr.bf16.mxu0 0
      %2245 = vmatpush2.bf16.msra.mxu0 0
      %2246 = vmatprep.mubr.bf16.mxu0 0
      %2247 = vmatmul.mubr.bf16.gmra.mxu0 %v2121
      %v2248 = vpop.f32.mrf.mxu0
      %v2249 = vadd.f32 0.0, %v2248
      %v2250 = vpop.f32.mrf.mxu0
      %v2251 = vpop.f32.mrf.mxu0
      %v2252 = vadd.f32 0.0, %v2251
      %v2253 = vpop.f32.mrf.mxu0
      %2254 = vmatprep.mubr.bf16.mxu0 0
      %2255 = vmatmul.mubr.bf16.gmra.mxu0 %v2124
      %v2256 = vpop.f32.mrf.mxu0
      %v2257 = vadd.f32 0.0, %v2256
      %v2258 = vpop.f32.mrf.mxu0
      %v2259 = vpop.f32.mrf.mxu0
      %v2260 = vadd.f32 0.0, %v2259
      %v2261 = vpop.f32.mrf.mxu0
      %2262 = vmatprep.mubr.bf16.mxu0 0
      %2263 = vmatmul.mubr.bf16.gmra.mxu0 %v2127
      %v2264 = vpop.f32.mrf.mxu0
      %v2265 = vadd.f32 0.0, %v2264
      %v2266 = vpop.f32.mrf.mxu0
      %v2267 = vpop.f32.mrf.mxu0
      %v2268 = vadd.f32 0.0, %v2267
      %v2269 = vpop.f32.mrf.mxu0
      %2270 = vmatprep.mubr.bf16.mxu0 0
      %2271 = vmatmul.mubr.bf16.gmra.mxu0 %v2130
      %v2272 = vpop.f32.mrf.mxu0
      %v2273 = vadd.f32 0.0, %v2272
      %v2274 = vpop.f32.mrf.mxu0
      %v2275 = vpop.f32.mrf.mxu0
      %v2276 = vadd.f32 0.0, %v2275
      %v2277 = vpop.f32.mrf.mxu0
      %2278 = vdwg.mxu0
      %v2279 = vadd.f32 %v2040, %v2176
      %v2280 = vadd.f32 %v2041, %v2178
      %v2281 = vadd.f32 %v2042, %v2249
      %v2282 = vadd.f32 %v2043, %v2180
      %v2283 = vadd.f32 %v2044, %v2182
      %v2284 = vadd.f32 %v2045, %v2252
      %v2285 = vadd.f32 %v2046, %v2186
      %v2286 = vadd.f32 %v2047, %v2188
      %v2287 = vadd.f32 %v2048, %v2257
      %v2288 = vadd.f32 %v2049, %v2190
      %v2289 = vadd.f32 %v2050, %v2192
      %v2290 = vadd.f32 %v2051, %v2260
      %v2291 = vadd.f32 %v2052, %v2196
      %v2292 = vadd.f32 %v2053, %v2198
      %v2293 = vadd.f32 %v2054, %v2265
      %v2294 = vadd.f32 %v2055, %v2200
      %v2295 = vadd.f32 %v2056, %v2202
      %v2296 = vadd.f32 %v2057, %v2268
      %v2297 = vadd.f32 %v2058, %v2206
      %v2298 = vadd.f32 %v2059, %v2208
      %v2299 = vadd.f32 %v2060, %v2273
      %v2300 = vadd.f32 %v2061, %v2210
      %v2301 = vadd.f32 %v2062, %v2212
      %v2302 = vadd.f32 %v2063, %v2276
      %v2303 = vld [vmem:[%s2] sm:$0xff]
      %v2304 = vld [vmem:[%s2 + $0x8] sm:$0xff]
      %v2305 = vld [vmem:[%s2 + $0x10] sm:$0xff]
      %v2306 = vld [vmem:[%s2 + $0x18] sm:$0xff]
      %v2307 = vld [vmem:[%s2 + $0x20] sm:$0xff]
      %v2308 = vld [vmem:[%s2 + $0x28] sm:$0xff]
      %v2309 = vld [vmem:[%s2 + $0x30] sm:$0xff]
      %v2310 = vld [vmem:[%s2 + $0x38] sm:$0xff]
      %2312 = vset.pattern.permute.xlu0 0
      %2313 = vperm.xlu0 %2312, %v2303
      %v2314 = vpop.permute.xlu0 %2313
      %2317 = vset.pattern.permute.xlu0 0
      %2318 = vperm.xlu0 %2317, %v2304
      %v2319 = vpop.permute.xlu0 %2318
      %2322 = vset.pattern.permute.xlu0 0
      %2323 = vperm.xlu0 %2322, %v2305
      %v2324 = vpop.permute.xlu0 %2323
      %2327 = vset.pattern.permute.xlu0 0
      %2328 = vperm.xlu0 %2327, %v2306
      %v2329 = vpop.permute.xlu0 %2328
      %2332 = vset.pattern.permute.xlu0 0
      %2333 = vperm.xlu0 %2332, %v2307
      %v2334 = vpop.permute.xlu0 %2333
      %2337 = vset.pattern.permute.xlu0 0
      %2338 = vperm.xlu0 %2337, %v2308
      %v2339 = vpop.permute.xlu0 %2338
      %2342 = vset.pattern.permute.xlu0 0
      %2343 = vperm.xlu0 %2342, %v2309
      %v2344 = vpop.permute.xlu0 %2343
      %2347 = vset.pattern.permute.xlu0 0
      %2348 = vperm.xlu0 %2347, %v2310
      %v2349 = vpop.permute.xlu0 %2348
      %v2351 = vadd.f32 %v2279, %v2314
      %v2352 = vadd.f32 %v2280, %v2314
      %v2353 = vadd.f32 %v2281, %v2314
      %v2354 = vadd.f32 %v2282, %v2319
      %v2355 = vadd.f32 %v2283, %v2319
      %v2356 = vadd.f32 %v2284, %v2319
      %v2357 = vadd.f32 %v2285, %v2324
      %v2358 = vadd.f32 %v2286, %v2324
      %v2359 = vadd.f32 %v2287, %v2324
      %v2360 = vadd.f32 %v2288, %v2329
      %v2361 = vadd.f32 %v2289, %v2329
      %v2362 = vadd.f32 %v2290, %v2329
      %v2363 = vadd.f32 %v2291, %v2334
      %v2364 = vadd.f32 %v2292, %v2334
      %v2365 = vadd.f32 %v2293, %v2334
      %v2366 = vadd.f32 %v2294, %v2339
      %v2367 = vadd.f32 %v2295, %v2339
      %v2368 = vadd.f32 %v2296, %v2339
      %v2369 = vadd.f32 %v2297, %v2344
      %v2370 = vadd.f32 %v2298, %v2344
      %v2371 = vadd.f32 %v2299, %v2344
      %v2372 = vadd.f32 %v2300, %v2349
      %v2373 = vadd.f32 %v2301, %v2349
      %v2374 = vadd.f32 %v2302, %v2349
      %v2375 = vmax.f32 %v2351, 0.0
      %v2376 = vmax.f32 %v2352, 0.0
      %v2377 = vmax.f32 %v2353, 0.0
      %v2378 = vmax.f32 %v2354, 0.0
      %v2379 = vmax.f32 %v2355, 0.0
      %v2380 = vmax.f32 %v2356, 0.0
      %v2381 = vmax.f32 %v2357, 0.0
      %v2382 = vmax.f32 %v2358, 0.0
      %v2383 = vmax.f32 %v2359, 0.0
      %v2384 = vmax.f32 %v2360, 0.0
      %v2385 = vmax.f32 %v2361, 0.0
      %v2386 = vmax.f32 %v2362, 0.0
      %v2387 = vmax.f32 %v2363, 0.0
      %v2388 = vmax.f32 %v2364, 0.0
      %v2389 = vmax.f32 %v2365, 0.0
      %v2390 = vmax.f32 %v2366, 0.0
      %v2391 = vmax.f32 %v2367, 0.0
      %v2392 = vmax.f32 %v2368, 0.0
      %v2393 = vmax.f32 %v2369, 0.0
      %v2394 = vmax.f32 %v2370, 0.0
      %v2395 = vmax.f32 %v2371, 0.0
      %v2396 = vmax.f32 %v2372, 0.0
      %v2397 = vmax.f32 %v2373, 0.0
      %v2398 = vmax.f32 %v2374, 0.0
      %v2399 = vld [vmem:[%s3] sm:$0xff]
      %v2400 = vld [vmem:[%s3 + $0x8] sm:$0xff]
      %v2401 = vld [vmem:[%s3 + $0x10] sm:$0xff]
      %v2402 = vld [vmem:[%s3 + $0x18] sm:$0xff]
      %v2403 = vld [vmem:[%s3 + $0x20] sm:$0xff]
      %v2404 = vld [vmem:[%s3 + $0x28] sm:$0xff]
      %v2405 = vld [vmem:[%s3 + $0x30] sm:$0xff]
      %v2406 = vld [vmem:[%s3 + $0x38] sm:$0xff]
      %v2407 = vld [vmem:[%s3 + $0x40] sm:$0xff]
      %v2408 = vld [vmem:[%s3 + $0x48] sm:$0xff]
      %v2409 = vld [vmem:[%s3 + $0x50] sm:$0xff]
      %v2410 = vld [vmem:[%s3 + $0x58] sm:$0xff]
      %v2411 = vld [vmem:[%s3 + $0x60] sm:$0xff]
      %v2412 = vld [vmem:[%s3 + $0x68] sm:$0xff]
      %v2413 = vld [vmem:[%s3 + $0x70] sm:$0xff]
      %v2414 = vld [vmem:[%s3 + $0x78] sm:$0xff]
      %v2415 = vld [vmem:[%s3 + $0x80] sm:$0xff]
      %v2416 = vld [vmem:[%s3 + $0x88] sm:$0xff]
      %v2417 = vld [vmem:[%s3 + $0x90] sm:$0xff]
      %v2418 = vld [vmem:[%s3 + $0x98] sm:$0xff]
      %v2419 = vld [vmem:[%s3 + $0xa0] sm:$0xff]
      %v2420 = vld [vmem:[%s3 + $0xa8] sm:$0xff]
      %v2421 = vld [vmem:[%s3 + $0xb0] sm:$0xff]
      %v2422 = vld [vmem:[%s3 + $0xb8] sm:$0xff]
      %v2423 = vld [vmem:[%s3 + $0xc0] sm:$0xff]
      %v2424 = vld [vmem:[%s3 + $0xc8] sm:$0xff]
      %v2425 = vld [vmem:[%s3 + $0xd0] sm:$0xff]
      %v2426 = vld [vmem:[%s3 + $0xd8] sm:$0xff]
      %v2427 = vld [vmem:[%s3 + $0xe0] sm:$0xff]
      %v2428 = vld [vmem:[%s3 + $0xe8] sm:$0xff]
      %v2429 = vld [vmem:[%s3 + $0xf0] sm:$0xff]
      %v2430 = vld [vmem:[%s3 + $0xf8] sm:$0xff]
      %v2431 = vld [vmem:[%s3 + $0x100] sm:$0xff]
      %v2432 = vld [vmem:[%s3 + $0x108] sm:$0xff]
      %v2433 = vld [vmem:[%s3 + $0x110] sm:$0xff]
      %v2434 = vld [vmem:[%s3 + $0x118] sm:$0xff]
      %vm2435 = vcmask 261120
      %v2437 = vsel %vm2435, %v2377, 0
      %v2440 = vsel %vm2435, %v2380, 0
      %v2443 = vsel %vm2435, %v2383, 0
      %v2446 = vsel %vm2435, %v2386, 0
      %v2449 = vsel %vm2435, %v2389, 0
      %v2452 = vsel %vm2435, %v2392, 0
      %v2455 = vsel %vm2435, %v2395, 0
      %v2458 = vsel %vm2435, %v2398, 0
      %2460 = vmatprep.subr.mxu0 0.0
      %2461 = vmatpush1.msra.mxu0 %v2414
      %2462 = vmatprep.subr.mxu0 0.0
      %2463 = vmatpush1.msra.mxu0 %v2413
      %2464 = vmatprep.subr.mxu0 0.0
      %2465 = vmatpush1.msra.mxu0 %v2412
      %2466 = vmatprep.subr.mxu0 0.0
      %2467 = vmatpush1.msra.mxu0 %v2411
      %2468 = vmatprep.subr.mxu0 0.0
      %2469 = vmatpush1.msra.mxu0 %v2410
      %2470 = vmatprep.subr.mxu0 0.0
      %2471 = vmatpush1.msra.mxu0 %v2409
      %2472 = vmatprep.subr.mxu0 0.0
      %2473 = vmatpush1.msra.mxu0 %v2408
      %2474 = vmatprep.subr.mxu0 0.0
      %2475 = vmatpush1.msra.mxu0 %v2407
      %2476 = vmatprep.subr.mxu0 0.0
      %2477 = vmatpush1.msra.mxu0 %v2406
      %2478 = vmatprep.subr.mxu0 0.0
      %2479 = vmatpush1.msra.mxu0 %v2405
      %2480 = vmatprep.subr.mxu0 0.0
      %2481 = vmatpush1.msra.mxu0 %v2404
      %2482 = vmatprep.subr.mxu0 0.0
      %2483 = vmatpush1.msra.mxu0 %v2403
      %2484 = vmatprep.subr.mxu0 0.0
      %2485 = vmatpush1.msra.mxu0 %v2402
      %2486 = vmatprep.subr.mxu0 0.0
      %2487 = vmatpush1.msra.mxu0 %v2401
      %2488 = vmatprep.subr.mxu0 0.0
      %2489 = vmatpush1.msra.mxu0 %v2400
      %2490 = vmatprep.subr.mxu0 0.0
      %2491 = vmatpush1.msra.mxu0 %v2399
      %2492 = vmatprep.subr.mxu0 0.0
      %2493 = vmatpush2.msra.mxu0 %v2430
      %2494 = vmatprep.subr.mxu0 0.0
      %2495 = vmatpush2.msra.mxu0 %v2429
      %2496 = vmatprep.subr.mxu0 0.0
      %2497 = vmatpush2.msra.mxu0 %v2428
      %2498 = vmatprep.subr.mxu0 0.0
      %2499 = vmatpush2.msra.mxu0 %v2427
      %2500 = vmatprep.subr.mxu0 0.0
      %2501 = vmatpush2.msra.mxu0 %v2426
      %2502 = vmatprep.subr.mxu0 0.0
      %2503 = vmatpush2.msra.mxu0 %v2425
      %2504 = vmatprep.subr.mxu0 0.0
      %2505 = vmatpush2.msra.mxu0 %v2424
      %2506 = vmatprep.subr.mxu0 0.0
      %2507 = vmatpush2.msra.mxu0 %v2423
      %2508 = vmatprep.subr.mxu0 0.0
      %2509 = vmatpush2.msra.mxu0 %v2422
      %2510 = vmatprep.subr.mxu0 0.0
      %2511 = vmatpush2.msra.mxu0 %v2421
      %2512 = vmatprep.subr.mxu0 0.0
      %2513 = vmatpush2.msra.mxu0 %v2420
      %2514 = vmatprep.subr.mxu0 0.0
      %2515 = vmatpush2.msra.mxu0 %v2419
      %2516 = vmatprep.subr.mxu0 0.0
      %2517 = vmatpush2.msra.mxu0 %v2418
      %2518 = vmatprep.subr.mxu0 0.0
      %2519 = vmatpush2.msra.mxu0 %v2417
      %2520 = vmatprep.subr.mxu0 0.0
      %2521 = vmatpush2.msra.mxu0 %v2416
      %2522 = vmatprep.subr.mxu0 0.0
      %2523 = vmatpush2.msra.mxu0 %v2415
      %2524 = vmatprep.mubr.f32.mxu0 %v2376
      %2525 = vmatmul.mubr.f32.gmra.mxu0 %v2375
      %v2526 = vpop.f32.mrf.mxu0
      %v2527 = vadd.f32 0.0, %v2526
      %v2528 = vpop.f32.mrf.mxu0
      %2529 = vmatprep.mubr.f32.mxu0 %v2379
      %2530 = vmatmul.mubr.f32.gmra.mxu0 %v2378
      %v2531 = vpop.f32.mrf.mxu0
      %v2532 = vadd.f32 0.0, %v2531
      %v2533 = vpop.f32.mrf.mxu0
      %2534 = vmatprep.mubr.f32.mxu0 %v2382
      %2535 = vmatmul.mubr.f32.gmra.mxu0 %v2381
      %v2536 = vpop.f32.mrf.mxu0
      %v2537 = vadd.f32 0.0, %v2536
      %v2538 = vpop.f32.mrf.mxu0
      %2539 = vmatprep.mubr.f32.mxu0 %v2385
      %2540 = vmatmul.mubr.f32.gmra.mxu0 %v2384
      %v2541 = vpop.f32.mrf.mxu0
      %v2542 = vadd.f32 0.0, %v2541
      %v2543 = vpop.f32.mrf.mxu0
      %2544 = vmatprep.mubr.f32.mxu0 %v2388
      %2545 = vmatmul.mubr.f32.gmra.mxu0 %v2387
      %v2546 = vpop.f32.mrf.mxu0
      %v2547 = vadd.f32 0.0, %v2546
      %v2548 = vpop.f32.mrf.mxu0
      %2549 = vmatprep.mubr.f32.mxu0 %v2391
      %2550 = vmatmul.mubr.f32.gmra.mxu0 %v2390
      %v2551 = vpop.f32.mrf.mxu0
      %v2552 = vadd.f32 0.0, %v2551
      %v2553 = vpop.f32.mrf.mxu0
      %2554 = vmatprep.mubr.f32.mxu0 %v2394
      %2555 = vmatmul.mubr.f32.gmra.mxu0 %v2393
      %v2556 = vpop.f32.mrf.mxu0
      %v2557 = vadd.f32 0.0, %v2556
      %v2558 = vpop.f32.mrf.mxu0
      %2559 = vmatprep.mubr.f32.mxu0 %v2397
      %2560 = vmatmul.mubr.f32.gmra.mxu0 %v2396
      %v2561 = vpop.f32.mrf.mxu0
      %v2562 = vadd.f32 0.0, %v2561
      %v2563 = vpop.f32.mrf.mxu0
      %2564 = vdwg.mxu0
      %2565 = vmatprep.subr.mxu0 0.0
      %2566 = vmatpush1.msra.mxu0 0.0
      %2567 = vmatprep.subr.mxu0 0.0
      %2568 = vmatpush1.msra.mxu0 0.0
      %2569 = vmatprep.subr.mxu0 0.0
      %2570 = vmatpush1.msra.mxu0 0.0
      %2571 = vmatprep.subr.mxu0 0.0
      %2572 = vmatpush1.msra.mxu0 0.0
      %2573 = vmatprep.subr.mxu0 0.0
      %2574 = vmatpush1.msra.mxu0 0.0
      %2575 = vmatprep.subr.mxu0 0.0
      %2576 = vmatpush1.msra.mxu0 0.0
      %2577 = vmatprep.subr.mxu0 0.0
      %2578 = vmatpush1.msra.mxu0 0.0
      %2579 = vmatprep.subr.mxu0 0.0
      %2580 = vmatpush1.msra.mxu0 0.0
      %2581 = vmatprep.subr.mxu0 0.0
      %2582 = vmatpush1.msra.mxu0 0.0
      %2583 = vmatprep.subr.mxu0 0.0
      %2584 = vmatpush1.msra.mxu0 0.0
      %2585 = vmatprep.subr.mxu0 0.0
      %2586 = vmatpush1.msra.mxu0 0.0
      %2587 = vmatprep.subr.mxu0 0.0
      %2588 = vmatpush1.msra.mxu0 0.0
      %2589 = vmatprep.subr.mxu0 0.0
      %2590 = vmatpush1.msra.mxu0 %v2434
      %2591 = vmatprep.subr.mxu0 0.0
      %2592 = vmatpush1.msra.mxu0 %v2433
      %2593 = vmatprep.subr.mxu0 0.0
      %2594 = vmatpush1.msra.mxu0 %v2432
      %2595 = vmatprep.subr.mxu0 0.0
      %2596 = vmatpush1.msra.mxu0 %v2431
      %2597 = vmatprep.subr.mxu0 0.0
      %2598 = vmatpush2.msra.mxu0 0.0
      %2599 = vmatprep.subr.mxu0 0.0
      %2600 = vmatpush2.msra.mxu0 0.0
      %2601 = vmatprep.subr.mxu0 0.0
      %2602 = vmatpush2.msra.mxu0 0.0
      %2603 = vmatprep.subr.mxu0 0.0
      %2604 = vmatpush2.msra.mxu0 0.0
      %2605 = vmatprep.subr.mxu0 0.0
      %2606 = vmatpush2.msra.mxu0 0.0
      %2607 = vmatprep.subr.mxu0 0.0
      %2608 = vmatpush2.msra.mxu0 0.0
      %2609 = vmatprep.subr.mxu0 0.0
      %2610 = vmatpush2.msra.mxu0 0.0
      %2611 = vmatprep.subr.mxu0 0.0
      %2612 = vmatpush2.msra.mxu0 0.0
      %2613 = vmatprep.subr.mxu0 0.0
      %2614 = vmatpush2.msra.mxu0 0.0
      %2615 = vmatprep.subr.mxu0 0.0
      %2616 = vmatpush2.msra.mxu0 0.0
      %2617 = vmatprep.subr.mxu0 0.0
      %2618 = vmatpush2.msra.mxu0 0.0
      %2619 = vmatprep.subr.mxu0 0.0
      %2620 = vmatpush2.msra.mxu0 0.0
      %2621 = vmatprep.subr.mxu0 0.0
      %2622 = vmatpush2.msra.mxu0 0.0
      %2623 = vmatprep.subr.mxu0 0.0
      %2624 = vmatpush2.msra.mxu0 0.0
      %2625 = vmatprep.subr.mxu0 0.0
      %2626 = vmatpush2.msra.mxu0 0.0
      %2627 = vmatprep.subr.mxu0 0.0
      %2628 = vmatpush2.msra.mxu0 0.0
      %2629 = vmatprep.mubr.f32.mxu0 0.0
      %2630 = vmatmul.mubr.f32.gmra.mxu0 %v2437
      %v2631 = vpop.f32.mrf.mxu0
      %v2632 = vadd.f32 %v2527, %v2631
      %v2633 = vpop.f32.mrf.mxu0
      %2634 = vmatprep.mubr.f32.mxu0 0.0
      %2635 = vmatmul.mubr.f32.gmra.mxu0 %v2440
      %v2636 = vpop.f32.mrf.mxu0
      %v2637 = vadd.f32 %v2532, %v2636
      %v2638 = vpop.f32.mrf.mxu0
      %2639 = vmatprep.mubr.f32.mxu0 0.0
      %2640 = vmatmul.mubr.f32.gmra.mxu0 %v2443
      %v2641 = vpop.f32.mrf.mxu0
      %v2642 = vadd.f32 %v2537, %v2641
      %v2643 = vpop.f32.mrf.mxu0
      %2644 = vmatprep.mubr.f32.mxu0 0.0
      %2645 = vmatmul.mubr.f32.gmra.mxu0 %v2446
      %v2646 = vpop.f32.mrf.mxu0
      %v2647 = vadd.f32 %v2542, %v2646
      %v2648 = vpop.f32.mrf.mxu0
      %2649 = vmatprep.mubr.f32.mxu0 0.0
      %2650 = vmatmul.mubr.f32.gmra.mxu0 %v2449
      %v2651 = vpop.f32.mrf.mxu0
      %v2652 = vadd.f32 %v2547, %v2651
      %v2653 = vpop.f32.mrf.mxu0
      %2654 = vmatprep.mubr.f32.mxu0 0.0
      %2655 = vmatmul.mubr.f32.gmra.mxu0 %v2452
      %v2656 = vpop.f32.mrf.mxu0
      %v2657 = vadd.f32 %v2552, %v2656
      %v2658 = vpop.f32.mrf.mxu0
      %2659 = vmatprep.mubr.f32.mxu0 0.0
      %2660 = vmatmul.mubr.f32.gmra.mxu0 %v2455
      %v2661 = vpop.f32.mrf.mxu0
      %v2662 = vadd.f32 %v2557, %v2661
      %v2663 = vpop.f32.mrf.mxu0
      %2664 = vmatprep.mubr.f32.mxu0 0.0
      %2665 = vmatmul.mubr.f32.gmra.mxu0 %v2458
      %v2666 = vpop.f32.mrf.mxu0
      %v2667 = vadd.f32 %v2562, %v2666
      %v2668 = vpop.f32.mrf.mxu0
      %2669 = vdwg.mxu0
      %s2670 = scalar_lea.vmem %s3, 288
      %v2671 = vld [vmem:[%s2670] sm:$0xff]
      %v2672 = vld [vmem:[%s2670 + $0x8] sm:$0xff]
      %v2673 = vld [vmem:[%s2670 + $0x10] sm:$0xff]
      %v2674 = vld [vmem:[%s2670 + $0x18] sm:$0xff]
      %v2675 = vld [vmem:[%s2670 + $0x20] sm:$0xff]
      %v2676 = vld [vmem:[%s2670 + $0x28] sm:$0xff]
      %v2677 = vld [vmem:[%s2670 + $0x30] sm:$0xff]
      %v2678 = vld [vmem:[%s2670 + $0x38] sm:$0xff]
      %v2679 = vld [vmem:[%s2670 + $0x40] sm:$0xff]
      %v2680 = vld [vmem:[%s2670 + $0x48] sm:$0xff]
      %v2681 = vld [vmem:[%s2670 + $0x50] sm:$0xff]
      %v2682 = vld [vmem:[%s2670 + $0x58] sm:$0xff]
      %v2683 = vld [vmem:[%s2670 + $0x60] sm:$0xff]
      %v2684 = vld [vmem:[%s2670 + $0x68] sm:$0xff]
      %v2685 = vld [vmem:[%s2670 + $0x70] sm:$0xff]
      %v2686 = vld [vmem:[%s2670 + $0x78] sm:$0xff]
      %v2687 = vld [vmem:[%s2670 + $0x80] sm:$0xff]
      %v2688 = vld [vmem:[%s2670 + $0x88] sm:$0xff]
      %v2689 = vld [vmem:[%s2670 + $0x90] sm:$0xff]
      %v2690 = vld [vmem:[%s2670 + $0x98] sm:$0xff]
      %v2691 = vld [vmem:[%s2670 + $0xa0] sm:$0xff]
      %v2692 = vld [vmem:[%s2670 + $0xa8] sm:$0xff]
      %v2693 = vld [vmem:[%s2670 + $0xb0] sm:$0xff]
      %v2694 = vld [vmem:[%s2670 + $0xb8] sm:$0xff]
      %v2695 = vld [vmem:[%s2670 + $0xc0] sm:$0xff]
      %v2696 = vld [vmem:[%s2670 + $0xc8] sm:$0xff]
      %v2697 = vld [vmem:[%s2670 + $0xd0] sm:$0xff]
      %v2698 = vld [vmem:[%s2670 + $0xd8] sm:$0xff]
      %v2699 = vld [vmem:[%s2670 + $0xe0] sm:$0xff]
      %v2700 = vld [vmem:[%s2670 + $0xe8] sm:$0xff]
      %v2701 = vld [vmem:[%s2670 + $0xf0] sm:$0xff]
      %v2702 = vld [vmem:[%s2670 + $0xf8] sm:$0xff]
      %v2703 = vld [vmem:[%s2670 + $0x100] sm:$0xff]
      %v2704 = vld [vmem:[%s2670 + $0x108] sm:$0xff]
      %v2705 = vld [vmem:[%s2670 + $0x110] sm:$0xff]
      %v2706 = vld [vmem:[%s2670 + $0x118] sm:$0xff]
      %2707 = vmatprep.subr.mxu0 0.0
      %2708 = vmatpush1.msra.mxu0 %v2686
      %2709 = vmatprep.subr.mxu0 0.0
      %2710 = vmatpush1.msra.mxu0 %v2685
      %2711 = vmatprep.subr.mxu0 0.0
      %2712 = vmatpush1.msra.mxu0 %v2684
      %2713 = vmatprep.subr.mxu0 0.0
      %2714 = vmatpush1.msra.mxu0 %v2683
      %2715 = vmatprep.subr.mxu0 0.0
      %2716 = vmatpush1.msra.mxu0 %v2682
      %2717 = vmatprep.subr.mxu0 0.0
      %2718 = vmatpush1.msra.mxu0 %v2681
      %2719 = vmatprep.subr.mxu0 0.0
      %2720 = vmatpush1.msra.mxu0 %v2680
      %2721 = vmatprep.subr.mxu0 0.0
      %2722 = vmatpush1.msra.mxu0 %v2679
      %2723 = vmatprep.subr.mxu0 0.0
      %2724 = vmatpush1.msra.mxu0 %v2678
      %2725 = vmatprep.subr.mxu0 0.0
      %2726 = vmatpush1.msra.mxu0 %v2677
      %2727 = vmatprep.subr.mxu0 0.0
      %2728 = vmatpush1.msra.mxu0 %v2676
      %2729 = vmatprep.subr.mxu0 0.0
      %2730 = vmatpush1.msra.mxu0 %v2675
      %2731 = vmatprep.subr.mxu0 0.0
      %2732 = vmatpush1.msra.mxu0 %v2674
      %2733 = vmatprep.subr.mxu0 0.0
      %2734 = vmatpush1.msra.mxu0 %v2673
      %2735 = vmatprep.subr.mxu0 0.0
      %2736 = vmatpush1.msra.mxu0 %v2672
      %2737 = vmatprep.subr.mxu0 0.0
      %2738 = vmatpush1.msra.mxu0 %v2671
      %2739 = vmatprep.subr.mxu0 0.0
      %2740 = vmatpush2.msra.mxu0 %v2702
      %2741 = vmatprep.subr.mxu0 0.0
      %2742 = vmatpush2.msra.mxu0 %v2701
      %2743 = vmatprep.subr.mxu0 0.0
      %2744 = vmatpush2.msra.mxu0 %v2700
      %2745 = vmatprep.subr.mxu0 0.0
      %2746 = vmatpush2.msra.mxu0 %v2699
      %2747 = vmatprep.subr.mxu0 0.0
      %2748 = vmatpush2.msra.mxu0 %v2698
      %2749 = vmatprep.subr.mxu0 0.0
      %2750 = vmatpush2.msra.mxu0 %v2697
      %2751 = vmatprep.subr.mxu0 0.0
      %2752 = vmatpush2.msra.mxu0 %v2696
      %2753 = vmatprep.subr.mxu0 0.0
      %2754 = vmatpush2.msra.mxu0 %v2695
      %2755 = vmatprep.subr.mxu0 0.0
      %2756 = vmatpush2.msra.mxu0 %v2694
      %2757 = vmatprep.subr.mxu0 0.0
      %2758 = vmatpush2.msra.mxu0 %v2693
      %2759 = vmatprep.subr.mxu0 0.0
      %2760 = vmatpush2.msra.mxu0 %v2692
      %2761 = vmatprep.subr.mxu0 0.0
      %2762 = vmatpush2.msra.mxu0 %v2691
      %2763 = vmatprep.subr.mxu0 0.0
      %2764 = vmatpush2.msra.mxu0 %v2690
      %2765 = vmatprep.subr.mxu0 0.0
      %2766 = vmatpush2.msra.mxu0 %v2689
      %2767 = vmatprep.subr.mxu0 0.0
      %2768 = vmatpush2.msra.mxu0 %v2688
      %2769 = vmatprep.subr.mxu0 0.0
      %2770 = vmatpush2.msra.mxu0 %v2687
      %2771 = vmatprep.mubr.f32.mxu0 %v2376
      %2772 = vmatmul.mubr.f32.gmra.mxu0 %v2375
      %v2773 = vpop.f32.mrf.mxu0
      %v2774 = vadd.f32 0.0, %v2773
      %v2775 = vpop.f32.mrf.mxu0
      %2776 = vmatprep.mubr.f32.mxu0 %v2379
      %2777 = vmatmul.mubr.f32.gmra.mxu0 %v2378
      %v2778 = vpop.f32.mrf.mxu0
      %v2779 = vadd.f32 0.0, %v2778
      %v2780 = vpop.f32.mrf.mxu0
      %2781 = vmatprep.mubr.f32.mxu0 %v2382
      %2782 = vmatmul.mubr.f32.gmra.mxu0 %v2381
      %v2783 = vpop.f32.mrf.mxu0
      %v2784 = vadd.f32 0.0, %v2783
      %v2785 = vpop.f32.mrf.mxu0
      %2786 = vmatprep.mubr.f32.mxu0 %v2385
      %2787 = vmatmul.mubr.f32.gmra.mxu0 %v2384
      %v2788 = vpop.f32.mrf.mxu0
      %v2789 = vadd.f32 0.0, %v2788
      %v2790 = vpop.f32.mrf.mxu0
      %2791 = vmatprep.mubr.f32.mxu0 %v2388
      %2792 = vmatmul.mubr.f32.gmra.mxu0 %v2387
      %v2793 = vpop.f32.mrf.mxu0
      %v2794 = vadd.f32 0.0, %v2793
      %v2795 = vpop.f32.mrf.mxu0
      %2796 = vmatprep.mubr.f32.mxu0 %v2391
      %2797 = vmatmul.mubr.f32.gmra.mxu0 %v2390
      %v2798 = vpop.f32.mrf.mxu0
      %v2799 = vadd.f32 0.0, %v2798
      %v2800 = vpop.f32.mrf.mxu0
      %2801 = vmatprep.mubr.f32.mxu0 %v2394
      %2802 = vmatmul.mubr.f32.gmra.mxu0 %v2393
      %v2803 = vpop.f32.mrf.mxu0
      %v2804 = vadd.f32 0.0, %v2803
      %v2805 = vpop.f32.mrf.mxu0
      %2806 = vmatprep.mubr.f32.mxu0 %v2397
      %2807 = vmatmul.mubr.f32.gmra.mxu0 %v2396
      %v2808 = vpop.f32.mrf.mxu0
      %v2809 = vadd.f32 0.0, %v2808
      %v2810 = vpop.f32.mrf.mxu0
      %2811 = vdwg.mxu0
      %2812 = vmatprep.subr.mxu0 0.0
      %2813 = vmatpush1.msra.mxu0 0.0
      %2814 = vmatprep.subr.mxu0 0.0
      %2815 = vmatpush1.msra.mxu0 0.0
      %2816 = vmatprep.subr.mxu0 0.0
      %2817 = vmatpush1.msra.mxu0 0.0
      %2818 = vmatprep.subr.mxu0 0.0
      %2819 = vmatpush1.msra.mxu0 0.0
      %2820 = vmatprep.subr.mxu0 0.0
      %2821 = vmatpush1.msra.mxu0 0.0
      %2822 = vmatprep.subr.mxu0 0.0
      %2823 = vmatpush1.msra.mxu0 0.0
      %2824 = vmatprep.subr.mxu0 0.0
      %2825 = vmatpush1.msra.mxu0 0.0
      %2826 = vmatprep.subr.mxu0 0.0
      %2827 = vmatpush1.msra.mxu0 0.0
      %2828 = vmatprep.subr.mxu0 0.0
      %2829 = vmatpush1.msra.mxu0 0.0
      %2830 = vmatprep.subr.mxu0 0.0
      %2831 = vmatpush1.msra.mxu0 0.0
      %2832 = vmatprep.subr.mxu0 0.0
      %2833 = vmatpush1.msra.mxu0 0.0
      %2834 = vmatprep.subr.mxu0 0.0
      %2835 = vmatpush1.msra.mxu0 0.0
      %2836 = vmatprep.subr.mxu0 0.0
      %2837 = vmatpush1.msra.mxu0 %v2706
      %2838 = vmatprep.subr.mxu0 0.0
      %2839 = vmatpush1.msra.mxu0 %v2705
      %2840 = vmatprep.subr.mxu0 0.0
      %2841 = vmatpush1.msra.mxu0 %v2704
      %2842 = vmatprep.subr.mxu0 0.0
      %2843 = vmatpush1.msra.mxu0 %v2703
      %2844 = vmatprep.subr.mxu0 0.0
      %2845 = vmatpush2.msra.mxu0 0.0
      %2846 = vmatprep.subr.mxu0 0.0
      %2847 = vmatpush2.msra.mxu0 0.0
      %2848 = vmatprep.subr.mxu0 0.0
      %2849 = vmatpush2.msra.mxu0 0.0
      %2850 = vmatprep.subr.mxu0 0.0
      %2851 = vmatpush2.msra.mxu0 0.0
      %2852 = vmatprep.subr.mxu0 0.0
      %2853 = vmatpush2.msra.mxu0 0.0
      %2854 = vmatprep.subr.mxu0 0.0
      %2855 = vmatpush2.msra.mxu0 0.0
      %2856 = vmatprep.subr.mxu0 0.0
      %2857 = vmatpush2.msra.mxu0 0.0
      %2858 = vmatprep.subr.mxu0 0.0
      %2859 = vmatpush2.msra.mxu0 0.0
      %2860 = vmatprep.subr.mxu0 0.0
      %2861 = vmatpush2.msra.mxu0 0.0
      %2862 = vmatprep.subr.mxu0 0.0
      %2863 = vmatpush2.msra.mxu0 0.0
      %2864 = vmatprep.subr.mxu0 0.0
      %2865 = vmatpush2.msra.mxu0 0.0
      %2866 = vmatprep.subr.mxu0 0.0
      %2867 = vmatpush2.msra.mxu0 0.0
      %2868 = vmatprep.subr.mxu0 0.0
      %2869 = vmatpush2.msra.mxu0 0.0
      %2870 = vmatprep.subr.mxu0 0.0
      %2871 = vmatpush2.msra.mxu0 0.0
      %2872 = vmatprep.subr.mxu0 0.0
      %2873 = vmatpush2.msra.mxu0 0.0
      %2874 = vmatprep.subr.mxu0 0.0
      %2875 = vmatpush2.msra.mxu0 0.0
      %2876 = vmatprep.mubr.f32.mxu0 0.0
      %2877 = vmatmul.mubr.f32.gmra.mxu0 %v2437
      %v2878 = vpop.f32.mrf.mxu0
      %v2879 = vadd.f32 %v2774, %v2878
      %v2880 = vpop.f32.mrf.mxu0
      %2881 = vmatprep.mubr.f32.mxu0 0.0
      %2882 = vmatmul.mubr.f32.gmra.mxu0 %v2440
      %v2883 = vpop.f32.mrf.mxu0
      %v2884 = vadd.f32 %v2779, %v2883
      %v2885 = vpop.f32.mrf.mxu0
      %2886 = vmatprep.mubr.f32.mxu0 0.0
      %2887 = vmatmul.mubr.f32.gmra.mxu0 %v2443
      %v2888 = vpop.f32.mrf.mxu0
      %v2889 = vadd.f32 %v2784, %v2888
      %v2890 = vpop.f32.mrf.mxu0
      %2891 = vmatprep.mubr.f32.mxu0 0.0
      %2892 = vmatmul.mubr.f32.gmra.mxu0 %v2446
      %v2893 = vpop.f32.mrf.mxu0
      %v2894 = vadd.f32 %v2789, %v2893
      %v2895 = vpop.f32.mrf.mxu0
      %2896 = vmatprep.mubr.f32.mxu0 0.0
      %2897 = vmatmul.mubr.f32.gmra.mxu0 %v2449
      %v2898 = vpop.f32.mrf.mxu0
      %v2899 = vadd.f32 %v2794, %v2898
      %v2900 = vpop.f32.mrf.mxu0
      %2901 = vmatprep.mubr.f32.mxu0 0.0
      %2902 = vmatmul.mubr.f32.gmra.mxu0 %v2452
      %v2903 = vpop.f32.mrf.mxu0
      %v2904 = vadd.f32 %v2799, %v2903
      %v2905 = vpop.f32.mrf.mxu0
      %2906 = vmatprep.mubr.f32.mxu0 0.0
      %2907 = vmatmul.mubr.f32.gmra.mxu0 %v2455
      %v2908 = vpop.f32.mrf.mxu0
      %v2909 = vadd.f32 %v2804, %v2908
      %v2910 = vpop.f32.mrf.mxu0
      %2911 = vmatprep.mubr.f32.mxu0 0.0
      %2912 = vmatmul.mubr.f32.gmra.mxu0 %v2458
      %v2913 = vpop.f32.mrf.mxu0
      %v2914 = vadd.f32 %v2809, %v2913
      %v2915 = vpop.f32.mrf.mxu0
      %2916 = vdwg.mxu0
      %v2917 = vmax.f32 %v2632, %v2879
      %v2918 = vmax.f32 %v2637, %v2884
      %v2919 = vmax.f32 %v2642, %v2889
      %v2920 = vmax.f32 %v2647, %v2894
      %v2921 = vmax.f32 %v2652, %v2899
      %v2922 = vmax.f32 %v2657, %v2904
      %v2923 = vmax.f32 %v2662, %v2909
      %v2924 = vmax.f32 %v2667, %v2914
      %s2925 = scalar_lea.vmem %s3, 576
      %v2926 = vld [vmem:[%s2925] sm:$0xff]
      %v2927 = vld [vmem:[%s2925 + $0x8] sm:$0xff]
      %v2928 = vld [vmem:[%s2925 + $0x10] sm:$0xff]
      %v2929 = vld [vmem:[%s2925 + $0x18] sm:$0xff]
      %v2930 = vld [vmem:[%s2925 + $0x20] sm:$0xff]
      %v2931 = vld [vmem:[%s2925 + $0x28] sm:$0xff]
      %v2932 = vld [vmem:[%s2925 + $0x30] sm:$0xff]
      %v2933 = vld [vmem:[%s2925 + $0x38] sm:$0xff]
      %v2934 = vld [vmem:[%s2925 + $0x40] sm:$0xff]
      %v2935 = vld [vmem:[%s2925 + $0x48] sm:$0xff]
      %v2936 = vld [vmem:[%s2925 + $0x50] sm:$0xff]
      %v2937 = vld [vmem:[%s2925 + $0x58] sm:$0xff]
      %v2938 = vld [vmem:[%s2925 + $0x60] sm:$0xff]
      %v2939 = vld [vmem:[%s2925 + $0x68] sm:$0xff]
      %v2940 = vld [vmem:[%s2925 + $0x70] sm:$0xff]
      %v2941 = vld [vmem:[%s2925 + $0x78] sm:$0xff]
      %v2942 = vld [vmem:[%s2925 + $0x80] sm:$0xff]
      %v2943 = vld [vmem:[%s2925 + $0x88] sm:$0xff]
      %v2944 = vld [vmem:[%s2925 + $0x90] sm:$0xff]
      %v2945 = vld [vmem:[%s2925 + $0x98] sm:$0xff]
      %v2946 = vld [vmem:[%s2925 + $0xa0] sm:$0xff]
      %v2947 = vld [vmem:[%s2925 + $0xa8] sm:$0xff]
      %v2948 = vld [vmem:[%s2925 + $0xb0] sm:$0xff]
      %v2949 = vld [vmem:[%s2925 + $0xb8] sm:$0xff]
      %v2950 = vld [vmem:[%s2925 + $0xc0] sm:$0xff]
      %v2951 = vld [vmem:[%s2925 + $0xc8] sm:$0xff]
      %v2952 = vld [vmem:[%s2925 + $0xd0] sm:$0xff]
      %v2953 = vld [vmem:[%s2925 + $0xd8] sm:$0xff]
      %v2954 = vld [vmem:[%s2925 + $0xe0] sm:$0xff]
      %v2955 = vld [vmem:[%s2925 + $0xe8] sm:$0xff]
      %v2956 = vld [vmem:[%s2925 + $0xf0] sm:$0xff]
      %v2957 = vld [vmem:[%s2925 + $0xf8] sm:$0xff]
      %v2958 = vld [vmem:[%s2925 + $0x100] sm:$0xff]
      %v2959 = vld [vmem:[%s2925 + $0x108] sm:$0xff]
      %v2960 = vld [vmem:[%s2925 + $0x110] sm:$0xff]
      %v2961 = vld [vmem:[%s2925 + $0x118] sm:$0xff]
      %2962 = vmatprep.subr.mxu0 0.0
      %2963 = vmatpush1.msra.mxu0 %v2941
      %2964 = vmatprep.subr.mxu0 0.0
      %2965 = vmatpush1.msra.mxu0 %v2940
      %2966 = vmatprep.subr.mxu0 0.0
      %2967 = vmatpush1.msra.mxu0 %v2939
      %2968 = vmatprep.subr.mxu0 0.0
      %2969 = vmatpush1.msra.mxu0 %v2938
      %2970 = vmatprep.subr.mxu0 0.0
      %2971 = vmatpush1.msra.mxu0 %v2937
      %2972 = vmatprep.subr.mxu0 0.0
      %2973 = vmatpush1.msra.mxu0 %v2936
      %2974 = vmatprep.subr.mxu0 0.0
      %2975 = vmatpush1.msra.mxu0 %v2935
      %2976 = vmatprep.subr.mxu0 0.0
      %2977 = vmatpush1.msra.mxu0 %v2934
      %2978 = vmatprep.subr.mxu0 0.0
      %2979 = vmatpush1.msra.mxu0 %v2933
      %2980 = vmatprep.subr.mxu0 0.0
      %2981 = vmatpush1.msra.mxu0 %v2932
      %2982 = vmatprep.subr.mxu0 0.0
      %2983 = vmatpush1.msra.mxu0 %v2931
      %2984 = vmatprep.subr.mxu0 0.0
      %2985 = vmatpush1.msra.mxu0 %v2930
      %2986 = vmatprep.subr.mxu0 0.0
      %2987 = vmatpush1.msra.mxu0 %v2929
      %2988 = vmatprep.subr.mxu0 0.0
      %2989 = vmatpush1.msra.mxu0 %v2928
      %2990 = vmatprep.subr.mxu0 0.0
      %2991 = vmatpush1.msra.mxu0 %v2927
      %2992 = vmatprep.subr.mxu0 0.0
      %2993 = vmatpush1.msra.mxu0 %v2926
      %2994 = vmatprep.subr.mxu0 0.0
      %2995 = vmatpush2.msra.mxu0 %v2957
      %2996 = vmatprep.subr.mxu0 0.0
      %2997 = vmatpush2.msra.mxu0 %v2956
      %2998 = vmatprep.subr.mxu0 0.0
      %2999 = vmatpush2.msra.mxu0 %v2955
      %3000 = vmatprep.subr.mxu0 0.0
      %3001 = vmatpush2.msra.mxu0 %v2954
      %3002 = vmatprep.subr.mxu0 0.0
      %3003 = vmatpush2.msra.mxu0 %v2953
      %3004 = vmatprep.subr.mxu0 0.0
      %3005 = vmatpush2.msra.mxu0 %v2952
      %3006 = vmatprep.subr.mxu0 0.0
      %3007 = vmatpush2.msra.mxu0 %v2951
      %3008 = vmatprep.subr.mxu0 0.0
      %3009 = vmatpush2.msra.mxu0 %v2950
      %3010 = vmatprep.subr.mxu0 0.0
      %3011 = vmatpush2.msra.mxu0 %v2949
      %3012 = vmatprep.subr.mxu0 0.0
      %3013 = vmatpush2.msra.mxu0 %v2948
      %3014 = vmatprep.subr.mxu0 0.0
      %3015 = vmatpush2.msra.mxu0 %v2947
      %3016 = vmatprep.subr.mxu0 0.0
      %3017 = vmatpush2.msra.mxu0 %v2946
      %3018 = vmatprep.subr.mxu0 0.0
      %3019 = vmatpush2.msra.mxu0 %v2945
      %3020 = vmatprep.subr.mxu0 0.0
      %3021 = vmatpush2.msra.mxu0 %v2944
      %3022 = vmatprep.subr.mxu0 0.0
      %3023 = vmatpush2.msra.mxu0 %v2943
      %3024 = vmatprep.subr.mxu0 0.0
      %3025 = vmatpush2.msra.mxu0 %v2942
      %3026 = vmatprep.mubr.f32.mxu0 %v2376
      %3027 = vmatmul.mubr.f32.gmra.mxu0 %v2375
      %v3028 = vpop.f32.mrf.mxu0
      %v3029 = vadd.f32 0.0, %v3028
      %v3030 = vpop.f32.mrf.mxu0
      %3031 = vmatprep.mubr.f32.mxu0 %v2379
      %3032 = vmatmul.mubr.f32.gmra.mxu0 %v2378
      %v3033 = vpop.f32.mrf.mxu0
      %v3034 = vadd.f32 0.0, %v3033
      %v3035 = vpop.f32.mrf.mxu0
      %3036 = vmatprep.mubr.f32.mxu0 %v2382
      %3037 = vmatmul.mubr.f32.gmra.mxu0 %v2381
      %v3038 = vpop.f32.mrf.mxu0
      %v3039 = vadd.f32 0.0, %v3038
      %v3040 = vpop.f32.mrf.mxu0
      %3041 = vmatprep.mubr.f32.mxu0 %v2385
      %3042 = vmatmul.mubr.f32.gmra.mxu0 %v2384
      %v3043 = vpop.f32.mrf.mxu0
      %v3044 = vadd.f32 0.0, %v3043
      %v3045 = vpop.f32.mrf.mxu0
      %3046 = vmatprep.mubr.f32.mxu0 %v2388
      %3047 = vmatmul.mubr.f32.gmra.mxu0 %v2387
      %v3048 = vpop.f32.mrf.mxu0
      %v3049 = vadd.f32 0.0, %v3048
      %v3050 = vpop.f32.mrf.mxu0
      %3051 = vmatprep.mubr.f32.mxu0 %v2391
      %3052 = vmatmul.mubr.f32.gmra.mxu0 %v2390
      %v3053 = vpop.f32.mrf.mxu0
      %v3054 = vadd.f32 0.0, %v3053
      %v3055 = vpop.f32.mrf.mxu0
      %3056 = vmatprep.mubr.f32.mxu0 %v2394
      %3057 = vmatmul.mubr.f32.gmra.mxu0 %v2393
      %v3058 = vpop.f32.mrf.mxu0
      %v3059 = vadd.f32 0.0, %v3058
      %v3060 = vpop.f32.mrf.mxu0
      %3061 = vmatprep.mubr.f32.mxu0 %v2397
      %3062 = vmatmul.mubr.f32.gmra.mxu0 %v2396
      %v3063 = vpop.f32.mrf.mxu0
      %v3064 = vadd.f32 0.0, %v3063
      %v3065 = vpop.f32.mrf.mxu0
      %3066 = vdwg.mxu0
      %3067 = vmatprep.subr.mxu0 0.0
      %3068 = vmatpush1.msra.mxu0 0.0
      %3069 = vmatprep.subr.mxu0 0.0
      %3070 = vmatpush1.msra.mxu0 0.0
      %3071 = vmatprep.subr.mxu0 0.0
      %3072 = vmatpush1.msra.mxu0 0.0
      %3073 = vmatprep.subr.mxu0 0.0
      %3074 = vmatpush1.msra.mxu0 0.0
      %3075 = vmatprep.subr.mxu0 0.0
      %3076 = vmatpush1.msra.mxu0 0.0
      %3077 = vmatprep.subr.mxu0 0.0
      %3078 = vmatpush1.msra.mxu0 0.0
      %3079 = vmatprep.subr.mxu0 0.0
      %3080 = vmatpush1.msra.mxu0 0.0
      %3081 = vmatprep.subr.mxu0 0.0
      %3082 = vmatpush1.msra.mxu0 0.0
      %3083 = vmatprep.subr.mxu0 0.0
      %3084 = vmatpush1.msra.mxu0 0.0
      %3085 = vmatprep.subr.mxu0 0.0
      %3086 = vmatpush1.msra.mxu0 0.0
      %3087 = vmatprep.subr.mxu0 0.0
      %3088 = vmatpush1.msra.mxu0 0.0
      %3089 = vmatprep.subr.mxu0 0.0
      %3090 = vmatpush1.msra.mxu0 0.0
      %3091 = vmatprep.subr.mxu0 0.0
      %3092 = vmatpush1.msra.mxu0 %v2961
      %3093 = vmatprep.subr.mxu0 0.0
      %3094 = vmatpush1.msra.mxu0 %v2960
      %3095 = vmatprep.subr.mxu0 0.0
      %3096 = vmatpush1.msra.mxu0 %v2959
      %3097 = vmatprep.subr.mxu0 0.0
      %3098 = vmatpush1.msra.mxu0 %v2958
      %3099 = vmatprep.subr.mxu0 0.0
      %3100 = vmatpush2.msra.mxu0 0.0
      %3101 = vmatprep.subr.mxu0 0.0
      %3102 = vmatpush2.msra.mxu0 0.0
      %3103 = vmatprep.subr.mxu0 0.0
      %3104 = vmatpush2.msra.mxu0 0.0
      %3105 = vmatprep.subr.mxu0 0.0
      %3106 = vmatpush2.msra.mxu0 0.0
      %3107 = vmatprep.subr.mxu0 0.0
      %3108 = vmatpush2.msra.mxu0 0.0
      %3109 = vmatprep.subr.mxu0 0.0
      %3110 = vmatpush2.msra.mxu0 0.0
      %3111 = vmatprep.subr.mxu0 0.0
      %3112 = vmatpush2.msra.mxu0 0.0
      %3113 = vmatprep.subr.mxu0 0.0
      %3114 = vmatpush2.msra.mxu0 0.0
      %3115 = vmatprep.subr.mxu0 0.0
      %3116 = vmatpush2.msra.mxu0 0.0
      %3117 = vmatprep.subr.mxu0 0.0
      %3118 = vmatpush2.msra.mxu0 0.0
      %3119 = vmatprep.subr.mxu0 0.0
      %3120 = vmatpush2.msra.mxu0 0.0
      %3121 = vmatprep.subr.mxu0 0.0
      %3122 = vmatpush2.msra.mxu0 0.0
      %3123 = vmatprep.subr.mxu0 0.0
      %3124 = vmatpush2.msra.mxu0 0.0
      %3125 = vmatprep.subr.mxu0 0.0
      %3126 = vmatpush2.msra.mxu0 0.0
      %3127 = vmatprep.subr.mxu0 0.0
      %3128 = vmatpush2.msra.mxu0 0.0
      %3129 = vmatprep.subr.mxu0 0.0
      %3130 = vmatpush2.msra.mxu0 0.0
      %3131 = vmatprep.mubr.f32.mxu0 0.0
      %3132 = vmatmul.mubr.f32.gmra.mxu0 %v2437
      %v3133 = vpop.f32.mrf.mxu0
      %v3134 = vadd.f32 %v3029, %v3133
      %v3135 = vpop.f32.mrf.mxu0
      %3136 = vmatprep.mubr.f32.mxu0 0.0
      %3137 = vmatmul.mubr.f32.gmra.mxu0 %v2440
      %v3138 = vpop.f32.mrf.mxu0
      %v3139 = vadd.f32 %v3034, %v3138
      %v3140 = vpop.f32.mrf.mxu0
      %3141 = vmatprep.mubr.f32.mxu0 0.0
      %3142 = vmatmul.mubr.f32.gmra.mxu0 %v2443
      %v3143 = vpop.f32.mrf.mxu0
      %v3144 = vadd.f32 %v3039, %v3143
      %v3145 = vpop.f32.mrf.mxu0
      %3146 = vmatprep.mubr.f32.mxu0 0.0
      %3147 = vmatmul.mubr.f32.gmra.mxu0 %v2446
      %v3148 = vpop.f32.mrf.mxu0
      %v3149 = vadd.f32 %v3044, %v3148
      %v3150 = vpop.f32.mrf.mxu0
      %3151 = vmatprep.mubr.f32.mxu0 0.0
      %3152 = vmatmul.mubr.f32.gmra.mxu0 %v2449
      %v3153 = vpop.f32.mrf.mxu0
      %v3154 = vadd.f32 %v3049, %v3153
      %v3155 = vpop.f32.mrf.mxu0
      %3156 = vmatprep.mubr.f32.mxu0 0.0
      %3157 = vmatmul.mubr.f32.gmra.mxu0 %v2452
      %v3158 = vpop.f32.mrf.mxu0
      %v3159 = vadd.f32 %v3054, %v3158
      %v3160 = vpop.f32.mrf.mxu0
      %3161 = vmatprep.mubr.f32.mxu0 0.0
      %3162 = vmatmul.mubr.f32.gmra.mxu0 %v2455
      %v3163 = vpop.f32.mrf.mxu0
      %v3164 = vadd.f32 %v3059, %v3163
      %v3165 = vpop.f32.mrf.mxu0
      %3166 = vmatprep.mubr.f32.mxu0 0.0
      %3167 = vmatmul.mubr.f32.gmra.mxu0 %v2458
      %v3168 = vpop.f32.mrf.mxu0
      %v3169 = vadd.f32 %v3064, %v3168
      %v3170 = vpop.f32.mrf.mxu0
      %3171 = vdwg.mxu0
      %v3172 = vmax.f32 %v2917, %v3134
      %v3173 = vmax.f32 %v2918, %v3139
      %v3174 = vmax.f32 %v2919, %v3144
      %v3175 = vmax.f32 %v2920, %v3149
      %v3176 = vmax.f32 %v2921, %v3154
      %v3177 = vmax.f32 %v2922, %v3159
      %v3178 = vmax.f32 %v2923, %v3164
      %v3179 = vmax.f32 %v2924, %v3169
      %s3180 = scalar_lea.vmem %s3, 864
      %v3181 = vld [vmem:[%s3180] sm:$0xff]
      %v3182 = vld [vmem:[%s3180 + $0x8] sm:$0xff]
      %v3183 = vld [vmem:[%s3180 + $0x10] sm:$0xff]
      %v3184 = vld [vmem:[%s3180 + $0x18] sm:$0xff]
      %v3185 = vld [vmem:[%s3180 + $0x20] sm:$0xff]
      %v3186 = vld [vmem:[%s3180 + $0x28] sm:$0xff]
      %v3187 = vld [vmem:[%s3180 + $0x30] sm:$0xff]
      %v3188 = vld [vmem:[%s3180 + $0x38] sm:$0xff]
      %v3189 = vld [vmem:[%s3180 + $0x40] sm:$0xff]
      %v3190 = vld [vmem:[%s3180 + $0x48] sm:$0xff]
      %v3191 = vld [vmem:[%s3180 + $0x50] sm:$0xff]
      %v3192 = vld [vmem:[%s3180 + $0x58] sm:$0xff]
      %v3193 = vld [vmem:[%s3180 + $0x60] sm:$0xff]
      %v3194 = vld [vmem:[%s3180 + $0x68] sm:$0xff]
      %v3195 = vld [vmem:[%s3180 + $0x70] sm:$0xff]
      %v3196 = vld [vmem:[%s3180 + $0x78] sm:$0xff]
      %v3197 = vld [vmem:[%s3180 + $0x80] sm:$0xff]
      %v3198 = vld [vmem:[%s3180 + $0x88] sm:$0xff]
      %v3199 = vld [vmem:[%s3180 + $0x90] sm:$0xff]
      %v3200 = vld [vmem:[%s3180 + $0x98] sm:$0xff]
      %v3201 = vld [vmem:[%s3180 + $0xa0] sm:$0xff]
      %v3202 = vld [vmem:[%s3180 + $0xa8] sm:$0xff]
      %v3203 = vld [vmem:[%s3180 + $0xb0] sm:$0xff]
      %v3204 = vld [vmem:[%s3180 + $0xb8] sm:$0xff]
      %v3205 = vld [vmem:[%s3180 + $0xc0] sm:$0xff]
      %v3206 = vld [vmem:[%s3180 + $0xc8] sm:$0xff]
      %v3207 = vld [vmem:[%s3180 + $0xd0] sm:$0xff]
      %v3208 = vld [vmem:[%s3180 + $0xd8] sm:$0xff]
      %v3209 = vld [vmem:[%s3180 + $0xe0] sm:$0xff]
      %v3210 = vld [vmem:[%s3180 + $0xe8] sm:$0xff]
      %v3211 = vld [vmem:[%s3180 + $0xf0] sm:$0xff]
      %v3212 = vld [vmem:[%s3180 + $0xf8] sm:$0xff]
      %v3213 = vld [vmem:[%s3180 + $0x100] sm:$0xff]
      %v3214 = vld [vmem:[%s3180 + $0x108] sm:$0xff]
      %v3215 = vld [vmem:[%s3180 + $0x110] sm:$0xff]
      %v3216 = vld [vmem:[%s3180 + $0x118] sm:$0xff]
      %3217 = vmatprep.subr.mxu0 0.0
      %3218 = vmatpush1.msra.mxu0 %v3196
      %3219 = vmatprep.subr.mxu0 0.0
      %3220 = vmatpush1.msra.mxu0 %v3195
      %3221 = vmatprep.subr.mxu0 0.0
      %3222 = vmatpush1.msra.mxu0 %v3194
      %3223 = vmatprep.subr.mxu0 0.0
      %3224 = vmatpush1.msra.mxu0 %v3193
      %3225 = vmatprep.subr.mxu0 0.0
      %3226 = vmatpush1.msra.mxu0 %v3192
      %3227 = vmatprep.subr.mxu0 0.0
      %3228 = vmatpush1.msra.mxu0 %v3191
      %3229 = vmatprep.subr.mxu0 0.0
      %3230 = vmatpush1.msra.mxu0 %v3190
      %3231 = vmatprep.subr.mxu0 0.0
      %3232 = vmatpush1.msra.mxu0 %v3189
      %3233 = vmatprep.subr.mxu0 0.0
      %3234 = vmatpush1.msra.mxu0 %v3188
      %3235 = vmatprep.subr.mxu0 0.0
      %3236 = vmatpush1.msra.mxu0 %v3187
      %3237 = vmatprep.subr.mxu0 0.0
      %3238 = vmatpush1.msra.mxu0 %v3186
      %3239 = vmatprep.subr.mxu0 0.0
      %3240 = vmatpush1.msra.mxu0 %v3185
      %3241 = vmatprep.subr.mxu0 0.0
      %3242 = vmatpush1.msra.mxu0 %v3184
      %3243 = vmatprep.subr.mxu0 0.0
      %3244 = vmatpush1.msra.mxu0 %v3183
      %3245 = vmatprep.subr.mxu0 0.0
      %3246 = vmatpush1.msra.mxu0 %v3182
      %3247 = vmatprep.subr.mxu0 0.0
      %3248 = vmatpush1.msra.mxu0 %v3181
      %3249 = vmatprep.subr.mxu0 0.0
      %3250 = vmatpush2.msra.mxu0 %v3212
      %3251 = vmatprep.subr.mxu0 0.0
      %3252 = vmatpush2.msra.mxu0 %v3211
      %3253 = vmatprep.subr.mxu0 0.0
      %3254 = vmatpush2.msra.mxu0 %v3210
      %3255 = vmatprep.subr.mxu0 0.0
      %3256 = vmatpush2.msra.mxu0 %v3209
      %3257 = vmatprep.subr.mxu0 0.0
      %3258 = vmatpush2.msra.mxu0 %v3208
      %3259 = vmatprep.subr.mxu0 0.0
      %3260 = vmatpush2.msra.mxu0 %v3207
      %3261 = vmatprep.subr.mxu0 0.0
      %3262 = vmatpush2.msra.mxu0 %v3206
      %3263 = vmatprep.subr.mxu0 0.0
      %3264 = vmatpush2.msra.mxu0 %v3205
      %3265 = vmatprep.subr.mxu0 0.0
      %3266 = vmatpush2.msra.mxu0 %v3204
      %3267 = vmatprep.subr.mxu0 0.0
      %3268 = vmatpush2.msra.mxu0 %v3203
      %3269 = vmatprep.subr.mxu0 0.0
      %3270 = vmatpush2.msra.mxu0 %v3202
      %3271 = vmatprep.subr.mxu0 0.0
      %3272 = vmatpush2.msra.mxu0 %v3201
      %3273 = vmatprep.subr.mxu0 0.0
      %3274 = vmatpush2.msra.mxu0 %v3200
      %3275 = vmatprep.subr.mxu0 0.0
      %3276 = vmatpush2.msra.mxu0 %v3199
      %3277 = vmatprep.subr.mxu0 0.0
      %3278 = vmatpush2.msra.mxu0 %v3198
      %3279 = vmatprep.subr.mxu0 0.0
      %3280 = vmatpush2.msra.mxu0 %v3197
      %3281 = vmatprep.mubr.f32.mxu0 %v2376
      %3282 = vmatmul.mubr.f32.gmra.mxu0 %v2375
      %v3283 = vpop.f32.mrf.mxu0
      %v3284 = vadd.f32 0.0, %v3283
      %v3285 = vpop.f32.mrf.mxu0
      %3286 = vmatprep.mubr.f32.mxu0 %v2379
      %3287 = vmatmul.mubr.f32.gmra.mxu0 %v2378
      %v3288 = vpop.f32.mrf.mxu0
      %v3289 = vadd.f32 0.0, %v3288
      %v3290 = vpop.f32.mrf.mxu0
      %3291 = vmatprep.mubr.f32.mxu0 %v2382
      %3292 = vmatmul.mubr.f32.gmra.mxu0 %v2381
      %v3293 = vpop.f32.mrf.mxu0
      %v3294 = vadd.f32 0.0, %v3293
      %v3295 = vpop.f32.mrf.mxu0
      %3296 = vmatprep.mubr.f32.mxu0 %v2385
      %3297 = vmatmul.mubr.f32.gmra.mxu0 %v2384
      %v3298 = vpop.f32.mrf.mxu0
      %v3299 = vadd.f32 0.0, %v3298
      %v3300 = vpop.f32.mrf.mxu0
      %3301 = vmatprep.mubr.f32.mxu0 %v2388
      %3302 = vmatmul.mubr.f32.gmra.mxu0 %v2387
      %v3303 = vpop.f32.mrf.mxu0
      %v3304 = vadd.f32 0.0, %v3303
      %v3305 = vpop.f32.mrf.mxu0
      %3306 = vmatprep.mubr.f32.mxu0 %v2391
      %3307 = vmatmul.mubr.f32.gmra.mxu0 %v2390
      %v3308 = vpop.f32.mrf.mxu0
      %v3309 = vadd.f32 0.0, %v3308
      %v3310 = vpop.f32.mrf.mxu0
      %3311 = vmatprep.mubr.f32.mxu0 %v2394
      %3312 = vmatmul.mubr.f32.gmra.mxu0 %v2393
      %v3313 = vpop.f32.mrf.mxu0
      %v3314 = vadd.f32 0.0, %v3313
      %v3315 = vpop.f32.mrf.mxu0
      %3316 = vmatprep.mubr.f32.mxu0 %v2397
      %3317 = vmatmul.mubr.f32.gmra.mxu0 %v2396
      %v3318 = vpop.f32.mrf.mxu0
      %v3319 = vadd.f32 0.0, %v3318
      %v3320 = vpop.f32.mrf.mxu0
      %3321 = vdwg.mxu0
      %3322 = vmatprep.subr.mxu0 0.0
      %3323 = vmatpush1.msra.mxu0 0.0
      %3324 = vmatprep.subr.mxu0 0.0
      %3325 = vmatpush1.msra.mxu0 0.0
      %3326 = vmatprep.subr.mxu0 0.0
      %3327 = vmatpush1.msra.mxu0 0.0
      %3328 = vmatprep.subr.mxu0 0.0
      %3329 = vmatpush1.msra.mxu0 0.0
      %3330 = vmatprep.subr.mxu0 0.0
      %3331 = vmatpush1.msra.mxu0 0.0
      %3332 = vmatprep.subr.mxu0 0.0
      %3333 = vmatpush1.msra.mxu0 0.0
      %3334 = vmatprep.subr.mxu0 0.0
      %3335 = vmatpush1.msra.mxu0 0.0
      %3336 = vmatprep.subr.mxu0 0.0
      %3337 = vmatpush1.msra.mxu0 0.0
      %3338 = vmatprep.subr.mxu0 0.0
      %3339 = vmatpush1.msra.mxu0 0.0
      %3340 = vmatprep.subr.mxu0 0.0
      %3341 = vmatpush1.msra.mxu0 0.0
      %3342 = vmatprep.subr.mxu0 0.0
      %3343 = vmatpush1.msra.mxu0 0.0
      %3344 = vmatprep.subr.mxu0 0.0
      %3345 = vmatpush1.msra.mxu0 0.0
      %3346 = vmatprep.subr.mxu0 0.0
      %3347 = vmatpush1.msra.mxu0 %v3216
      %3348 = vmatprep.subr.mxu0 0.0
      %3349 = vmatpush1.msra.mxu0 %v3215
      %3350 = vmatprep.subr.mxu0 0.0
      %3351 = vmatpush1.msra.mxu0 %v3214
      %3352 = vmatprep.subr.mxu0 0.0
      %3353 = vmatpush1.msra.mxu0 %v3213
      %3354 = vmatprep.subr.mxu0 0.0
      %3355 = vmatpush2.msra.mxu0 0.0
      %3356 = vmatprep.subr.mxu0 0.0
      %3357 = vmatpush2.msra.mxu0 0.0
      %3358 = vmatprep.subr.mxu0 0.0
      %3359 = vmatpush2.msra.mxu0 0.0
      %3360 = vmatprep.subr.mxu0 0.0
      %3361 = vmatpush2.msra.mxu0 0.0
      %3362 = vmatprep.subr.mxu0 0.0
      %3363 = vmatpush2.msra.mxu0 0.0
      %3364 = vmatprep.subr.mxu0 0.0
      %3365 = vmatpush2.msra.mxu0 0.0
      %3366 = vmatprep.subr.mxu0 0.0
      %3367 = vmatpush2.msra.mxu0 0.0
      %3368 = vmatprep.subr.mxu0 0.0
      %3369 = vmatpush2.msra.mxu0 0.0
      %3370 = vmatprep.subr.mxu0 0.0
      %3371 = vmatpush2.msra.mxu0 0.0
      %3372 = vmatprep.subr.mxu0 0.0
      %3373 = vmatpush2.msra.mxu0 0.0
      %3374 = vmatprep.subr.mxu0 0.0
      %3375 = vmatpush2.msra.mxu0 0.0
      %3376 = vmatprep.subr.mxu0 0.0
      %3377 = vmatpush2.msra.mxu0 0.0
      %3378 = vmatprep.subr.mxu0 0.0
      %3379 = vmatpush2.msra.mxu0 0.0
      %3380 = vmatprep.subr.mxu0 0.0
      %3381 = vmatpush2.msra.mxu0 0.0
      %3382 = vmatprep.subr.mxu0 0.0
      %3383 = vmatpush2.msra.mxu0 0.0
      %3384 = vmatprep.subr.mxu0 0.0
      %3385 = vmatpush2.msra.mxu0 0.0
      %3386 = vmatprep.mubr.f32.mxu0 0.0
      %3387 = vmatmul.mubr.f32.gmra.mxu0 %v2437
      %v3388 = vpop.f32.mrf.mxu0
      %v3389 = vadd.f32 %v3284, %v3388
      %v3390 = vpop.f32.mrf.mxu0
      %3391 = vmatprep.mubr.f32.mxu0 0.0
      %3392 = vmatmul.mubr.f32.gmra.mxu0 %v2440
      %v3393 = vpop.f32.mrf.mxu0
      %v3394 = vadd.f32 %v3289, %v3393
      %v3395 = vpop.f32.mrf.mxu0
      %3396 = vmatprep.mubr.f32.mxu0 0.0
      %3397 = vmatmul.mubr.f32.gmra.mxu0 %v2443
      %v3398 = vpop.f32.mrf.mxu0
      %v3399 = vadd.f32 %v3294, %v3398
      %v3400 = vpop.f32.mrf.mxu0
      %3401 = vmatprep.mubr.f32.mxu0 0.0
      %3402 = vmatmul.mubr.f32.gmra.mxu0 %v2446
      %v3403 = vpop.f32.mrf.mxu0
      %v3404 = vadd.f32 %v3299, %v3403
      %v3405 = vpop.f32.mrf.mxu0
      %3406 = vmatprep.mubr.f32.mxu0 0.0
      %3407 = vmatmul.mubr.f32.gmra.mxu0 %v2449
      %v3408 = vpop.f32.mrf.mxu0
      %v3409 = vadd.f32 %v3304, %v3408
      %v3410 = vpop.f32.mrf.mxu0
      %3411 = vmatprep.mubr.f32.mxu0 0.0
      %3412 = vmatmul.mubr.f32.gmra.mxu0 %v2452
      %v3413 = vpop.f32.mrf.mxu0
      %v3414 = vadd.f32 %v3309, %v3413
      %v3415 = vpop.f32.mrf.mxu0
      %3416 = vmatprep.mubr.f32.mxu0 0.0
      %3417 = vmatmul.mubr.f32.gmra.mxu0 %v2455
      %v3418 = vpop.f32.mrf.mxu0
      %v3419 = vadd.f32 %v3314, %v3418
      %v3420 = vpop.f32.mrf.mxu0
      %3421 = vmatprep.mubr.f32.mxu0 0.0
      %3422 = vmatmul.mubr.f32.gmra.mxu0 %v2458
      %v3423 = vpop.f32.mrf.mxu0
      %v3424 = vadd.f32 %v3319, %v3423
      %v3425 = vpop.f32.mrf.mxu0
      %3426 = vdwg.mxu0
      %v3427 = vmax.f32 %v3172, %v3389
      %v3428 = vmax.f32 %v3173, %v3394
      %v3429 = vmax.f32 %v3174, %v3399
      %v3430 = vmax.f32 %v3175, %v3404
      %v3431 = vmax.f32 %v3176, %v3409
      %v3432 = vmax.f32 %v3177, %v3414
      %v3433 = vmax.f32 %v3178, %v3419
      %v3434 = vmax.f32 %v3179, %v3424
      %v3435 = vld [vmem:[%s4] sm:$0xff]
      %v3436 = vld [vmem:[%s4 + $0x8] sm:$0xff]
      %v3437 = vld [vmem:[%s4 + $0x10] sm:$0xff]
      %v3438 = vld [vmem:[%s4 + $0x18] sm:$0xff]
      %v3439 = vld [vmem:[%s4 + $0x20] sm:$0xff]
      %v3440 = vld [vmem:[%s4 + $0x28] sm:$0xff]
      %v3441 = vld [vmem:[%s4 + $0x30] sm:$0xff]
      %v3442 = vld [vmem:[%s4 + $0x38] sm:$0xff]
      %vm3443 = vcmask 523264
      %v3445 = vsel %vm3443, %v3427, 0
      %v3448 = vsel %vm3443, %v3428, 0
      %v3451 = vsel %vm3443, %v3429, 0
      %v3454 = vsel %vm3443, %v3430, 0
      %v3457 = vsel %vm3443, %v3431, 0
      %v3460 = vsel %vm3443, %v3432, 0
      %v3463 = vsel %vm3443, %v3433, 0
      %v3466 = vsel %vm3443, %v3434, 0
      %3468 = vmatprep.subr.mxu0 0.0
      %3469 = vmatpush1.msra.mxu0 0.0
      %3470 = vmatprep.subr.mxu0 0.0
      %3471 = vmatpush1.msra.mxu0 0.0
      %3472 = vmatprep.subr.mxu0 0.0
      %3473 = vmatpush1.msra.mxu0 0.0
      %3474 = vmatprep.subr.mxu0 0.0
      %3475 = vmatpush1.msra.mxu0 0.0
      %3476 = vmatprep.subr.mxu0 0.0
      %3477 = vmatpush1.msra.mxu0 0.0
      %3478 = vmatprep.subr.mxu0 0.0
      %3479 = vmatpush1.msra.mxu0 0.0
      %3480 = vmatprep.subr.mxu0 0.0
      %3481 = vmatpush1.msra.mxu0 0.0
      %3482 = vmatprep.subr.mxu0 0.0
      %3483 = vmatpush1.msra.mxu0 0.0
      %3484 = vmatprep.subr.mxu0 0.0
      %3485 = vmatpush1.msra.mxu0 %v3442
      %3486 = vmatprep.subr.mxu0 0.0
      %3487 = vmatpush1.msra.mxu0 %v3441
      %3488 = vmatprep.subr.mxu0 0.0
      %3489 = vmatpush1.msra.mxu0 %v3440
      %3490 = vmatprep.subr.mxu0 0.0
      %3491 = vmatpush1.msra.mxu0 %v3439
      %3492 = vmatprep.subr.mxu0 0.0
      %3493 = vmatpush1.msra.mxu0 %v3438
      %3494 = vmatprep.subr.mxu0 0.0
      %3495 = vmatpush1.msra.mxu0 %v3437
      %3496 = vmatprep.subr.mxu0 0.0
      %3497 = vmatpush1.msra.mxu0 %v3436
      %3498 = vmatprep.subr.mxu0 0.0
      %3499 = vmatpush1.msra.mxu0 %v3435
      %3500 = vmatprep.subr.mxu0 0.0
      %3501 = vmatpush2.msra.mxu0 0.0
      %3502 = vmatprep.subr.mxu0 0.0
      %3503 = vmatpush2.msra.mxu0 0.0
      %3504 = vmatprep.subr.mxu0 0.0
      %3505 = vmatpush2.msra.mxu0 0.0
      %3506 = vmatprep.subr.mxu0 0.0
      %3507 = vmatpush2.msra.mxu0 0.0
      %3508 = vmatprep.subr.mxu0 0.0
      %3509 = vmatpush2.msra.mxu0 0.0
      %3510 = vmatprep.subr.mxu0 0.0
      %3511 = vmatpush2.msra.mxu0 0.0
      %3512 = vmatprep.subr.mxu0 0.0
      %3513 = vmatpush2.msra.mxu0 0.0
      %3514 = vmatprep.subr.mxu0 0.0
      %3515 = vmatpush2.msra.mxu0 0.0
      %3516 = vmatprep.subr.mxu0 0.0
      %3517 = vmatpush2.msra.mxu0 0.0
      %3518 = vmatprep.subr.mxu0 0.0
      %3519 = vmatpush2.msra.mxu0 0.0
      %3520 = vmatprep.subr.mxu0 0.0
      %3521 = vmatpush2.msra.mxu0 0.0
      %3522 = vmatprep.subr.mxu0 0.0
      %3523 = vmatpush2.msra.mxu0 0.0
      %3524 = vmatprep.subr.mxu0 0.0
      %3525 = vmatpush2.msra.mxu0 0.0
      %3526 = vmatprep.subr.mxu0 0.0
      %3527 = vmatpush2.msra.mxu0 0.0
      %3528 = vmatprep.subr.mxu0 0.0
      %3529 = vmatpush2.msra.mxu0 0.0
      %3530 = vmatprep.subr.mxu0 0.0
      %3531 = vmatpush2.msra.mxu0 0.0
      %3532 = vmatprep.mubr.f32.mxu0 0.0
      %3533 = vmatmul.mubr.f32.gmra.mxu0 %v3445
      %v3534 = vpop.f32.mrf.mxu0
      %v3535 = vadd.f32 0.0, %v3534
      %v3536 = vpop.f32.mrf.mxu0
      %3537 = vmatprep.mubr.f32.mxu0 0.0
      %3538 = vmatmul.mubr.f32.gmra.mxu0 %v3448
      %v3539 = vpop.f32.mrf.mxu0
      %v3540 = vadd.f32 0.0, %v3539
      %v3541 = vpop.f32.mrf.mxu0
      %3542 = vmatprep.mubr.f32.mxu0 0.0
      %3543 = vmatmul.mubr.f32.gmra.mxu0 %v3451
      %v3544 = vpop.f32.mrf.mxu0
      %v3545 = vadd.f32 0.0, %v3544
      %v3546 = vpop.f32.mrf.mxu0
      %3547 = vmatprep.mubr.f32.mxu0 0.0
      %3548 = vmatmul.mubr.f32.gmra.mxu0 %v3454
      %v3549 = vpop.f32.mrf.mxu0
      %v3550 = vadd.f32 0.0, %v3549
      %v3551 = vpop.f32.mrf.mxu0
      %3552 = vmatprep.mubr.f32.mxu0 0.0
      %3553 = vmatmul.mubr.f32.gmra.mxu0 %v3457
      %v3554 = vpop.f32.mrf.mxu0
      %v3555 = vadd.f32 0.0, %v3554
      %v3556 = vpop.f32.mrf.mxu0
      %3557 = vmatprep.mubr.f32.mxu0 0.0
      %3558 = vmatmul.mubr.f32.gmra.mxu0 %v3460
      %v3559 = vpop.f32.mrf.mxu0
      %v3560 = vadd.f32 0.0, %v3559
      %v3561 = vpop.f32.mrf.mxu0
      %3562 = vmatprep.mubr.f32.mxu0 0.0
      %3563 = vmatmul.mubr.f32.gmra.mxu0 %v3463
      %v3564 = vpop.f32.mrf.mxu0
      %v3565 = vadd.f32 0.0, %v3564
      %v3566 = vpop.f32.mrf.mxu0
      %3567 = vmatprep.mubr.f32.mxu0 0.0
      %3568 = vmatmul.mubr.f32.gmra.mxu0 %v3466
      %v3569 = vpop.f32.mrf.mxu0
      %v3570 = vadd.f32 0.0, %v3569
      %v3571 = vpop.f32.mrf.mxu0
      %3572 = vdwg.mxu0
      %v3573 = vpack.c.bf16 %v3540, %v3535
      %v3574 = vpack.c.bf16 %v3550, %v3545
      %v3575 = vpack.c.bf16 %v3560, %v3555
      %v3576 = vpack.c.bf16 %v3570, %v3565
      %v3581 = vunpack.c.l.b16 %v3573
      %v3582 = vunpack.c.h.b16 %v3573
      %v3583 = vunpack.c.l.b16 %v3574
      %v3584 = vunpack.c.h.b16 %v3574
      %v3585 = vunpack.c.l.b16 %v3575
      %v3586 = vunpack.c.h.b16 %v3575
      %v3587 = vunpack.c.l.b16 %v3576
      %v3588 = vunpack.c.h.b16 %v3576
      %v3589 = vpack.c.b16 %v3581, %v3581
      %v3590 = vpack.c.b16 %v3582, %v3582
      %v3591 = vpack.c.b16 %v3583, %v3583
      %v3592 = vpack.c.b16 %v3584, %v3584
      %v3593 = vpack.c.b16 %v3585, %v3585
      %v3594 = vpack.c.b16 %v3586, %v3586
      %v3595 = vpack.c.b16 %v3587, %v3587
      %v3596 = vpack.c.b16 %v3588, %v3588
      %vm3605 = vcmask 396288
      %3606 = vst.msk [vmem:[%s224] sm:$0xf] %vm3605, %v3589
      %3607 = vst.msk [vmem:[%s224 + $0x4] sm:$0xf] %vm3605, %v3590
      %3608 = vst.msk [vmem:[%s224 + $0x8] sm:$0xf] %vm3605, %v3591
      %3609 = vst.msk [vmem:[%s224 + $0xc] sm:$0xf] %vm3605, %v3592
      %3610 = vst.msk [vmem:[%s224 + $0x10] sm:$0xf] %vm3605, %v3593
      %3611 = vst.msk [vmem:[%s224 + $0x14] sm:$0xf] %vm3605, %v3594
      %3612 = vst.msk [vmem:[%s224 + $0x18] sm:$0xf] %vm3605, %v3595
      %3613 = vst.msk [vmem:[%s224 + $0x1c] sm:$0xf] %vm3605, %v3596
      %p3614 = scmp.lt.s32.totalorder %s16, 1
      %s3615 = scalar_select %p3614, %s16, 1
      %s3616 = smul.addr %s3615, 8
      %s3617 = smul.addr %s3616, 4
      %s3618 = scalar_lea.vmem %s5, %s3617
      // Predicated region
      $region41: #{vgg_forward.2} parent=39 // pred_check
        %p3619 = pneg %p144
      $region42: #{vgg_forward.2} parent=39 // pred_check_branch
        %3621 = sbr.rel (%p3619) target = $region44
      $region43: #{vgg_forward.2} parent=39 // pred_region
        _
      $region44: #{vgg_forward.2} parent=39 // pred_fallthru
        _
    $region40: #{vgg_forward.2} parent=5 // pred_fallthru
      _
    %p3622 = scmp.le.s32.totalorder 2, %s11
    // Predicated region
    $region45: #{vgg_forward.2} parent=5 // pred_check
      %p3623 = pneg %p3622
    $region46: #{vgg_forward.2} parent=5 // pred_check_branch
      %3625 = sbr.rel (%p3623) target = $region48
    $region47: #{vgg_forward.2} parent=5 // pred_region
      %s3626 = ssub.s32 %s11, 2
      // Predicated region
      $region49: #{vgg_forward.2} parent=47 // pred_check
        %p3627 = pneg %p150
      $region50: #{vgg_forward.2} parent=47 // pred_check_branch
        %3629 = sbr.rel (%p3627) target = $region52
      $region51: #{vgg_forward.2} parent=47 // pred_region
        %p3630 = scmp.lt.s32.totalorder %s17, 1
        %s3631 = scalar_select %p3630, %s17, 1
        %s3632 = smul.addr %s3631, 8
        %s3633 = smul.addr %s3632, 4
        %s3634 = scalar_lea.vmem %s5, %s3633
      $region52: #{vgg_forward.2} parent=47 // pred_fallthru
        _
    $region48: #{vgg_forward.2} parent=5 // pred_fallthru
      _
  $region6: #{vgg_forward.2} parent=0 // loop_footer
    %s15 = sadd.s32 1, %s11
  $region7: #{vgg_forward.2} parent=0 // loop_footer_branch
    %10 = sbr.rel target = $region3
  $region8: #{vgg_forward.2} parent=0 // loop_exit
    _

</llo_original>
